<compile_context>
chip_gen: v7x
topology: tpu7x:2x2x1
jax: 0.10.0
libtpu: 0.0.40
codegen_flags: <defaults>
</compile_context>

<pallas_src>
import functools

import jax
import jax.numpy as jnp
from jax.experimental import pallas as pl
from jax.experimental.pallas import tpu as pltpu


# ----------------------------------------------------------------------------
# Pallas kernel: one full bidirectional LSTM layer
# ----------------------------------------------------------------------------
def _bilstm_layer_kernel(x_ref, wih_ref, b_ref, whh_ref, out_ref,
                         gin_ref, gpack_ref, *, seq_len, batch, hidden):
    """x_ref:    (S, T*B, Din) bf16   S input slabs (1 for layer 1, 2 after)
       wih_ref:  (S, Din, 8H)  bf16   per-slab input->gate weights
       b_ref:    (1, 8H)       f32    fused bias (b_ih + b_hh), both directions
       whh_ref:  (H, 8H)       bf16   recurrent weights, [fwd 4H | bwd 4H]
       out_ref:  (2, T*B, H)   bf16   [0] = fwd hidden seq, [1] = bwd hidden seq
       gin_ref:   (T*B, 8H)    f32    scratch: hoisted gate pre-activations
       gpack_ref: (T*2B, 4H)   f32    scratch: time-paired gate layout

    Gate column order inside each 4H block is [i, f, o, g] (one contiguous
    sigmoid slice + one contiguous tanh slice => 2 EUP pushes per step).
    Row t*B + b  <->  (time t, batch b).
    """
    T, B, H = seq_len, batch, hidden
    S = x_ref.shape[0]
    R = 2 * B                       # rows per packed time block (fwd + bwd)

    # ---- (1) Hoisted input projection: bf16 MXU operands, f32 accumulate. ---
    # (At production T this should become a time-chunked ring buffer
    #  interleaved with the recurrence instead of a full materialisation.)
    gin = jnp.dot(x_ref[0], wih_ref[0], preferred_element_type=jnp.float32)
    for s in range(1, S):           # S is static (1 or 2)
        gin = gin + jnp.dot(x_ref[s], wih_ref[s],
                            preferred_element_type=jnp.float32)
    gin_ref[...] = gin + b_ref[...]

    # ---- (2) One-time re-pack: block t = [fwd gates @ t ; bwd gates @ T-1-t].
    #          Moves all slicing / reordering OFF the serial critical path.
    def repack(t, carry):
        r_f = pl.multiple_of(t * B, 8)                # rows of time t
        r_b = pl.multiple_of((T - 1 - t) * B, 8)      # rows of time T-1-t
        r_p = pl.multiple_of(t * R, 8)
        gpack_ref[pl.ds(r_p, B), :] = gin_ref[pl.ds(r_f, B), 0:4 * H]
        gpack_ref[pl.ds(r_p + B, B), :] = gin_ref[pl.ds(r_b, B), 4 * H:8 * H]
        return carry

    jax.lax.fori_loop(0, T, repack, 0, unroll=True if T <= 16 else 4)

    whh = whh_ref[...]                                # (H, 8H) bf16, resident
    # Hoisted row mask: rows [0:B] of each packed tile are the fwd direction.
    row_is_fwd = jax.lax.broadcasted_iota(jnp.int32, (R, 4 * H), 0) < B

    # ---- (3) Fused fwd/bwd recurrence. Carry rows [0:B]=fwd, [B:2B]=bwd. ----
    def step(t, carry):
        h2, c2 = carry                                # (2B, H) f32
        # Single recurrent matmul, N = 8H = 256 (full MXU width at H=32).
        g_rec = jnp.dot(h2.astype(jnp.bfloat16), whh,
                        preferred_element_type=jnp.float32)       # (2B, 8H)
        # Per-direction selection: lane-aligned slices (4H = 128) + VPU select.
        g_sel = jnp.where(row_is_fwd, g_rec[:, 0:4 * H], g_rec[:, 4 * H:8 * H])

        r_p = pl.multiple_of(t * R, 8)
        gates = gpack_ref[pl.ds(r_p, R), :] + g_sel               # (2B, 4H) f32

        # [i, f, o, g]: one contiguous sigmoid, one contiguous tanh (f32 EUP).
        sig = jax.nn.sigmoid(gates[:, 0:3 * H])
        i_g = sig[:, 0:H]
        f_g = sig[:, H:2 * H]
        o_g = sig[:, 2 * H:3 * H]
        g_g = jnp.tanh(gates[:, 3 * H:4 * H])
        # NOTE: at H=32 these gate extractions are lane rotates (XLU); with a
        # production H that is a multiple of 128 they become whole-vreg moves.

        c_new = f_g * c2 + i_g * g_g
        h_new = o_g * jnp.tanh(c_new)

        # Lane-offset-0 stores for BOTH directions.
        r_f = pl.multiple_of(t * B, 8)
        r_b = pl.multiple_of((T - 1 - t) * B, 8)
        out_ref[0, pl.ds(r_f, B), :] = h_new[0:B].astype(jnp.bfloat16)
        out_ref[1, pl.ds(r_b, B), :] = h_new[B:2 * B].astype(jnp.bfloat16)
        return h_new, c_new

    zeros = jnp.zeros((R, H), jnp.float32)
    # Modest unroll gives the LLO scheduler cross-step visibility; full unroll
    # only for short sequences.
    jax.lax.fori_loop(0, T, step, (zeros, zeros),
                      unroll=True if T <= 16 else 8)


def bilstm_layer(x, w_ih, b, w_hh, *, seq_len, batch, hidden):
    """x: (S, T*B, Din) bf16, w_ih: (S, Din, 8H) bf16, b: (1, 8H) f32,
    w_hh: (H, 8H) bf16  ->  (2, T*B, H) bf16 ([0]=fwd, [1]=bwd), row = t*B + b."""
    S, TB, Din = x.shape
    H, T, B = hidden, seq_len, batch
    assert TB == T * B and B % 8 == 0
    assert w_ih.shape == (S, Din, 8 * H) and w_hh.shape == (H, 8 * H)

    kernel = functools.partial(_bilstm_layer_kernel,
                               seq_len=T, batch=B, hidden=H)

    # Resident VMEM: inputs + output + the two gate scratches (+ margin).
    resident = (x.size * x.dtype.itemsize
                + w_ih.size * w_ih.dtype.itemsize
                + b.size * b.dtype.itemsize
                + w_hh.size * w_hh.dtype.itemsize
                + 2 * TB * H * 2                       # out, bf16
                + TB * 8 * H * 4                       # gin scratch, f32
                + 2 * TB * 4 * H * 4)                  # gpack scratch, f32
    vmem_limit = int(min(100 * 2**20, max(32 * 2**20, 2 * resident + (2 << 20))))

    flops = 2 * S * TB * Din * 8 * H + 2 * T * (2 * B) * H * 8 * H
    transcendentals = T * (2 * B) * 5 * H
    bytes_accessed = (x.size * 2 + w_ih.size * 2 + b.size * 4 + w_hh.size * 2
                      + 2 * TB * H * 2)

    return pl.pallas_call(
        kernel,
        out_shape=jax.ShapeDtypeStruct((2, TB, H), jnp.bfloat16),
        in_specs=[pl.BlockSpec(memory_space=pltpu.MemorySpace.VMEM)
                  for _ in range(4)],
        out_specs=pl.BlockSpec(memory_space=pltpu.MemorySpace.VMEM),
        scratch_shapes=[pltpu.VMEM((TB, 8 * H), jnp.float32),       # gin
                        pltpu.VMEM((2 * TB, 4 * H), jnp.float32)],  # gpack
        compiler_params=pltpu.CompilerParams(vmem_limit_bytes=vmem_limit),
        cost_estimate=pl.CostEstimate(flops=flops,
                                      transcendentals=transcendentals,
                                      bytes_accessed=bytes_accessed),
    )(x, w_ih, b, w_hh)


# ----------------------------------------------------------------------------
# Parameters (deterministic, synthetic) and forward pass
# ----------------------------------------------------------------------------
def init_params(key, vocab_size, embed_size, hidden_size, output_size,
                num_layers=3):
    H = hidden_size
    E_pad = ((embed_size + 127) // 128) * 128            # 100 -> 128 (lane-dense)

    params = {}
    key, k_emb = jax.random.split(key)
    emb = jax.random.normal(k_emb, (vocab_size, embed_size), jnp.float32)
    # Zero-pad the embedding feature dim; matching w_ih rows are zero, so the
    # forward pass is numerically unchanged.
    params["embedding"] = jnp.pad(emb, ((0, 0), (0, E_pad - embed_size)))

    k = float(H) ** -0.5                                  # PyTorch LSTM bound
    layers = []
    in_size = embed_size
    for layer in range(num_layers):
        wih, whh, bias = [], [], []
        for _direction in range(2):                       # 0 = fwd, 1 = bwd
            key, k1, k2, k3, k4 = jax.random.split(key, 5)
            # Gate-column order [i, f, o, g] (PyTorch stores [i, f, g, o];
            # loading real checkpoints would need a per-direction permutation).
            wih.append(jax.random.uniform(k1, (in_size, 4 * H), jnp.float32, -k, k))
            whh.append(jax.random.uniform(k2, (H, 4 * H), jnp.float32, -k, k))
            b_ih = jax.random.uniform(k3, (4 * H,), jnp.float32, -k, k)
            b_hh = jax.random.uniform(k4, (4 * H,), jnp.float32, -k, k)
            bias.append(b_ih + b_hh)
        w_ih = jnp.concatenate(wih, axis=1)               # (in_size, 8H)
        if layer == 0:
            # (1, E_pad, 8H): zero rows for the padded embedding columns.
            w_ih = jnp.pad(w_ih, ((0, E_pad - in_size), (0, 0)))[None]
        else:
            # (2, H, 8H): slab 0 multiplies the previous layer's fwd features,
            # slab 1 the bwd features (two-operand projection, no concat).
            w_ih = jnp.stack([w_ih[:H], w_ih[H:]], axis=0)
        layers.append({
            "w_ih": w_ih.astype(jnp.bfloat16),
            "w_hh": jnp.concatenate(whh, axis=1).astype(jnp.bfloat16),  # (H, 8H)
            "b": jnp.concatenate(bias)[None, :],          # (1, 8H) f32
        })
        in_size = 2 * H
    params["lstm"] = layers

    kf = float(2 * H) ** -0.5                             # nn.Linear bound
    key, kfw, kfb = jax.random.split(key, 3)
    params["fc_w"] = jax.random.uniform(kfw, (2 * H, output_size),
                                        jnp.float32, -kf, kf)
    params["fc_b"] = jax.random.uniform(kfb, (output_size,),
                                        jnp.float32, -kf, kf)
    return params


def forward(params, token_ids):
    """token_ids: (B, T) int32  ->  logits (B, output_size) f32."""
    B, T = token_ids.shape
    H = params["lstm"][0]["w_hh"].shape[0]

    # Embedding lookup (data-dependent gather) stays in plain JAX glue.
    emb = jnp.take(params["embedding"], token_ids, axis=0)       # (B, T, E_pad)
    x = jnp.transpose(emb, (1, 0, 2))                            # (T, B, E_pad)

    # Pad batch to a sublane multiple (8) so all kernel rows are unmasked.
    B_pad = ((B + 7) // 8) * 8
    if B_pad != B:
        x = jnp.pad(x, ((0, 0), (0, B_pad - B), (0, 0)))

    # Single source slab for layer 1: (1, T*B_pad, E_pad), bf16 MXU operand.
    x = x.reshape(1, T * B_pad, x.shape[-1]).astype(jnp.bfloat16)

    for lyr in params["lstm"]:
        # TODO(synk): inter-layer dropout (p=0.5, training mode) omitted — eval semantics.
        x = bilstm_layer(x, lyr["w_ih"], lyr["b"], lyr["w_hh"],
                         seq_len=T, batch=B_pad, hidden=H)
        # x is now (2, T*B_pad, H): [0] = fwd hidden seq, [1] = bwd hidden seq.

    # h_out[:, -1, :] = [h_fwd(T-1), h_bwd(T-1)], original batch rows only.
    r = (T - 1) * B_pad
    h_last = jnp.concatenate([x[0, r:r + B], x[1, r:r + B]], axis=-1)  # (B, 2H)

    # Tiny output head (2H -> 2): plain XLA; a Pallas call with a 2-lane-wide
    # output is pure launch / masked-store overhead.
    return jnp.dot(h_last.astype(jnp.float32), params["fc_w"]) + params["fc_b"]


# ----------------------------------------------------------------------------
if __name__ == "__main__":
    vocab_size = 16
    embed_size = 100
    hidden_size = 32
    output_size = 2
    batch, seq = 2, 8

    key = jax.random.PRNGKey(0)
    k_params, k_tokens = jax.random.split(key)

    params = init_params(k_params, vocab_size, embed_size, hidden_size,
                         output_size, num_layers=3)
    token_ids = jax.random.randint(k_tokens, (batch, seq), 0, vocab_size,
                                   dtype=jnp.int32)

    out = jax.jit(forward)(params, token_ids)
    out = jax.block_until_ready(out)
    assert out.shape == (batch, output_size), out.shape
    assert out.dtype == jnp.float32
    print("KERNEL_OK")
</pallas_src>

<mosaic_0001>
module attributes {stable_mosaic.version = 11 : i64} {
  func.func @_bilstm_layer_kernel(%arg0: memref<1x64x128xbf16, #tpu.memory_space<vmem>>, %arg1: memref<1x128x256xbf16, #tpu.memory_space<vmem>>, %arg2: memref<1x256xf32, #tpu.memory_space<vmem>>, %arg3: memref<32x256xbf16, #tpu.memory_space<vmem>>, %arg4: memref<2x64x32xbf16, #tpu.memory_space<vmem>>, %arg5: memref<64x256xf32, #tpu.memory_space<vmem>>, %arg6: memref<128x128xf32, #tpu.memory_space<vmem>>) attributes {dimension_semantics = [], scalar_prefetch = 0 : i64, scratch_operands = 2 : i64, tpu.core_type = #tpu.core_type<tc>} {
    %c0 = arith.constant 0 : index
    %c0_0 = arith.constant 0 : index
    %c0_1 = arith.constant 0 : index
    %0 = vector.load %arg0[%c0, %c0_0, %c0_1] : memref<1x64x128xbf16, #tpu.memory_space<vmem>>, vector<1x64x128xbf16>
    %1 = vector.shape_cast %0 : vector<1x64x128xbf16> to vector<64x128xbf16>
    %c0_2 = arith.constant 0 : index
    %c0_3 = arith.constant 0 : index
    %c0_4 = arith.constant 0 : index
    %2 = vector.load %arg1[%c0_2, %c0_3, %c0_4] : memref<1x128x256xbf16, #tpu.memory_space<vmem>>, vector<1x128x256xbf16>
    %3 = vector.shape_cast %2 : vector<1x128x256xbf16> to vector<128x256xbf16>
    %cst = arith.constant dense<0.000000e+00> : vector<64x256xf32>
    %4 = tpu.matmul %1, %3, %cst {dimension_numbers = #tpu.dot_dimension_numbers<[1], [0], [0], [1], [0, 0, 1, 1], [], []>} : vector<64x128xbf16>, vector<128x256xbf16>, vector<64x256xf32> -> vector<64x256xf32>
    %c0_5 = arith.constant 0 : index
    %c0_6 = arith.constant 0 : index
    %5 = vector.load %arg2[%c0_5, %c0_6] : memref<1x256xf32, #tpu.memory_space<vmem>>, vector<1x256xf32>
    %6 = vector.broadcast %5 : vector<1x256xf32> to vector<64x256xf32>
    %7 = arith.addf %4, %6 : vector<64x256xf32>
    %c0_7 = arith.constant 0 : index
    %c0_8 = arith.constant 0 : index
    %8 = vector.load %arg5[%c0_7, %c0_8] : memref<64x256xf32, #tpu.memory_space<vmem>>, vector<64x256xf32>
    tpu.vector_store %arg5[%c0_7, %c0_8], %7 {strides = array<i32>} : memref<64x256xf32, #tpu.memory_space<vmem>>, vector<64x256xf32>,
    %c0_i32 = arith.constant 0 : i32
    %c8_i32 = arith.constant 8 : i32
    %9 = arith.muli %c0_i32, %c8_i32 : i32
    %10 = tpu.assume_multiple %9, 8 : i32
    %c7_i32 = arith.constant 7 : i32
    %11 = arith.subi %c7_i32, %c0_i32 : i32
    %c8_i32_9 = arith.constant 8 : i32
    %12 = arith.muli %11, %c8_i32_9 : i32
    %13 = tpu.assume_multiple %12, 8 : i32
    %c16_i32 = arith.constant 16 : i32
    %14 = arith.muli %c0_i32, %c16_i32 : i32
    %15 = tpu.assume_multiple %14, 8 : i32
    %16 = arith.index_cast %10 : i32 to index
    %c0_10 = arith.constant 0 : index
    %17 = vector.load %arg5[%16, %c0_10] : memref<64x256xf32, #tpu.memory_space<vmem>>, vector<8x128xf32>
    %18 = arith.index_cast %15 : i32 to index
    %c0_11 = arith.constant 0 : index
    %19 = vector.load %arg6[%18, %c0_11] : memref<128x128xf32, #tpu.memory_space<vmem>>, vector<8x128xf32>
    tpu.vector_store %arg6[%18, %c0_11], %17 {strides = array<i32>} : memref<128x128xf32, #tpu.memory_space<vmem>>, vector<8x128xf32>,
    %20 = arith.index_cast %13 : i32 to index
    %c128 = arith.constant 128 : index
    %21 = vector.load %arg5[%20, %c128] : memref<64x256xf32, #tpu.memory_space<vmem>>, vector<8x128xf32>
    %c8_i32_12 = arith.constant 8 : i32
    %22 = arith.addi %15, %c8_i32_12 : i32
    %23 = arith.index_cast %22 : i32 to index
    %c0_13 = arith.constant 0 : index
    %24 = vector.load %arg6[%23, %c0_13] : memref<128x128xf32, #tpu.memory_space<vmem>>, vector<8x128xf32>
    tpu.vector_store %arg6[%23, %c0_13], %21 {strides = array<i32>} : memref<128x128xf32, #tpu.memory_space<vmem>>, vector<8x128xf32>,
    %c1_i32 = arith.constant 1 : i32
    %c8_i32_14 = arith.constant 8 : i32
    %25 = arith.muli %c1_i32, %c8_i32_14 : i32
    %26 = tpu.assume_multiple %25, 8 : i32
    %c7_i32_15 = arith.constant 7 : i32
    %27 = arith.subi %c7_i32_15, %c1_i32 : i32
    %c8_i32_16 = arith.constant 8 : i32
    %28 = arith.muli %27, %c8_i32_16 : i32
    %29 = tpu.assume_multiple %28, 8 : i32
    %c16_i32_17 = arith.constant 16 : i32
    %30 = arith.muli %c1_i32, %c16_i32_17 : i32
    %31 = tpu.assume_multiple %30, 8 : i32
    %32 = arith.index_cast %26 : i32 to index
    %c0_18 = arith.constant 0 : index
    %33 = vector.load %arg5[%32, %c0_18] : memref<64x256xf32, #tpu.memory_space<vmem>>, vector<8x128xf32>
    %34 = arith.index_cast %31 : i32 to index
    %c0_19 = arith.constant 0 : index
    %35 = vector.load %arg6[%34, %c0_19] : memref<128x128xf32, #tpu.memory_space<vmem>>, vector<8x128xf32>
    tpu.vector_store %arg6[%34, %c0_19], %33 {strides = array<i32>} : memref<128x128xf32, #tpu.memory_space<vmem>>, vector<8x128xf32>,
    %36 = arith.index_cast %29 : i32 to index
    %c128_20 = arith.constant 128 : index
    %37 = vector.load %arg5[%36, %c128_20] : memref<64x256xf32, #tpu.memory_space<vmem>>, vector<8x128xf32>
    %c8_i32_21 = arith.constant 8 : i32
    %38 = arith.addi %31, %c8_i32_21 : i32
    %39 = arith.index_cast %38 : i32 to index
    %c0_22 = arith.constant 0 : index
    %40 = vector.load %arg6[%39, %c0_22] : memref<128x128xf32, #tpu.memory_space<vmem>>, vector<8x128xf32>
    tpu.vector_store %arg6[%39, %c0_22], %37 {strides = array<i32>} : memref<128x128xf32, #tpu.memory_space<vmem>>, vector<8x128xf32>,
    %c2_i32 = arith.constant 2 : i32
    %c8_i32_23 = arith.constant 8 : i32
    %41 = arith.muli %c2_i32, %c8_i32_23 : i32
    %42 = tpu.assume_multiple %41, 8 : i32
    %c7_i32_24 = arith.constant 7 : i32
    %43 = arith.subi %c7_i32_24, %c2_i32 : i32
    %c8_i32_25 = arith.constant 8 : i32
    %44 = arith.muli %43, %c8_i32_25 : i32
    %45 = tpu.assume_multiple %44, 8 : i32
    %c16_i32_26 = arith.constant 16 : i32
    %46 = arith.muli %c2_i32, %c16_i32_26 : i32
    %47 = tpu.assume_multiple %46, 8 : i32
    %48 = arith.index_cast %42 : i32 to index
    %c0_27 = arith.constant 0 : index
    %49 = vector.load %arg5[%48, %c0_27] : memref<64x256xf32, #tpu.memory_space<vmem>>, vector<8x128xf32>
    %50 = arith.index_cast %47 : i32 to index
    %c0_28 = arith.constant 0 : index
    %51 = vector.load %arg6[%50, %c0_28] : memref<128x128xf32, #tpu.memory_space<vmem>>, vector<8x128xf32>
    tpu.vector_store %arg6[%50, %c0_28], %49 {strides = array<i32>} : memref<128x128xf32, #tpu.memory_space<vmem>>, vector<8x128xf32>,
    %52 = arith.index_cast %45 : i32 to index
    %c128_29 = arith.constant 128 : index
    %53 = vector.load %arg5[%52, %c128_29] : memref<64x256xf32, #tpu.memory_space<vmem>>, vector<8x128xf32>
    %c8_i32_30 = arith.constant 8 : i32
    %54 = arith.addi %47, %c8_i32_30 : i32
    %55 = arith.index_cast %54 : i32 to index
    %c0_31 = arith.constant 0 : index
    %56 = vector.load %arg6[%55, %c0_31] : memref<128x128xf32, #tpu.memory_space<vmem>>, vector<8x128xf32>
    tpu.vector_store %arg6[%55, %c0_31], %53 {strides = array<i32>} : memref<128x128xf32, #tpu.memory_space<vmem>>, vector<8x128xf32>,
    %c3_i32 = arith.constant 3 : i32
    %c8_i32_32 = arith.constant 8 : i32
    %57 = arith.muli %c3_i32, %c8_i32_32 : i32
    %58 = tpu.assume_multiple %57, 8 : i32
    %c7_i32_33 = arith.constant 7 : i32
    %59 = arith.subi %c7_i32_33, %c3_i32 : i32
    %c8_i32_34 = arith.constant 8 : i32
    %60 = arith.muli %59, %c8_i32_34 : i32
    %61 = tpu.assume_multiple %60, 8 : i32
    %c16_i32_35 = arith.constant 16 : i32
    %62 = arith.muli %c3_i32, %c16_i32_35 : i32
    %63 = tpu.assume_multiple %62, 8 : i32
    %64 = arith.index_cast %58 : i32 to index
    %c0_36 = arith.constant 0 : index
    %65 = vector.load %arg5[%64, %c0_36] : memref<64x256xf32, #tpu.memory_space<vmem>>, vector<8x128xf32>
    %66 = arith.index_cast %63 : i32 to index
    %c0_37 = arith.constant 0 : index
    %67 = vector.load %arg6[%66, %c0_37] : memref<128x128xf32, #tpu.memory_space<vmem>>, vector<8x128xf32>
    tpu.vector_store %arg6[%66, %c0_37], %65 {strides = array<i32>} : memref<128x128xf32, #tpu.memory_space<vmem>>, vector<8x128xf32>,
    %68 = arith.index_cast %61 : i32 to index
    %c128_38 = arith.constant 128 : index
    %69 = vector.load %arg5[%68, %c128_38] : memref<64x256xf32, #tpu.memory_space<vmem>>, vector<8x128xf32>
    %c8_i32_39 = arith.constant 8 : i32
    %70 = arith.addi %63, %c8_i32_39 : i32
    %71 = arith.index_cast %70 : i32 to index
    %c0_40 = arith.constant 0 : index
    %72 = vector.load %arg6[%71, %c0_40] : memref<128x128xf32, #tpu.memory_space<vmem>>, vector<8x128xf32>
    tpu.vector_store %arg6[%71, %c0_40], %69 {strides = array<i32>} : memref<128x128xf32, #tpu.memory_space<vmem>>, vector<8x128xf32>,
    %c4_i32 = arith.constant 4 : i32
    %c8_i32_41 = arith.constant 8 : i32
    %73 = arith.muli %c4_i32, %c8_i32_41 : i32
    %74 = tpu.assume_multiple %73, 8 : i32
    %c7_i32_42 = arith.constant 7 : i32
    %75 = arith.subi %c7_i32_42, %c4_i32 : i32
    %c8_i32_43 = arith.constant 8 : i32
    %76 = arith.muli %75, %c8_i32_43 : i32
    %77 = tpu.assume_multiple %76, 8 : i32
    %c16_i32_44 = arith.constant 16 : i32
    %78 = arith.muli %c4_i32, %c16_i32_44 : i32
    %79 = tpu.assume_multiple %78, 8 : i32
    %80 = arith.index_cast %74 : i32 to index
    %c0_45 = arith.constant 0 : index
    %81 = vector.load %arg5[%80, %c0_45] : memref<64x256xf32, #tpu.memory_space<vmem>>, vector<8x128xf32>
    %82 = arith.index_cast %79 : i32 to index
    %c0_46 = arith.constant 0 : index
    %83 = vector.load %arg6[%82, %c0_46] : memref<128x128xf32, #tpu.memory_space<vmem>>, vector<8x128xf32>
    tpu.vector_store %arg6[%82, %c0_46], %81 {strides = array<i32>} : memref<128x128xf32, #tpu.memory_space<vmem>>, vector<8x128xf32>,
    %84 = arith.index_cast %77 : i32 to index
    %c128_47 = arith.constant 128 : index
    %85 = vector.load %arg5[%84, %c128_47] : memref<64x256xf32, #tpu.memory_space<vmem>>, vector<8x128xf32>
    %c8_i32_48 = arith.constant 8 : i32
    %86 = arith.addi %79, %c8_i32_48 : i32
    %87 = arith.index_cast %86 : i32 to index
    %c0_49 = arith.constant 0 : index
    %88 = vector.load %arg6[%87, %c0_49] : memref<128x128xf32, #tpu.memory_space<vmem>>, vector<8x128xf32>
    tpu.vector_store %arg6[%87, %c0_49], %85 {strides = array<i32>} : memref<128x128xf32, #tpu.memory_space<vmem>>, vector<8x128xf32>,
    %c5_i32 = arith.constant 5 : i32
    %c8_i32_50 = arith.constant 8 : i32
    %89 = arith.muli %c5_i32, %c8_i32_50 : i32
    %90 = tpu.assume_multiple %89, 8 : i32
    %c7_i32_51 = arith.constant 7 : i32
    %91 = arith.subi %c7_i32_51, %c5_i32 : i32
    %c8_i32_52 = arith.constant 8 : i32
    %92 = arith.muli %91, %c8_i32_52 : i32
    %93 = tpu.assume_multiple %92, 8 : i32
    %c16_i32_53 = arith.constant 16 : i32
    %94 = arith.muli %c5_i32, %c16_i32_53 : i32
    %95 = tpu.assume_multiple %94, 8 : i32
    %96 = arith.index_cast %90 : i32 to index
    %c0_54 = arith.constant 0 : index
    %97 = vector.load %arg5[%96, %c0_54] : memref<64x256xf32, #tpu.memory_space<vmem>>, vector<8x128xf32>
    %98 = arith.index_cast %95 : i32 to index
    %c0_55 = arith.constant 0 : index
    %99 = vector.load %arg6[%98, %c0_55] : memref<128x128xf32, #tpu.memory_space<vmem>>, vector<8x128xf32>
    tpu.vector_store %arg6[%98, %c0_55], %97 {strides = array<i32>} : memref<128x128xf32, #tpu.memory_space<vmem>>, vector<8x128xf32>,
    %100 = arith.index_cast %93 : i32 to index
    %c128_56 = arith.constant 128 : index
    %101 = vector.load %arg5[%100, %c128_56] : memref<64x256xf32, #tpu.memory_space<vmem>>, vector<8x128xf32>
    %c8_i32_57 = arith.constant 8 : i32
    %102 = arith.addi %95, %c8_i32_57 : i32
    %103 = arith.index_cast %102 : i32 to index
    %c0_58 = arith.constant 0 : index
    %104 = vector.load %arg6[%103, %c0_58] : memref<128x128xf32, #tpu.memory_space<vmem>>, vector<8x128xf32>
    tpu.vector_store %arg6[%103, %c0_58], %101 {strides = array<i32>} : memref<128x128xf32, #tpu.memory_space<vmem>>, vector<8x128xf32>,
    %c6_i32 = arith.constant 6 : i32
    %c8_i32_59 = arith.constant 8 : i32
    %105 = arith.muli %c6_i32, %c8_i32_59 : i32
    %106 = tpu.assume_multiple %105, 8 : i32
    %c7_i32_60 = arith.constant 7 : i32
    %107 = arith.subi %c7_i32_60, %c6_i32 : i32
    %c8_i32_61 = arith.constant 8 : i32
    %108 = arith.muli %107, %c8_i32_61 : i32
    %109 = tpu.assume_multiple %108, 8 : i32
    %c16_i32_62 = arith.constant 16 : i32
    %110 = arith.muli %c6_i32, %c16_i32_62 : i32
    %111 = tpu.assume_multiple %110, 8 : i32
    %112 = arith.index_cast %106 : i32 to index
    %c0_63 = arith.constant 0 : index
    %113 = vector.load %arg5[%112, %c0_63] : memref<64x256xf32, #tpu.memory_space<vmem>>, vector<8x128xf32>
    %114 = arith.index_cast %111 : i32 to index
    %c0_64 = arith.constant 0 : index
    %115 = vector.load %arg6[%114, %c0_64] : memref<128x128xf32, #tpu.memory_space<vmem>>, vector<8x128xf32>
    tpu.vector_store %arg6[%114, %c0_64], %113 {strides = array<i32>} : memref<128x128xf32, #tpu.memory_space<vmem>>, vector<8x128xf32>,
    %116 = arith.index_cast %109 : i32 to index
    %c128_65 = arith.constant 128 : index
    %117 = vector.load %arg5[%116, %c128_65] : memref<64x256xf32, #tpu.memory_space<vmem>>, vector<8x128xf32>
    %c8_i32_66 = arith.constant 8 : i32
    %118 = arith.addi %111, %c8_i32_66 : i32
    %119 = arith.index_cast %118 : i32 to index
    %c0_67 = arith.constant 0 : index
    %120 = vector.load %arg6[%119, %c0_67] : memref<128x128xf32, #tpu.memory_space<vmem>>, vector<8x128xf32>
    tpu.vector_store %arg6[%119, %c0_67], %117 {strides = array<i32>} : memref<128x128xf32, #tpu.memory_space<vmem>>, vector<8x128xf32>,
    %c7_i32_68 = arith.constant 7 : i32
    %c8_i32_69 = arith.constant 8 : i32
    %121 = arith.muli %c7_i32_68, %c8_i32_69 : i32
    %122 = tpu.assume_multiple %121, 8 : i32
    %c7_i32_70 = arith.constant 7 : i32
    %123 = arith.subi %c7_i32_70, %c7_i32_68 : i32
    %c8_i32_71 = arith.constant 8 : i32
    %124 = arith.muli %123, %c8_i32_71 : i32
    %125 = tpu.assume_multiple %124, 8 : i32
    %c16_i32_72 = arith.constant 16 : i32
    %126 = arith.muli %c7_i32_68, %c16_i32_72 : i32
    %127 = tpu.assume_multiple %126, 8 : i32
    %128 = arith.index_cast %122 : i32 to index
    %c0_73 = arith.constant 0 : index
    %129 = vector.load %arg5[%128, %c0_73] : memref<64x256xf32, #tpu.memory_space<vmem>>, vector<8x128xf32>
    %130 = arith.index_cast %127 : i32 to index
    %c0_74 = arith.constant 0 : index
    %131 = vector.load %arg6[%130, %c0_74] : memref<128x128xf32, #tpu.memory_space<vmem>>, vector<8x128xf32>
    tpu.vector_store %arg6[%130, %c0_74], %129 {strides = array<i32>} : memref<128x128xf32, #tpu.memory_space<vmem>>, vector<8x128xf32>,
    %132 = arith.index_cast %125 : i32 to index
    %c128_75 = arith.constant 128 : index
    %133 = vector.load %arg5[%132, %c128_75] : memref<64x256xf32, #tpu.memory_space<vmem>>, vector<8x128xf32>
    %c8_i32_76 = arith.constant 8 : i32
    %134 = arith.addi %127, %c8_i32_76 : i32
    %135 = arith.index_cast %134 : i32 to index
    %c0_77 = arith.constant 0 : index
    %136 = vector.load %arg6[%135, %c0_77] : memref<128x128xf32, #tpu.memory_space<vmem>>, vector<8x128xf32>
    tpu.vector_store %arg6[%135, %c0_77], %133 {strides = array<i32>} : memref<128x128xf32, #tpu.memory_space<vmem>>, vector<8x128xf32>,
    %c8_i32_78 = arith.constant 8 : i32
    %c0_79 = arith.constant 0 : index
    %c0_80 = arith.constant 0 : index
    %137 = vector.load %arg3[%c0_79, %c0_80] : memref<32x256xbf16, #tpu.memory_space<vmem>>, vector<32x256xbf16>
    %138 = tpu.iota {dimensions = array<i32: 0>} : vector<16x128xi32>
    %c8_i32_81 = arith.constant 8 : i32
    %139 = vector.broadcast %c8_i32_81 : i32 to vector<16x128xi32>
    %140 = arith.cmpi slt, %138, %139 : vector<16x128xi32>
    %cst_82 = arith.constant 0.000000e+00 : f32
    %141 = vector.broadcast %cst_82 : f32 to vector<16x32xf32>
    %c0_i32_83 = arith.constant 0 : i32
    %142 = arith.truncf %141 : vector<16x32xf32> to vector<16x32xbf16>
    %cst_84 = arith.constant dense<0.000000e+00> : vector<16x256xf32>
    %143 = tpu.matmul %142, %137, %cst_84 {dimension_numbers = #tpu.dot_dimension_numbers<[1], [0], [0], [1], [0, 0, 1, 1], [], []>} : vector<16x32xbf16>, vector<32x256xbf16>, vector<16x256xf32> -> vector<16x256xf32>
    %144 = vector.extract_strided_slice %143 {offsets = [0, 0], sizes = [16, 128], strides = [1, 1]} : vector<16x256xf32> to vector<16x128xf32>
    %145 = vector.extract_strided_slice %143 {offsets = [0, 128], sizes = [16, 128], strides = [1, 1]} : vector<16x256xf32> to vector<16x128xf32>
    %146 = arith.select %140, %144, %145 : vector<16x128xi1>, vector<16x128xf32>
    %c16_i32_85 = arith.constant 16 : i32
    %147 = arith.muli %c0_i32_83, %c16_i32_85 : i32
    %148 = tpu.assume_multiple %147, 8 : i32
    %149 = arith.index_cast %148 : i32 to index
    %c0_86 = arith.constant 0 : index
    %150 = vector.load %arg6[%149, %c0_86] : memref<128x128xf32, #tpu.memory_space<vmem>>, vector<16x128xf32>
    %151 = arith.addf %150, %146 : vector<16x128xf32>
    %152 = vector.extract_strided_slice %151 {offsets = [0, 0], sizes = [16, 96], strides = [1, 1]} : vector<16x128xf32> to vector<16x96xf32>
    %153 = arith.negf %152 : vector<16x96xf32>
    %154 = math.exp %153 : vector<16x96xf32>
    %cst_87 = arith.constant 1.000000e+00 : f32
    %155 = vector.broadcast %cst_87 : f32 to vector<16x96xf32>
    %156 = arith.addf %155, %154 : vector<16x96xf32>
    %157 = arith.divf %155, %156 : vector<16x96xf32>
    %158 = vector.extract_strided_slice %157 {offsets = [0, 0], sizes = [16, 32], strides = [1, 1]} : vector<16x96xf32> to vector<16x32xf32>
    %159 = vector.extract_strided_slice %157 {offsets = [0, 32], sizes = [16, 32], strides = [1, 1]} : vector<16x96xf32> to vector<16x32xf32>
    %160 = vector.extract_strided_slice %157 {offsets = [0, 64], sizes = [16, 32], strides = [1, 1]} : vector<16x96xf32> to vector<16x32xf32>
    %161 = vector.extract_strided_slice %151 {offsets = [0, 96], sizes = [16, 32], strides = [1, 1]} : vector<16x128xf32> to vector<16x32xf32>
    %162 = math.tanh %161 : vector<16x32xf32>
    %163 = arith.mulf %159, %141 : vector<16x32xf32>
    %164 = arith.mulf %158, %162 : vector<16x32xf32>
    %165 = arith.addf %163, %164 : vector<16x32xf32>
    %166 = math.tanh %165 : vector<16x32xf32>
    %167 = arith.mulf %160, %166 : vector<16x32xf32>
    %c8_i32_88 = arith.constant 8 : i32
    %168 = arith.muli %c0_i32_83, %c8_i32_88 : i32
    %169 = tpu.assume_multiple %168, 8 : i32
    %c7_i32_89 = arith.constant 7 : i32
    %170 = arith.subi %c7_i32_89, %c0_i32_83 : i32
    %c8_i32_90 = arith.constant 8 : i32
    %171 = arith.muli %170, %c8_i32_90 : i32
    %172 = tpu.assume_multiple %171, 8 : i32
    %173 = vector.extract_strided_slice %167 {offsets = [0, 0], sizes = [8, 32], strides = [1, 1]} : vector<16x32xf32> to vector<8x32xf32>
    %174 = arith.truncf %173 : vector<8x32xf32> to vector<8x32xbf16>
    %c0_91 = arith.constant 0 : index
    %175 = arith.index_cast %169 : i32 to index
    %c0_92 = arith.constant 0 : index
    %176 = vector.load %arg4[%c0_91, %175, %c0_92] : memref<2x64x32xbf16, #tpu.memory_space<vmem>>, vector<1x8x32xbf16>
    %177 = vector.shape_cast %176 : vector<1x8x32xbf16> to vector<8x32xbf16>
    %178 = vector.shape_cast %174 : vector<8x32xbf16> to vector<1x8x32xbf16>
    tpu.vector_store %arg4[%c0_91, %175, %c0_92], %178 {strides = array<i32>} : memref<2x64x32xbf16, #tpu.memory_space<vmem>>, vector<1x8x32xbf16>,
    %179 = vector.extract_strided_slice %167 {offsets = [8, 0], sizes = [8, 32], strides = [1, 1]} : vector<16x32xf32> to vector<8x32xf32>
    %180 = arith.truncf %179 : vector<8x32xf32> to vector<8x32xbf16>
    %c1 = arith.constant 1 : index
    %181 = arith.index_cast %172 : i32 to index
    %c0_93 = arith.constant 0 : index
    %182 = vector.load %arg4[%c1, %181, %c0_93] : memref<2x64x32xbf16, #tpu.memory_space<vmem>>, vector<1x8x32xbf16>
    %183 = vector.shape_cast %182 : vector<1x8x32xbf16> to vector<8x32xbf16>
    %184 = vector.shape_cast %180 : vector<8x32xbf16> to vector<1x8x32xbf16>
    tpu.vector_store %arg4[%c1, %181, %c0_93], %184 {strides = array<i32>} : memref<2x64x32xbf16, #tpu.memory_space<vmem>>, vector<1x8x32xbf16>,
    %c1_i32_94 = arith.constant 1 : i32
    %185 = arith.truncf %167 : vector<16x32xf32> to vector<16x32xbf16>
    %cst_95 = arith.constant dense<0.000000e+00> : vector<16x256xf32>
    %186 = tpu.matmul %185, %137, %cst_95 {dimension_numbers = #tpu.dot_dimension_numbers<[1], [0], [0], [1], [0, 0, 1, 1], [], []>} : vector<16x32xbf16>, vector<32x256xbf16>, vector<16x256xf32> -> vector<16x256xf32>
    %187 = vector.extract_strided_slice %186 {offsets = [0, 0], sizes = [16, 128], strides = [1, 1]} : vector<16x256xf32> to vector<16x128xf32>
    %188 = vector.extract_strided_slice %186 {offsets = [0, 128], sizes = [16, 128], strides = [1, 1]} : vector<16x256xf32> to vector<16x128xf32>
    %189 = arith.select %140, %187, %188 : vector<16x128xi1>, vector<16x128xf32>
    %c16_i32_96 = arith.constant 16 : i32
    %190 = arith.muli %c1_i32_94, %c16_i32_96 : i32
    %191 = tpu.assume_multiple %190, 8 : i32
    %192 = arith.index_cast %191 : i32 to index
    %c0_97 = arith.constant 0 : index
    %193 = vector.load %arg6[%192, %c0_97] : memref<128x128xf32, #tpu.memory_space<vmem>>, vector<16x128xf32>
    %194 = arith.addf %193, %189 : vector<16x128xf32>
    %195 = vector.extract_strided_slice %194 {offsets = [0, 0], sizes = [16, 96], strides = [1, 1]} : vector<16x128xf32> to vector<16x96xf32>
    %196 = arith.negf %195 : vector<16x96xf32>
    %197 = math.exp %196 : vector<16x96xf32>
    %cst_98 = arith.constant 1.000000e+00 : f32
    %198 = vector.broadcast %cst_98 : f32 to vector<16x96xf32>
    %199 = arith.addf %198, %197 : vector<16x96xf32>
    %200 = arith.divf %198, %199 : vector<16x96xf32>
    %201 = vector.extract_strided_slice %200 {offsets = [0, 0], sizes = [16, 32], strides = [1, 1]} : vector<16x96xf32> to vector<16x32xf32>
    %202 = vector.extract_strided_slice %200 {offsets = [0, 32], sizes = [16, 32], strides = [1, 1]} : vector<16x96xf32> to vector<16x32xf32>
    %203 = vector.extract_strided_slice %200 {offsets = [0, 64], sizes = [16, 32], strides = [1, 1]} : vector<16x96xf32> to vector<16x32xf32>
    %204 = vector.extract_strided_slice %194 {offsets = [0, 96], sizes = [16, 32], strides = [1, 1]} : vector<16x128xf32> to vector<16x32xf32>
    %205 = math.tanh %204 : vector<16x32xf32>
    %206 = arith.mulf %202, %165 : vector<16x32xf32>
    %207 = arith.mulf %201, %205 : vector<16x32xf32>
    %208 = arith.addf %206, %207 : vector<16x32xf32>
    %209 = math.tanh %208 : vector<16x32xf32>
    %210 = arith.mulf %203, %209 : vector<16x32xf32>
    %c8_i32_99 = arith.constant 8 : i32
    %211 = arith.muli %c1_i32_94, %c8_i32_99 : i32
    %212 = tpu.assume_multiple %211, 8 : i32
    %c7_i32_100 = arith.constant 7 : i32
    %213 = arith.subi %c7_i32_100, %c1_i32_94 : i32
    %c8_i32_101 = arith.constant 8 : i32
    %214 = arith.muli %213, %c8_i32_101 : i32
    %215 = tpu.assume_multiple %214, 8 : i32
    %216 = vector.extract_strided_slice %210 {offsets = [0, 0], sizes = [8, 32], strides = [1, 1]} : vector<16x32xf32> to vector<8x32xf32>
    %217 = arith.truncf %216 : vector<8x32xf32> to vector<8x32xbf16>
    %c0_102 = arith.constant 0 : index
    %218 = arith.index_cast %212 : i32 to index
    %c0_103 = arith.constant 0 : index
    %219 = vector.load %arg4[%c0_102, %218, %c0_103] : memref<2x64x32xbf16, #tpu.memory_space<vmem>>, vector<1x8x32xbf16>
    %220 = vector.shape_cast %219 : vector<1x8x32xbf16> to vector<8x32xbf16>
    %221 = vector.shape_cast %217 : vector<8x32xbf16> to vector<1x8x32xbf16>
    tpu.vector_store %arg4[%c0_102, %218, %c0_103], %221 {strides = array<i32>} : memref<2x64x32xbf16, #tpu.memory_space<vmem>>, vector<1x8x32xbf16>,
    %222 = vector.extract_strided_slice %210 {offsets = [8, 0], sizes = [8, 32], strides = [1, 1]} : vector<16x32xf32> to vector<8x32xf32>
    %223 = arith.truncf %222 : vector<8x32xf32> to vector<8x32xbf16>
    %c1_104 = arith.constant 1 : index
    %224 = arith.index_cast %215 : i32 to index
    %c0_105 = arith.constant 0 : index
    %225 = vector.load %arg4[%c1_104, %224, %c0_105] : memref<2x64x32xbf16, #tpu.memory_space<vmem>>, vector<1x8x32xbf16>
    %226 = vector.shape_cast %225 : vector<1x8x32xbf16> to vector<8x32xbf16>
    %227 = vector.shape_cast %223 : vector<8x32xbf16> to vector<1x8x32xbf16>
    tpu.vector_store %arg4[%c1_104, %224, %c0_105], %227 {strides = array<i32>} : memref<2x64x32xbf16, #tpu.memory_space<vmem>>, vector<1x8x32xbf16>,
    %c2_i32_106 = arith.constant 2 : i32
    %228 = arith.truncf %210 : vector<16x32xf32> to vector<16x32xbf16>
    %cst_107 = arith.constant dense<0.000000e+00> : vector<16x256xf32>
    %229 = tpu.matmul %228, %137, %cst_107 {dimension_numbers = #tpu.dot_dimension_numbers<[1], [0], [0], [1], [0, 0, 1, 1], [], []>} : vector<16x32xbf16>, vector<32x256xbf16>, vector<16x256xf32> -> vector<16x256xf32>
    %230 = vector.extract_strided_slice %229 {offsets = [0, 0], sizes = [16, 128], strides = [1, 1]} : vector<16x256xf32> to vector<16x128xf32>
    %231 = vector.extract_strided_slice %229 {offsets = [0, 128], sizes = [16, 128], strides = [1, 1]} : vector<16x256xf32> to vector<16x128xf32>
    %232 = arith.select %140, %230, %231 : vector<16x128xi1>, vector<16x128xf32>
    %c16_i32_108 = arith.constant 16 : i32
    %233 = arith.muli %c2_i32_106, %c16_i32_108 : i32
    %234 = tpu.assume_multiple %233, 8 : i32
    %235 = arith.index_cast %234 : i32 to index
    %c0_109 = arith.constant 0 : index
    %236 = vector.load %arg6[%235, %c0_109] : memref<128x128xf32, #tpu.memory_space<vmem>>, vector<16x128xf32>
    %237 = arith.addf %236, %232 : vector<16x128xf32>
    %238 = vector.extract_strided_slice %237 {offsets = [0, 0], sizes = [16, 96], strides = [1, 1]} : vector<16x128xf32> to vector<16x96xf32>
    %239 = arith.negf %238 : vector<16x96xf32>
    %240 = math.exp %239 : vector<16x96xf32>
    %cst_110 = arith.constant 1.000000e+00 : f32
    %241 = vector.broadcast %cst_110 : f32 to vector<16x96xf32>
    %242 = arith.addf %241, %240 : vector<16x96xf32>
    %243 = arith.divf %241, %242 : vector<16x96xf32>
    %244 = vector.extract_strided_slice %243 {offsets = [0, 0], sizes = [16, 32], strides = [1, 1]} : vector<16x96xf32> to vector<16x32xf32>
    %245 = vector.extract_strided_slice %243 {offsets = [0, 32], sizes = [16, 32], strides = [1, 1]} : vector<16x96xf32> to vector<16x32xf32>
    %246 = vector.extract_strided_slice %243 {offsets = [0, 64], sizes = [16, 32], strides = [1, 1]} : vector<16x96xf32> to vector<16x32xf32>
    %247 = vector.extract_strided_slice %237 {offsets = [0, 96], sizes = [16, 32], strides = [1, 1]} : vector<16x128xf32> to vector<16x32xf32>
    %248 = math.tanh %247 : vector<16x32xf32>
    %249 = arith.mulf %245, %208 : vector<16x32xf32>
    %250 = arith.mulf %244, %248 : vector<16x32xf32>
    %251 = arith.addf %249, %250 : vector<16x32xf32>
    %252 = math.tanh %251 : vector<16x32xf32>
    %253 = arith.mulf %246, %252 : vector<16x32xf32>
    %c8_i32_111 = arith.constant 8 : i32
    %254 = arith.muli %c2_i32_106, %c8_i32_111 : i32
    %255 = tpu.assume_multiple %254, 8 : i32
    %c7_i32_112 = arith.constant 7 : i32
    %256 = arith.subi %c7_i32_112, %c2_i32_106 : i32
    %c8_i32_113 = arith.constant 8 : i32
    %257 = arith.muli %256, %c8_i32_113 : i32
    %258 = tpu.assume_multiple %257, 8 : i32
    %259 = vector.extract_strided_slice %253 {offsets = [0, 0], sizes = [8, 32], strides = [1, 1]} : vector<16x32xf32> to vector<8x32xf32>
    %260 = arith.truncf %259 : vector<8x32xf32> to vector<8x32xbf16>
    %c0_114 = arith.constant 0 : index
    %261 = arith.index_cast %255 : i32 to index
    %c0_115 = arith.constant 0 : index
    %262 = vector.load %arg4[%c0_114, %261, %c0_115] : memref<2x64x32xbf16, #tpu.memory_space<vmem>>, vector<1x8x32xbf16>
    %263 = vector.shape_cast %262 : vector<1x8x32xbf16> to vector<8x32xbf16>
    %264 = vector.shape_cast %260 : vector<8x32xbf16> to vector<1x8x32xbf16>
    tpu.vector_store %arg4[%c0_114, %261, %c0_115], %264 {strides = array<i32>} : memref<2x64x32xbf16, #tpu.memory_space<vmem>>, vector<1x8x32xbf16>,
    %265 = vector.extract_strided_slice %253 {offsets = [8, 0], sizes = [8, 32], strides = [1, 1]} : vector<16x32xf32> to vector<8x32xf32>
    %266 = arith.truncf %265 : vector<8x32xf32> to vector<8x32xbf16>
    %c1_116 = arith.constant 1 : index
    %267 = arith.index_cast %258 : i32 to index
    %c0_117 = arith.constant 0 : index
    %268 = vector.load %arg4[%c1_116, %267, %c0_117] : memref<2x64x32xbf16, #tpu.memory_space<vmem>>, vector<1x8x32xbf16>
    %269 = vector.shape_cast %268 : vector<1x8x32xbf16> to vector<8x32xbf16>
    %270 = vector.shape_cast %266 : vector<8x32xbf16> to vector<1x8x32xbf16>
    tpu.vector_store %arg4[%c1_116, %267, %c0_117], %270 {strides = array<i32>} : memref<2x64x32xbf16, #tpu.memory_space<vmem>>, vector<1x8x32xbf16>,
    %c3_i32_118 = arith.constant 3 : i32
    %271 = arith.truncf %253 : vector<16x32xf32> to vector<16x32xbf16>
    %cst_119 = arith.constant dense<0.000000e+00> : vector<16x256xf32>
    %272 = tpu.matmul %271, %137, %cst_119 {dimension_numbers = #tpu.dot_dimension_numbers<[1], [0], [0], [1], [0, 0, 1, 1], [], []>} : vector<16x32xbf16>, vector<32x256xbf16>, vector<16x256xf32> -> vector<16x256xf32>
    %273 = vector.extract_strided_slice %272 {offsets = [0, 0], sizes = [16, 128], strides = [1, 1]} : vector<16x256xf32> to vector<16x128xf32>
    %274 = vector.extract_strided_slice %272 {offsets = [0, 128], sizes = [16, 128], strides = [1, 1]} : vector<16x256xf32> to vector<16x128xf32>
    %275 = arith.select %140, %273, %274 : vector<16x128xi1>, vector<16x128xf32>
    %c16_i32_120 = arith.constant 16 : i32
    %276 = arith.muli %c3_i32_118, %c16_i32_120 : i32
    %277 = tpu.assume_multiple %276, 8 : i32
    %278 = arith.index_cast %277 : i32 to index
    %c0_121 = arith.constant 0 : index
    %279 = vector.load %arg6[%278, %c0_121] : memref<128x128xf32, #tpu.memory_space<vmem>>, vector<16x128xf32>
    %280 = arith.addf %279, %275 : vector<16x128xf32>
    %281 = vector.extract_strided_slice %280 {offsets = [0, 0], sizes = [16, 96], strides = [1, 1]} : vector<16x128xf32> to vector<16x96xf32>
    %282 = arith.negf %281 : vector<16x96xf32>
    %283 = math.exp %282 : vector<16x96xf32>
    %cst_122 = arith.constant 1.000000e+00 : f32
    %284 = vector.broadcast %cst_122 : f32 to vector<16x96xf32>
    %285 = arith.addf %284, %283 : vector<16x96xf32>
    %286 = arith.divf %284, %285 : vector<16x96xf32>
    %287 = vector.extract_strided_slice %286 {offsets = [0, 0], sizes = [16, 32], strides = [1, 1]} : vector<16x96xf32> to vector<16x32xf32>
    %288 = vector.extract_strided_slice %286 {offsets = [0, 32], sizes = [16, 32], strides = [1, 1]} : vector<16x96xf32> to vector<16x32xf32>
    %289 = vector.extract_strided_slice %286 {offsets = [0, 64], sizes = [16, 32], strides = [1, 1]} : vector<16x96xf32> to vector<16x32xf32>
    %290 = vector.extract_strided_slice %280 {offsets = [0, 96], sizes = [16, 32], strides = [1, 1]} : vector<16x128xf32> to vector<16x32xf32>
    %291 = math.tanh %290 : vector<16x32xf32>
    %292 = arith.mulf %288, %251 : vector<16x32xf32>
    %293 = arith.mulf %287, %291 : vector<16x32xf32>
    %294 = arith.addf %292, %293 : vector<16x32xf32>
    %295 = math.tanh %294 : vector<16x32xf32>
    %296 = arith.mulf %289, %295 : vector<16x32xf32>
    %c8_i32_123 = arith.constant 8 : i32
    %297 = arith.muli %c3_i32_118, %c8_i32_123 : i32
    %298 = tpu.assume_multiple %297, 8 : i32
    %c7_i32_124 = arith.constant 7 : i32
    %299 = arith.subi %c7_i32_124, %c3_i32_118 : i32
    %c8_i32_125 = arith.constant 8 : i32
    %300 = arith.muli %299, %c8_i32_125 : i32
    %301 = tpu.assume_multiple %300, 8 : i32
    %302 = vector.extract_strided_slice %296 {offsets = [0, 0], sizes = [8, 32], strides = [1, 1]} : vector<16x32xf32> to vector<8x32xf32>
    %303 = arith.truncf %302 : vector<8x32xf32> to vector<8x32xbf16>
    %c0_126 = arith.constant 0 : index
    %304 = arith.index_cast %298 : i32 to index
    %c0_127 = arith.constant 0 : index
    %305 = vector.load %arg4[%c0_126, %304, %c0_127] : memref<2x64x32xbf16, #tpu.memory_space<vmem>>, vector<1x8x32xbf16>
    %306 = vector.shape_cast %305 : vector<1x8x32xbf16> to vector<8x32xbf16>
    %307 = vector.shape_cast %303 : vector<8x32xbf16> to vector<1x8x32xbf16>
    tpu.vector_store %arg4[%c0_126, %304, %c0_127], %307 {strides = array<i32>} : memref<2x64x32xbf16, #tpu.memory_space<vmem>>, vector<1x8x32xbf16>,
    %308 = vector.extract_strided_slice %296 {offsets = [8, 0], sizes = [8, 32], strides = [1, 1]} : vector<16x32xf32> to vector<8x32xf32>
    %309 = arith.truncf %308 : vector<8x32xf32> to vector<8x32xbf16>
    %c1_128 = arith.constant 1 : index
    %310 = arith.index_cast %301 : i32 to index
    %c0_129 = arith.constant 0 : index
    %311 = vector.load %arg4[%c1_128, %310, %c0_129] : memref<2x64x32xbf16, #tpu.memory_space<vmem>>, vector<1x8x32xbf16>
    %312 = vector.shape_cast %311 : vector<1x8x32xbf16> to vector<8x32xbf16>
    %313 = vector.shape_cast %309 : vector<8x32xbf16> to vector<1x8x32xbf16>
    tpu.vector_store %arg4[%c1_128, %310, %c0_129], %313 {strides = array<i32>} : memref<2x64x32xbf16, #tpu.memory_space<vmem>>, vector<1x8x32xbf16>,
    %c4_i32_130 = arith.constant 4 : i32
    %314 = arith.truncf %296 : vector<16x32xf32> to vector<16x32xbf16>
    %cst_131 = arith.constant dense<0.000000e+00> : vector<16x256xf32>
    %315 = tpu.matmul %314, %137, %cst_131 {dimension_numbers = #tpu.dot_dimension_numbers<[1], [0], [0], [1], [0, 0, 1, 1], [], []>} : vector<16x32xbf16>, vector<32x256xbf16>, vector<16x256xf32> -> vector<16x256xf32>
    %316 = vector.extract_strided_slice %315 {offsets = [0, 0], sizes = [16, 128], strides = [1, 1]} : vector<16x256xf32> to vector<16x128xf32>
    %317 = vector.extract_strided_slice %315 {offsets = [0, 128], sizes = [16, 128], strides = [1, 1]} : vector<16x256xf32> to vector<16x128xf32>
    %318 = arith.select %140, %316, %317 : vector<16x128xi1>, vector<16x128xf32>
    %c16_i32_132 = arith.constant 16 : i32
    %319 = arith.muli %c4_i32_130, %c16_i32_132 : i32
    %320 = tpu.assume_multiple %319, 8 : i32
    %321 = arith.index_cast %320 : i32 to index
    %c0_133 = arith.constant 0 : index
    %322 = vector.load %arg6[%321, %c0_133] : memref<128x128xf32, #tpu.memory_space<vmem>>, vector<16x128xf32>
    %323 = arith.addf %322, %318 : vector<16x128xf32>
    %324 = vector.extract_strided_slice %323 {offsets = [0, 0], sizes = [16, 96], strides = [1, 1]} : vector<16x128xf32> to vector<16x96xf32>
    %325 = arith.negf %324 : vector<16x96xf32>
    %326 = math.exp %325 : vector<16x96xf32>
    %cst_134 = arith.constant 1.000000e+00 : f32
    %327 = vector.broadcast %cst_134 : f32 to vector<16x96xf32>
    %328 = arith.addf %327, %326 : vector<16x96xf32>
    %329 = arith.divf %327, %328 : vector<16x96xf32>
    %330 = vector.extract_strided_slice %329 {offsets = [0, 0], sizes = [16, 32], strides = [1, 1]} : vector<16x96xf32> to vector<16x32xf32>
    %331 = vector.extract_strided_slice %329 {offsets = [0, 32], sizes = [16, 32], strides = [1, 1]} : vector<16x96xf32> to vector<16x32xf32>
    %332 = vector.extract_strided_slice %329 {offsets = [0, 64], sizes = [16, 32], strides = [1, 1]} : vector<16x96xf32> to vector<16x32xf32>
    %333 = vector.extract_strided_slice %323 {offsets = [0, 96], sizes = [16, 32], strides = [1, 1]} : vector<16x128xf32> to vector<16x32xf32>
    %334 = math.tanh %333 : vector<16x32xf32>
    %335 = arith.mulf %331, %294 : vector<16x32xf32>
    %336 = arith.mulf %330, %334 : vector<16x32xf32>
    %337 = arith.addf %335, %336 : vector<16x32xf32>
    %338 = math.tanh %337 : vector<16x32xf32>
    %339 = arith.mulf %332, %338 : vector<16x32xf32>
    %c8_i32_135 = arith.constant 8 : i32
    %340 = arith.muli %c4_i32_130, %c8_i32_135 : i32
    %341 = tpu.assume_multiple %340, 8 : i32
    %c7_i32_136 = arith.constant 7 : i32
    %342 = arith.subi %c7_i32_136, %c4_i32_130 : i32
    %c8_i32_137 = arith.constant 8 : i32
    %343 = arith.muli %342, %c8_i32_137 : i32
    %344 = tpu.assume_multiple %343, 8 : i32
    %345 = vector.extract_strided_slice %339 {offsets = [0, 0], sizes = [8, 32], strides = [1, 1]} : vector<16x32xf32> to vector<8x32xf32>
    %346 = arith.truncf %345 : vector<8x32xf32> to vector<8x32xbf16>
    %c0_138 = arith.constant 0 : index
    %347 = arith.index_cast %341 : i32 to index
    %c0_139 = arith.constant 0 : index
    %348 = vector.load %arg4[%c0_138, %347, %c0_139] : memref<2x64x32xbf16, #tpu.memory_space<vmem>>, vector<1x8x32xbf16>
    %349 = vector.shape_cast %348 : vector<1x8x32xbf16> to vector<8x32xbf16>
    %350 = vector.shape_cast %346 : vector<8x32xbf16> to vector<1x8x32xbf16>
    tpu.vector_store %arg4[%c0_138, %347, %c0_139], %350 {strides = array<i32>} : memref<2x64x32xbf16, #tpu.memory_space<vmem>>, vector<1x8x32xbf16>,
    %351 = vector.extract_strided_slice %339 {offsets = [8, 0], sizes = [8, 32], strides = [1, 1]} : vector<16x32xf32> to vector<8x32xf32>
    %352 = arith.truncf %351 : vector<8x32xf32> to vector<8x32xbf16>
    %c1_140 = arith.constant 1 : index
    %353 = arith.index_cast %344 : i32 to index
    %c0_141 = arith.constant 0 : index
    %354 = vector.load %arg4[%c1_140, %353, %c0_141] : memref<2x64x32xbf16, #tpu.memory_space<vmem>>, vector<1x8x32xbf16>
    %355 = vector.shape_cast %354 : vector<1x8x32xbf16> to vector<8x32xbf16>
    %356 = vector.shape_cast %352 : vector<8x32xbf16> to vector<1x8x32xbf16>
    tpu.vector_store %arg4[%c1_140, %353, %c0_141], %356 {strides = array<i32>} : memref<2x64x32xbf16, #tpu.memory_space<vmem>>, vector<1x8x32xbf16>,
    %c5_i32_142 = arith.constant 5 : i32
    %357 = arith.truncf %339 : vector<16x32xf32> to vector<16x32xbf16>
    %cst_143 = arith.constant dense<0.000000e+00> : vector<16x256xf32>
    %358 = tpu.matmul %357, %137, %cst_143 {dimension_numbers = #tpu.dot_dimension_numbers<[1], [0], [0], [1], [0, 0, 1, 1], [], []>} : vector<16x32xbf16>, vector<32x256xbf16>, vector<16x256xf32> -> vector<16x256xf32>
    %359 = vector.extract_strided_slice %358 {offsets = [0, 0], sizes = [16, 128], strides = [1, 1]} : vector<16x256xf32> to vector<16x128xf32>
    %360 = vector.extract_strided_slice %358 {offsets = [0, 128], sizes = [16, 128], strides = [1, 1]} : vector<16x256xf32> to vector<16x128xf32>
    %361 = arith.select %140, %359, %360 : vector<16x128xi1>, vector<16x128xf32>
    %c16_i32_144 = arith.constant 16 : i32
    %362 = arith.muli %c5_i32_142, %c16_i32_144 : i32
    %363 = tpu.assume_multiple %362, 8 : i32
    %364 = arith.index_cast %363 : i32 to index
    %c0_145 = arith.constant 0 : index
    %365 = vector.load %arg6[%364, %c0_145] : memref<128x128xf32, #tpu.memory_space<vmem>>, vector<16x128xf32>
    %366 = arith.addf %365, %361 : vector<16x128xf32>
    %367 = vector.extract_strided_slice %366 {offsets = [0, 0], sizes = [16, 96], strides = [1, 1]} : vector<16x128xf32> to vector<16x96xf32>
    %368 = arith.negf %367 : vector<16x96xf32>
    %369 = math.exp %368 : vector<16x96xf32>
    %cst_146 = arith.constant 1.000000e+00 : f32
    %370 = vector.broadcast %cst_146 : f32 to vector<16x96xf32>
    %371 = arith.addf %370, %369 : vector<16x96xf32>
    %372 = arith.divf %370, %371 : vector<16x96xf32>
    %373 = vector.extract_strided_slice %372 {offsets = [0, 0], sizes = [16, 32], strides = [1, 1]} : vector<16x96xf32> to vector<16x32xf32>
    %374 = vector.extract_strided_slice %372 {offsets = [0, 32], sizes = [16, 32], strides = [1, 1]} : vector<16x96xf32> to vector<16x32xf32>
    %375 = vector.extract_strided_slice %372 {offsets = [0, 64], sizes = [16, 32], strides = [1, 1]} : vector<16x96xf32> to vector<16x32xf32>
    %376 = vector.extract_strided_slice %366 {offsets = [0, 96], sizes = [16, 32], strides = [1, 1]} : vector<16x128xf32> to vector<16x32xf32>
    %377 = math.tanh %376 : vector<16x32xf32>
    %378 = arith.mulf %374, %337 : vector<16x32xf32>
    %379 = arith.mulf %373, %377 : vector<16x32xf32>
    %380 = arith.addf %378, %379 : vector<16x32xf32>
    %381 = math.tanh %380 : vector<16x32xf32>
    %382 = arith.mulf %375, %381 : vector<16x32xf32>
    %c8_i32_147 = arith.constant 8 : i32
    %383 = arith.muli %c5_i32_142, %c8_i32_147 : i32
    %384 = tpu.assume_multiple %383, 8 : i32
    %c7_i32_148 = arith.constant 7 : i32
    %385 = arith.subi %c7_i32_148, %c5_i32_142 : i32
    %c8_i32_149 = arith.constant 8 : i32
    %386 = arith.muli %385, %c8_i32_149 : i32
    %387 = tpu.assume_multiple %386, 8 : i32
    %388 = vector.extract_strided_slice %382 {offsets = [0, 0], sizes = [8, 32], strides = [1, 1]} : vector<16x32xf32> to vector<8x32xf32>
    %389 = arith.truncf %388 : vector<8x32xf32> to vector<8x32xbf16>
    %c0_150 = arith.constant 0 : index
    %390 = arith.index_cast %384 : i32 to index
    %c0_151 = arith.constant 0 : index
    %391 = vector.load %arg4[%c0_150, %390, %c0_151] : memref<2x64x32xbf16, #tpu.memory_space<vmem>>, vector<1x8x32xbf16>
    %392 = vector.shape_cast %391 : vector<1x8x32xbf16> to vector<8x32xbf16>
    %393 = vector.shape_cast %389 : vector<8x32xbf16> to vector<1x8x32xbf16>
    tpu.vector_store %arg4[%c0_150, %390, %c0_151], %393 {strides = array<i32>} : memref<2x64x32xbf16, #tpu.memory_space<vmem>>, vector<1x8x32xbf16>,
    %394 = vector.extract_strided_slice %382 {offsets = [8, 0], sizes = [8, 32], strides = [1, 1]} : vector<16x32xf32> to vector<8x32xf32>
    %395 = arith.truncf %394 : vector<8x32xf32> to vector<8x32xbf16>
    %c1_152 = arith.constant 1 : index
    %396 = arith.index_cast %387 : i32 to index
    %c0_153 = arith.constant 0 : index
    %397 = vector.load %arg4[%c1_152, %396, %c0_153] : memref<2x64x32xbf16, #tpu.memory_space<vmem>>, vector<1x8x32xbf16>
    %398 = vector.shape_cast %397 : vector<1x8x32xbf16> to vector<8x32xbf16>
    %399 = vector.shape_cast %395 : vector<8x32xbf16> to vector<1x8x32xbf16>
    tpu.vector_store %arg4[%c1_152, %396, %c0_153], %399 {strides = array<i32>} : memref<2x64x32xbf16, #tpu.memory_space<vmem>>, vector<1x8x32xbf16>,
    %c6_i32_154 = arith.constant 6 : i32
    %400 = arith.truncf %382 : vector<16x32xf32> to vector<16x32xbf16>
    %cst_155 = arith.constant dense<0.000000e+00> : vector<16x256xf32>
    %401 = tpu.matmul %400, %137, %cst_155 {dimension_numbers = #tpu.dot_dimension_numbers<[1], [0], [0], [1], [0, 0, 1, 1], [], []>} : vector<16x32xbf16>, vector<32x256xbf16>, vector<16x256xf32> -> vector<16x256xf32>
    %402 = vector.extract_strided_slice %401 {offsets = [0, 0], sizes = [16, 128], strides = [1, 1]} : vector<16x256xf32> to vector<16x128xf32>
    %403 = vector.extract_strided_slice %401 {offsets = [0, 128], sizes = [16, 128], strides = [1, 1]} : vector<16x256xf32> to vector<16x128xf32>
    %404 = arith.select %140, %402, %403 : vector<16x128xi1>, vector<16x128xf32>
    %c16_i32_156 = arith.constant 16 : i32
    %405 = arith.muli %c6_i32_154, %c16_i32_156 : i32
    %406 = tpu.assume_multiple %405, 8 : i32
    %407 = arith.index_cast %406 : i32 to index
    %c0_157 = arith.constant 0 : index
    %408 = vector.load %arg6[%407, %c0_157] : memref<128x128xf32, #tpu.memory_space<vmem>>, vector<16x128xf32>
    %409 = arith.addf %408, %404 : vector<16x128xf32>
    %410 = vector.extract_strided_slice %409 {offsets = [0, 0], sizes = [16, 96], strides = [1, 1]} : vector<16x128xf32> to vector<16x96xf32>
    %411 = arith.negf %410 : vector<16x96xf32>
    %412 = math.exp %411 : vector<16x96xf32>
    %cst_158 = arith.constant 1.000000e+00 : f32
    %413 = vector.broadcast %cst_158 : f32 to vector<16x96xf32>
    %414 = arith.addf %413, %412 : vector<16x96xf32>
    %415 = arith.divf %413, %414 : vector<16x96xf32>
    %416 = vector.extract_strided_slice %415 {offsets = [0, 0], sizes = [16, 32], strides = [1, 1]} : vector<16x96xf32> to vector<16x32xf32>
    %417 = vector.extract_strided_slice %415 {offsets = [0, 32], sizes = [16, 32], strides = [1, 1]} : vector<16x96xf32> to vector<16x32xf32>
    %418 = vector.extract_strided_slice %415 {offsets = [0, 64], sizes = [16, 32], strides = [1, 1]} : vector<16x96xf32> to vector<16x32xf32>
    %419 = vector.extract_strided_slice %409 {offsets = [0, 96], sizes = [16, 32], strides = [1, 1]} : vector<16x128xf32> to vector<16x32xf32>
    %420 = math.tanh %419 : vector<16x32xf32>
    %421 = arith.mulf %417, %380 : vector<16x32xf32>
    %422 = arith.mulf %416, %420 : vector<16x32xf32>
    %423 = arith.addf %421, %422 : vector<16x32xf32>
    %424 = math.tanh %423 : vector<16x32xf32>
    %425 = arith.mulf %418, %424 : vector<16x32xf32>
    %c8_i32_159 = arith.constant 8 : i32
    %426 = arith.muli %c6_i32_154, %c8_i32_159 : i32
    %427 = tpu.assume_multiple %426, 8 : i32
    %c7_i32_160 = arith.constant 7 : i32
    %428 = arith.subi %c7_i32_160, %c6_i32_154 : i32
    %c8_i32_161 = arith.constant 8 : i32
    %429 = arith.muli %428, %c8_i32_161 : i32
    %430 = tpu.assume_multiple %429, 8 : i32
    %431 = vector.extract_strided_slice %425 {offsets = [0, 0], sizes = [8, 32], strides = [1, 1]} : vector<16x32xf32> to vector<8x32xf32>
    %432 = arith.truncf %431 : vector<8x32xf32> to vector<8x32xbf16>
    %c0_162 = arith.constant 0 : index
    %433 = arith.index_cast %427 : i32 to index
    %c0_163 = arith.constant 0 : index
    %434 = vector.load %arg4[%c0_162, %433, %c0_163] : memref<2x64x32xbf16, #tpu.memory_space<vmem>>, vector<1x8x32xbf16>
    %435 = vector.shape_cast %434 : vector<1x8x32xbf16> to vector<8x32xbf16>
    %436 = vector.shape_cast %432 : vector<8x32xbf16> to vector<1x8x32xbf16>
    tpu.vector_store %arg4[%c0_162, %433, %c0_163], %436 {strides = array<i32>} : memref<2x64x32xbf16, #tpu.memory_space<vmem>>, vector<1x8x32xbf16>,
    %437 = vector.extract_strided_slice %425 {offsets = [8, 0], sizes = [8, 32], strides = [1, 1]} : vector<16x32xf32> to vector<8x32xf32>
    %438 = arith.truncf %437 : vector<8x32xf32> to vector<8x32xbf16>
    %c1_164 = arith.constant 1 : index
    %439 = arith.index_cast %430 : i32 to index
    %c0_165 = arith.constant 0 : index
    %440 = vector.load %arg4[%c1_164, %439, %c0_165] : memref<2x64x32xbf16, #tpu.memory_space<vmem>>, vector<1x8x32xbf16>
    %441 = vector.shape_cast %440 : vector<1x8x32xbf16> to vector<8x32xbf16>
    %442 = vector.shape_cast %438 : vector<8x32xbf16> to vector<1x8x32xbf16>
    tpu.vector_store %arg4[%c1_164, %439, %c0_165], %442 {strides = array<i32>} : memref<2x64x32xbf16, #tpu.memory_space<vmem>>, vector<1x8x32xbf16>,
    %c7_i32_166 = arith.constant 7 : i32
    %443 = arith.truncf %425 : vector<16x32xf32> to vector<16x32xbf16>
    %cst_167 = arith.constant dense<0.000000e+00> : vector<16x256xf32>
    %444 = tpu.matmul %443, %137, %cst_167 {dimension_numbers = #tpu.dot_dimension_numbers<[1], [0], [0], [1], [0, 0, 1, 1], [], []>} : vector<16x32xbf16>, vector<32x256xbf16>, vector<16x256xf32> -> vector<16x256xf32>
    %445 = vector.extract_strided_slice %444 {offsets = [0, 0], sizes = [16, 128], strides = [1, 1]} : vector<16x256xf32> to vector<16x128xf32>
    %446 = vector.extract_strided_slice %444 {offsets = [0, 128], sizes = [16, 128], strides = [1, 1]} : vector<16x256xf32> to vector<16x128xf32>
    %447 = arith.select %140, %445, %446 : vector<16x128xi1>, vector<16x128xf32>
    %c16_i32_168 = arith.constant 16 : i32
    %448 = arith.muli %c7_i32_166, %c16_i32_168 : i32
    %449 = tpu.assume_multiple %448, 8 : i32
    %450 = arith.index_cast %449 : i32 to index
    %c0_169 = arith.constant 0 : index
    %451 = vector.load %arg6[%450, %c0_169] : memref<128x128xf32, #tpu.memory_space<vmem>>, vector<16x128xf32>
    %452 = arith.addf %451, %447 : vector<16x128xf32>
    %453 = vector.extract_strided_slice %452 {offsets = [0, 0], sizes = [16, 96], strides = [1, 1]} : vector<16x128xf32> to vector<16x96xf32>
    %454 = arith.negf %453 : vector<16x96xf32>
    %455 = math.exp %454 : vector<16x96xf32>
    %cst_170 = arith.constant 1.000000e+00 : f32
    %456 = vector.broadcast %cst_170 : f32 to vector<16x96xf32>
    %457 = arith.addf %456, %455 : vector<16x96xf32>
    %458 = arith.divf %456, %457 : vector<16x96xf32>
    %459 = vector.extract_strided_slice %458 {offsets = [0, 0], sizes = [16, 32], strides = [1, 1]} : vector<16x96xf32> to vector<16x32xf32>
    %460 = vector.extract_strided_slice %458 {offsets = [0, 32], sizes = [16, 32], strides = [1, 1]} : vector<16x96xf32> to vector<16x32xf32>
    %461 = vector.extract_strided_slice %458 {offsets = [0, 64], sizes = [16, 32], strides = [1, 1]} : vector<16x96xf32> to vector<16x32xf32>
    %462 = vector.extract_strided_slice %452 {offsets = [0, 96], sizes = [16, 32], strides = [1, 1]} : vector<16x128xf32> to vector<16x32xf32>
    %463 = math.tanh %462 : vector<16x32xf32>
    %464 = arith.mulf %460, %423 : vector<16x32xf32>
    %465 = arith.mulf %459, %463 : vector<16x32xf32>
    %466 = arith.addf %464, %465 : vector<16x32xf32>
    %467 = math.tanh %466 : vector<16x32xf32>
    %468 = arith.mulf %461, %467 : vector<16x32xf32>
    %c8_i32_171 = arith.constant 8 : i32
    %469 = arith.muli %c7_i32_166, %c8_i32_171 : i32
    %470 = tpu.assume_multiple %469, 8 : i32
    %c7_i32_172 = arith.constant 7 : i32
    %471 = arith.subi %c7_i32_172, %c7_i32_166 : i32
    %c8_i32_173 = arith.constant 8 : i32
    %472 = arith.muli %471, %c8_i32_173 : i32
    %473 = tpu.assume_multiple %472, 8 : i32
    %474 = vector.extract_strided_slice %468 {offsets = [0, 0], sizes = [8, 32], strides = [1, 1]} : vector<16x32xf32> to vector<8x32xf32>
    %475 = arith.truncf %474 : vector<8x32xf32> to vector<8x32xbf16>
    %c0_174 = arith.constant 0 : index
    %476 = arith.index_cast %470 : i32 to index
    %c0_175 = arith.constant 0 : index
    %477 = vector.load %arg4[%c0_174, %476, %c0_175] : memref<2x64x32xbf16, #tpu.memory_space<vmem>>, vector<1x8x32xbf16>
    %478 = vector.shape_cast %477 : vector<1x8x32xbf16> to vector<8x32xbf16>
    %479 = vector.shape_cast %475 : vector<8x32xbf16> to vector<1x8x32xbf16>
    tpu.vector_store %arg4[%c0_174, %476, %c0_175], %479 {strides = array<i32>} : memref<2x64x32xbf16, #tpu.memory_space<vmem>>, vector<1x8x32xbf16>,
    %480 = vector.extract_strided_slice %468 {offsets = [8, 0], sizes = [8, 32], strides = [1, 1]} : vector<16x32xf32> to vector<8x32xf32>
    %481 = arith.truncf %480 : vector<8x32xf32> to vector<8x32xbf16>
    %c1_176 = arith.constant 1 : index
    %482 = arith.index_cast %473 : i32 to index
    %c0_177 = arith.constant 0 : index
    %483 = vector.load %arg4[%c1_176, %482, %c0_177] : memref<2x64x32xbf16, #tpu.memory_space<vmem>>, vector<1x8x32xbf16>
    %484 = vector.shape_cast %483 : vector<1x8x32xbf16> to vector<8x32xbf16>
    %485 = vector.shape_cast %481 : vector<8x32xbf16> to vector<1x8x32xbf16>
    tpu.vector_store %arg4[%c1_176, %482, %c0_177], %485 {strides = array<i32>} : memref<2x64x32xbf16, #tpu.memory_space<vmem>>, vector<1x8x32xbf16>,
    %c8_i32_178 = arith.constant 8 : i32
    return
  }
}

module attributes {stable_mosaic.version = 11 : i64} {
  func.func @_bilstm_layer_kernel(%arg0: memref<2x64x32xbf16, #tpu.memory_space<vmem>>, %arg1: memref<2x32x256xbf16, #tpu.memory_space<vmem>>, %arg2: memref<1x256xf32, #tpu.memory_space<vmem>>, %arg3: memref<32x256xbf16, #tpu.memory_space<vmem>>, %arg4: memref<2x64x32xbf16, #tpu.memory_space<vmem>>, %arg5: memref<64x256xf32, #tpu.memory_space<vmem>>, %arg6: memref<128x128xf32, #tpu.memory_space<vmem>>) attributes {dimension_semantics = [], scalar_prefetch = 0 : i64, scratch_operands = 2 : i64, tpu.core_type = #tpu.core_type<tc>} {
    %c0 = arith.constant 0 : index
    %c0_0 = arith.constant 0 : index
    %c0_1 = arith.constant 0 : index
    %0 = vector.load %arg0[%c0, %c0_0, %c0_1] : memref<2x64x32xbf16, #tpu.memory_space<vmem>>, vector<1x64x32xbf16>
    %1 = vector.shape_cast %0 : vector<1x64x32xbf16> to vector<64x32xbf16>
    %c0_2 = arith.constant 0 : index
    %c0_3 = arith.constant 0 : index
    %c0_4 = arith.constant 0 : index
    %2 = vector.load %arg1[%c0_2, %c0_3, %c0_4] : memref<2x32x256xbf16, #tpu.memory_space<vmem>>, vector<1x32x256xbf16>
    %3 = vector.shape_cast %2 : vector<1x32x256xbf16> to vector<32x256xbf16>
    %cst = arith.constant dense<0.000000e+00> : vector<64x256xf32>
    %4 = tpu.matmul %1, %3, %cst {dimension_numbers = #tpu.dot_dimension_numbers<[1], [0], [0], [1], [0, 0, 1, 1], [], []>} : vector<64x32xbf16>, vector<32x256xbf16>, vector<64x256xf32> -> vector<64x256xf32>
    %c1 = arith.constant 1 : index
    %c0_5 = arith.constant 0 : index
    %c0_6 = arith.constant 0 : index
    %5 = vector.load %arg0[%c1, %c0_5, %c0_6] : memref<2x64x32xbf16, #tpu.memory_space<vmem>>, vector<1x64x32xbf16>
    %6 = vector.shape_cast %5 : vector<1x64x32xbf16> to vector<64x32xbf16>
    %c1_7 = arith.constant 1 : index
    %c0_8 = arith.constant 0 : index
    %c0_9 = arith.constant 0 : index
    %7 = vector.load %arg1[%c1_7, %c0_8, %c0_9] : memref<2x32x256xbf16, #tpu.memory_space<vmem>>, vector<1x32x256xbf16>
    %8 = vector.shape_cast %7 : vector<1x32x256xbf16> to vector<32x256xbf16>
    %cst_10 = arith.constant dense<0.000000e+00> : vector<64x256xf32>
    %9 = tpu.matmul %6, %8, %cst_10 {dimension_numbers = #tpu.dot_dimension_numbers<[1], [0], [0], [1], [0, 0, 1, 1], [], []>} : vector<64x32xbf16>, vector<32x256xbf16>, vector<64x256xf32> -> vector<64x256xf32>
    %10 = arith.addf %4, %9 : vector<64x256xf32>
    %c0_11 = arith.constant 0 : index
    %c0_12 = arith.constant 0 : index
    %11 = vector.load %arg2[%c0_11, %c0_12] : memref<1x256xf32, #tpu.memory_space<vmem>>, vector<1x256xf32>
    %12 = vector.broadcast %11 : vector<1x256xf32> to vector<64x256xf32>
    %13 = arith.addf %10, %12 : vector<64x256xf32>
    %c0_13 = arith.constant 0 : index
    %c0_14 = arith.constant 0 : index
    %14 = vector.load %arg5[%c0_13, %c0_14] : memref<64x256xf32, #tpu.memory_space<vmem>>, vector<64x256xf32>
    tpu.vector_store %arg5[%c0_13, %c0_14], %13 {strides = array<i32>} : memref<64x256xf32, #tpu.memory_space<vmem>>, vector<64x256xf32>,
    %c0_i32 = arith.constant 0 : i32
    %c8_i32 = arith.constant 8 : i32
    %15 = arith.muli %c0_i32, %c8_i32 : i32
    %16 = tpu.assume_multiple %15, 8 : i32
    %c7_i32 = arith.constant 7 : i32
    %17 = arith.subi %c7_i32, %c0_i32 : i32
    %c8_i32_15 = arith.constant 8 : i32
    %18 = arith.muli %17, %c8_i32_15 : i32
    %19 = tpu.assume_multiple %18, 8 : i32
    %c16_i32 = arith.constant 16 : i32
    %20 = arith.muli %c0_i32, %c16_i32 : i32
    %21 = tpu.assume_multiple %20, 8 : i32
    %22 = arith.index_cast %16 : i32 to index
    %c0_16 = arith.constant 0 : index
    %23 = vector.load %arg5[%22, %c0_16] : memref<64x256xf32, #tpu.memory_space<vmem>>, vector<8x128xf32>
    %24 = arith.index_cast %21 : i32 to index
    %c0_17 = arith.constant 0 : index
    %25 = vector.load %arg6[%24, %c0_17] : memref<128x128xf32, #tpu.memory_space<vmem>>, vector<8x128xf32>
    tpu.vector_store %arg6[%24, %c0_17], %23 {strides = array<i32>} : memref<128x128xf32, #tpu.memory_space<vmem>>, vector<8x128xf32>,
    %26 = arith.index_cast %19 : i32 to index
    %c128 = arith.constant 128 : index
    %27 = vector.load %arg5[%26, %c128] : memref<64x256xf32, #tpu.memory_space<vmem>>, vector<8x128xf32>
    %c8_i32_18 = arith.constant 8 : i32
    %28 = arith.addi %21, %c8_i32_18 : i32
    %29 = arith.index_cast %28 : i32 to index
    %c0_19 = arith.constant 0 : index
    %30 = vector.load %arg6[%29, %c0_19] : memref<128x128xf32, #tpu.memory_space<vmem>>, vector<8x128xf32>
    tpu.vector_store %arg6[%29, %c0_19], %27 {strides = array<i32>} : memref<128x128xf32, #tpu.memory_space<vmem>>, vector<8x128xf32>,
    %c1_i32 = arith.constant 1 : i32
    %c8_i32_20 = arith.constant 8 : i32
    %31 = arith.muli %c1_i32, %c8_i32_20 : i32
    %32 = tpu.assume_multiple %31, 8 : i32
    %c7_i32_21 = arith.constant 7 : i32
    %33 = arith.subi %c7_i32_21, %c1_i32 : i32
    %c8_i32_22 = arith.constant 8 : i32
    %34 = arith.muli %33, %c8_i32_22 : i32
    %35 = tpu.assume_multiple %34, 8 : i32
    %c16_i32_23 = arith.constant 16 : i32
    %36 = arith.muli %c1_i32, %c16_i32_23 : i32
    %37 = tpu.assume_multiple %36, 8 : i32
    %38 = arith.index_cast %32 : i32 to index
    %c0_24 = arith.constant 0 : index
    %39 = vector.load %arg5[%38, %c0_24] : memref<64x256xf32, #tpu.memory_space<vmem>>, vector<8x128xf32>
    %40 = arith.index_cast %37 : i32 to index
    %c0_25 = arith.constant 0 : index
    %41 = vector.load %arg6[%40, %c0_25] : memref<128x128xf32, #tpu.memory_space<vmem>>, vector<8x128xf32>
    tpu.vector_store %arg6[%40, %c0_25], %39 {strides = array<i32>} : memref<128x128xf32, #tpu.memory_space<vmem>>, vector<8x128xf32>,
    %42 = arith.index_cast %35 : i32 to index
    %c128_26 = arith.constant 128 : index
    %43 = vector.load %arg5[%42, %c128_26] : memref<64x256xf32, #tpu.memory_space<vmem>>, vector<8x128xf32>
    %c8_i32_27 = arith.constant 8 : i32
    %44 = arith.addi %37, %c8_i32_27 : i32
    %45 = arith.index_cast %44 : i32 to index
    %c0_28 = arith.constant 0 : index
    %46 = vector.load %arg6[%45, %c0_28] : memref<128x128xf32, #tpu.memory_space<vmem>>, vector<8x128xf32>
    tpu.vector_store %arg6[%45, %c0_28], %43 {strides = array<i32>} : memref<128x128xf32, #tpu.memory_space<vmem>>, vector<8x128xf32>,
    %c2_i32 = arith.constant 2 : i32
    %c8_i32_29 = arith.constant 8 : i32
    %47 = arith.muli %c2_i32, %c8_i32_29 : i32
    %48 = tpu.assume_multiple %47, 8 : i32
    %c7_i32_30 = arith.constant 7 : i32
    %49 = arith.subi %c7_i32_30, %c2_i32 : i32
    %c8_i32_31 = arith.constant 8 : i32
    %50 = arith.muli %49, %c8_i32_31 : i32
    %51 = tpu.assume_multiple %50, 8 : i32
    %c16_i32_32 = arith.constant 16 : i32
    %52 = arith.muli %c2_i32, %c16_i32_32 : i32
    %53 = tpu.assume_multiple %52, 8 : i32
    %54 = arith.index_cast %48 : i32 to index
    %c0_33 = arith.constant 0 : index
    %55 = vector.load %arg5[%54, %c0_33] : memref<64x256xf32, #tpu.memory_space<vmem>>, vector<8x128xf32>
    %56 = arith.index_cast %53 : i32 to index
    %c0_34 = arith.constant 0 : index
    %57 = vector.load %arg6[%56, %c0_34] : memref<128x128xf32, #tpu.memory_space<vmem>>, vector<8x128xf32>
    tpu.vector_store %arg6[%56, %c0_34], %55 {strides = array<i32>} : memref<128x128xf32, #tpu.memory_space<vmem>>, vector<8x128xf32>,
    %58 = arith.index_cast %51 : i32 to index
    %c128_35 = arith.constant 128 : index
    %59 = vector.load %arg5[%58, %c128_35] : memref<64x256xf32, #tpu.memory_space<vmem>>, vector<8x128xf32>
    %c8_i32_36 = arith.constant 8 : i32
    %60 = arith.addi %53, %c8_i32_36 : i32
    %61 = arith.index_cast %60 : i32 to index
    %c0_37 = arith.constant 0 : index
    %62 = vector.load %arg6[%61, %c0_37] : memref<128x128xf32, #tpu.memory_space<vmem>>, vector<8x128xf32>
    tpu.vector_store %arg6[%61, %c0_37], %59 {strides = array<i32>} : memref<128x128xf32, #tpu.memory_space<vmem>>, vector<8x128xf32>,
    %c3_i32 = arith.constant 3 : i32
    %c8_i32_38 = arith.constant 8 : i32
    %63 = arith.muli %c3_i32, %c8_i32_38 : i32
    %64 = tpu.assume_multiple %63, 8 : i32
    %c7_i32_39 = arith.constant 7 : i32
    %65 = arith.subi %c7_i32_39, %c3_i32 : i32
    %c8_i32_40 = arith.constant 8 : i32
    %66 = arith.muli %65, %c8_i32_40 : i32
    %67 = tpu.assume_multiple %66, 8 : i32
    %c16_i32_41 = arith.constant 16 : i32
    %68 = arith.muli %c3_i32, %c16_i32_41 : i32
    %69 = tpu.assume_multiple %68, 8 : i32
    %70 = arith.index_cast %64 : i32 to index
    %c0_42 = arith.constant 0 : index
    %71 = vector.load %arg5[%70, %c0_42] : memref<64x256xf32, #tpu.memory_space<vmem>>, vector<8x128xf32>
    %72 = arith.index_cast %69 : i32 to index
    %c0_43 = arith.constant 0 : index
    %73 = vector.load %arg6[%72, %c0_43] : memref<128x128xf32, #tpu.memory_space<vmem>>, vector<8x128xf32>
    tpu.vector_store %arg6[%72, %c0_43], %71 {strides = array<i32>} : memref<128x128xf32, #tpu.memory_space<vmem>>, vector<8x128xf32>,
    %74 = arith.index_cast %67 : i32 to index
    %c128_44 = arith.constant 128 : index
    %75 = vector.load %arg5[%74, %c128_44] : memref<64x256xf32, #tpu.memory_space<vmem>>, vector<8x128xf32>
    %c8_i32_45 = arith.constant 8 : i32
    %76 = arith.addi %69, %c8_i32_45 : i32
    %77 = arith.index_cast %76 : i32 to index
    %c0_46 = arith.constant 0 : index
    %78 = vector.load %arg6[%77, %c0_46] : memref<128x128xf32, #tpu.memory_space<vmem>>, vector<8x128xf32>
    tpu.vector_store %arg6[%77, %c0_46], %75 {strides = array<i32>} : memref<128x128xf32, #tpu.memory_space<vmem>>, vector<8x128xf32>,
    %c4_i32 = arith.constant 4 : i32
    %c8_i32_47 = arith.constant 8 : i32
    %79 = arith.muli %c4_i32, %c8_i32_47 : i32
    %80 = tpu.assume_multiple %79, 8 : i32
    %c7_i32_48 = arith.constant 7 : i32
    %81 = arith.subi %c7_i32_48, %c4_i32 : i32
    %c8_i32_49 = arith.constant 8 : i32
    %82 = arith.muli %81, %c8_i32_49 : i32
    %83 = tpu.assume_multiple %82, 8 : i32
    %c16_i32_50 = arith.constant 16 : i32
    %84 = arith.muli %c4_i32, %c16_i32_50 : i32
    %85 = tpu.assume_multiple %84, 8 : i32
    %86 = arith.index_cast %80 : i32 to index
    %c0_51 = arith.constant 0 : index
    %87 = vector.load %arg5[%86, %c0_51] : memref<64x256xf32, #tpu.memory_space<vmem>>, vector<8x128xf32>
    %88 = arith.index_cast %85 : i32 to index
    %c0_52 = arith.constant 0 : index
    %89 = vector.load %arg6[%88, %c0_52] : memref<128x128xf32, #tpu.memory_space<vmem>>, vector<8x128xf32>
    tpu.vector_store %arg6[%88, %c0_52], %87 {strides = array<i32>} : memref<128x128xf32, #tpu.memory_space<vmem>>, vector<8x128xf32>,
    %90 = arith.index_cast %83 : i32 to index
    %c128_53 = arith.constant 128 : index
    %91 = vector.load %arg5[%90, %c128_53] : memref<64x256xf32, #tpu.memory_space<vmem>>, vector<8x128xf32>
    %c8_i32_54 = arith.constant 8 : i32
    %92 = arith.addi %85, %c8_i32_54 : i32
    %93 = arith.index_cast %92 : i32 to index
    %c0_55 = arith.constant 0 : index
    %94 = vector.load %arg6[%93, %c0_55] : memref<128x128xf32, #tpu.memory_space<vmem>>, vector<8x128xf32>
    tpu.vector_store %arg6[%93, %c0_55], %91 {strides = array<i32>} : memref<128x128xf32, #tpu.memory_space<vmem>>, vector<8x128xf32>,
    %c5_i32 = arith.constant 5 : i32
    %c8_i32_56 = arith.constant 8 : i32
    %95 = arith.muli %c5_i32, %c8_i32_56 : i32
    %96 = tpu.assume_multiple %95, 8 : i32
    %c7_i32_57 = arith.constant 7 : i32
    %97 = arith.subi %c7_i32_57, %c5_i32 : i32
    %c8_i32_58 = arith.constant 8 : i32
    %98 = arith.muli %97, %c8_i32_58 : i32
    %99 = tpu.assume_multiple %98, 8 : i32
    %c16_i32_59 = arith.constant 16 : i32
    %100 = arith.muli %c5_i32, %c16_i32_59 : i32
    %101 = tpu.assume_multiple %100, 8 : i32
    %102 = arith.index_cast %96 : i32 to index
    %c0_60 = arith.constant 0 : index
    %103 = vector.load %arg5[%102, %c0_60] : memref<64x256xf32, #tpu.memory_space<vmem>>, vector<8x128xf32>
    %104 = arith.index_cast %101 : i32 to index
    %c0_61 = arith.constant 0 : index
    %105 = vector.load %arg6[%104, %c0_61] : memref<128x128xf32, #tpu.memory_space<vmem>>, vector<8x128xf32>
    tpu.vector_store %arg6[%104, %c0_61], %103 {strides = array<i32>} : memref<128x128xf32, #tpu.memory_space<vmem>>, vector<8x128xf32>,
    %106 = arith.index_cast %99 : i32 to index
    %c128_62 = arith.constant 128 : index
    %107 = vector.load %arg5[%106, %c128_62] : memref<64x256xf32, #tpu.memory_space<vmem>>, vector<8x128xf32>
    %c8_i32_63 = arith.constant 8 : i32
    %108 = arith.addi %101, %c8_i32_63 : i32
    %109 = arith.index_cast %108 : i32 to index
    %c0_64 = arith.constant 0 : index
    %110 = vector.load %arg6[%109, %c0_64] : memref<128x128xf32, #tpu.memory_space<vmem>>, vector<8x128xf32>
    tpu.vector_store %arg6[%109, %c0_64], %107 {strides = array<i32>} : memref<128x128xf32, #tpu.memory_space<vmem>>, vector<8x128xf32>,
    %c6_i32 = arith.constant 6 : i32
    %c8_i32_65 = arith.constant 8 : i32
    %111 = arith.muli %c6_i32, %c8_i32_65 : i32
    %112 = tpu.assume_multiple %111, 8 : i32
    %c7_i32_66 = arith.constant 7 : i32
    %113 = arith.subi %c7_i32_66, %c6_i32 : i32
    %c8_i32_67 = arith.constant 8 : i32
    %114 = arith.muli %113, %c8_i32_67 : i32
    %115 = tpu.assume_multiple %114, 8 : i32
    %c16_i32_68 = arith.constant 16 : i32
    %116 = arith.muli %c6_i32, %c16_i32_68 : i32
    %117 = tpu.assume_multiple %116, 8 : i32
    %118 = arith.index_cast %112 : i32 to index
    %c0_69 = arith.constant 0 : index
    %119 = vector.load %arg5[%118, %c0_69] : memref<64x256xf32, #tpu.memory_space<vmem>>, vector<8x128xf32>
    %120 = arith.index_cast %117 : i32 to index
    %c0_70 = arith.constant 0 : index
    %121 = vector.load %arg6[%120, %c0_70] : memref<128x128xf32, #tpu.memory_space<vmem>>, vector<8x128xf32>
    tpu.vector_store %arg6[%120, %c0_70], %119 {strides = array<i32>} : memref<128x128xf32, #tpu.memory_space<vmem>>, vector<8x128xf32>,
    %122 = arith.index_cast %115 : i32 to index
    %c128_71 = arith.constant 128 : index
    %123 = vector.load %arg5[%122, %c128_71] : memref<64x256xf32, #tpu.memory_space<vmem>>, vector<8x128xf32>
    %c8_i32_72 = arith.constant 8 : i32
    %124 = arith.addi %117, %c8_i32_72 : i32
    %125 = arith.index_cast %124 : i32 to index
    %c0_73 = arith.constant 0 : index
    %126 = vector.load %arg6[%125, %c0_73] : memref<128x128xf32, #tpu.memory_space<vmem>>, vector<8x128xf32>
    tpu.vector_store %arg6[%125, %c0_73], %123 {strides = array<i32>} : memref<128x128xf32, #tpu.memory_space<vmem>>, vector<8x128xf32>,
    %c7_i32_74 = arith.constant 7 : i32
    %c8_i32_75 = arith.constant 8 : i32
    %127 = arith.muli %c7_i32_74, %c8_i32_75 : i32
    %128 = tpu.assume_multiple %127, 8 : i32
    %c7_i32_76 = arith.constant 7 : i32
    %129 = arith.subi %c7_i32_76, %c7_i32_74 : i32
    %c8_i32_77 = arith.constant 8 : i32
    %130 = arith.muli %129, %c8_i32_77 : i32
    %131 = tpu.assume_multiple %130, 8 : i32
    %c16_i32_78 = arith.constant 16 : i32
    %132 = arith.muli %c7_i32_74, %c16_i32_78 : i32
    %133 = tpu.assume_multiple %132, 8 : i32
    %134 = arith.index_cast %128 : i32 to index
    %c0_79 = arith.constant 0 : index
    %135 = vector.load %arg5[%134, %c0_79] : memref<64x256xf32, #tpu.memory_space<vmem>>, vector<8x128xf32>
    %136 = arith.index_cast %133 : i32 to index
    %c0_80 = arith.constant 0 : index
    %137 = vector.load %arg6[%136, %c0_80] : memref<128x128xf32, #tpu.memory_space<vmem>>, vector<8x128xf32>
    tpu.vector_store %arg6[%136, %c0_80], %135 {strides = array<i32>} : memref<128x128xf32, #tpu.memory_space<vmem>>, vector<8x128xf32>,
    %138 = arith.index_cast %131 : i32 to index
    %c128_81 = arith.constant 128 : index
    %139 = vector.load %arg5[%138, %c128_81] : memref<64x256xf32, #tpu.memory_space<vmem>>, vector<8x128xf32>
    %c8_i32_82 = arith.constant 8 : i32
    %140 = arith.addi %133, %c8_i32_82 : i32
    %141 = arith.index_cast %140 : i32 to index
    %c0_83 = arith.constant 0 : index
    %142 = vector.load %arg6[%141, %c0_83] : memref<128x128xf32, #tpu.memory_space<vmem>>, vector<8x128xf32>
    tpu.vector_store %arg6[%141, %c0_83], %139 {strides = array<i32>} : memref<128x128xf32, #tpu.memory_space<vmem>>, vector<8x128xf32>,
    %c8_i32_84 = arith.constant 8 : i32
    %c0_85 = arith.constant 0 : index
    %c0_86 = arith.constant 0 : index
    %143 = vector.load %arg3[%c0_85, %c0_86] : memref<32x256xbf16, #tpu.memory_space<vmem>>, vector<32x256xbf16>
    %144 = tpu.iota {dimensions = array<i32: 0>} : vector<16x128xi32>
    %c8_i32_87 = arith.constant 8 : i32
    %145 = vector.broadcast %c8_i32_87 : i32 to vector<16x128xi32>
    %146 = arith.cmpi slt, %144, %145 : vector<16x128xi32>
    %cst_88 = arith.constant 0.000000e+00 : f32
    %147 = vector.broadcast %cst_88 : f32 to vector<16x32xf32>
    %c0_i32_89 = arith.constant 0 : i32
    %148 = arith.truncf %147 : vector<16x32xf32> to vector<16x32xbf16>
    %cst_90 = arith.constant dense<0.000000e+00> : vector<16x256xf32>
    %149 = tpu.matmul %148, %143, %cst_90 {dimension_numbers = #tpu.dot_dimension_numbers<[1], [0], [0], [1], [0, 0, 1, 1], [], []>} : vector<16x32xbf16>, vector<32x256xbf16>, vector<16x256xf32> -> vector<16x256xf32>
    %150 = vector.extract_strided_slice %149 {offsets = [0, 0], sizes = [16, 128], strides = [1, 1]} : vector<16x256xf32> to vector<16x128xf32>
    %151 = vector.extract_strided_slice %149 {offsets = [0, 128], sizes = [16, 128], strides = [1, 1]} : vector<16x256xf32> to vector<16x128xf32>
    %152 = arith.select %146, %150, %151 : vector<16x128xi1>, vector<16x128xf32>
    %c16_i32_91 = arith.constant 16 : i32
    %153 = arith.muli %c0_i32_89, %c16_i32_91 : i32
    %154 = tpu.assume_multiple %153, 8 : i32
    %155 = arith.index_cast %154 : i32 to index
    %c0_92 = arith.constant 0 : index
    %156 = vector.load %arg6[%155, %c0_92] : memref<128x128xf32, #tpu.memory_space<vmem>>, vector<16x128xf32>
    %157 = arith.addf %156, %152 : vector<16x128xf32>
    %158 = vector.extract_strided_slice %157 {offsets = [0, 0], sizes = [16, 96], strides = [1, 1]} : vector<16x128xf32> to vector<16x96xf32>
    %159 = arith.negf %158 : vector<16x96xf32>
    %160 = math.exp %159 : vector<16x96xf32>
    %cst_93 = arith.constant 1.000000e+00 : f32
    %161 = vector.broadcast %cst_93 : f32 to vector<16x96xf32>
    %162 = arith.addf %161, %160 : vector<16x96xf32>
    %163 = arith.divf %161, %162 : vector<16x96xf32>
    %164 = vector.extract_strided_slice %163 {offsets = [0, 0], sizes = [16, 32], strides = [1, 1]} : vector<16x96xf32> to vector<16x32xf32>
    %165 = vector.extract_strided_slice %163 {offsets = [0, 32], sizes = [16, 32], strides = [1, 1]} : vector<16x96xf32> to vector<16x32xf32>
    %166 = vector.extract_strided_slice %163 {offsets = [0, 64], sizes = [16, 32], strides = [1, 1]} : vector<16x96xf32> to vector<16x32xf32>
    %167 = vector.extract_strided_slice %157 {offsets = [0, 96], sizes = [16, 32], strides = [1, 1]} : vector<16x128xf32> to vector<16x32xf32>
    %168 = math.tanh %167 : vector<16x32xf32>
    %169 = arith.mulf %165, %147 : vector<16x32xf32>
    %170 = arith.mulf %164, %168 : vector<16x32xf32>
    %171 = arith.addf %169, %170 : vector<16x32xf32>
    %172 = math.tanh %171 : vector<16x32xf32>
    %173 = arith.mulf %166, %172 : vector<16x32xf32>
    %c8_i32_94 = arith.constant 8 : i32
    %174 = arith.muli %c0_i32_89, %c8_i32_94 : i32
    %175 = tpu.assume_multiple %174, 8 : i32
    %c7_i32_95 = arith.constant 7 : i32
    %176 = arith.subi %c7_i32_95, %c0_i32_89 : i32
    %c8_i32_96 = arith.constant 8 : i32
    %177 = arith.muli %176, %c8_i32_96 : i32
    %178 = tpu.assume_multiple %177, 8 : i32
    %179 = vector.extract_strided_slice %173 {offsets = [0, 0], sizes = [8, 32], strides = [1, 1]} : vector<16x32xf32> to vector<8x32xf32>
    %180 = arith.truncf %179 : vector<8x32xf32> to vector<8x32xbf16>
    %c0_97 = arith.constant 0 : index
    %181 = arith.index_cast %175 : i32 to index
    %c0_98 = arith.constant 0 : index
    %182 = vector.load %arg4[%c0_97, %181, %c0_98] : memref<2x64x32xbf16, #tpu.memory_space<vmem>>, vector<1x8x32xbf16>
    %183 = vector.shape_cast %182 : vector<1x8x32xbf16> to vector<8x32xbf16>
    %184 = vector.shape_cast %180 : vector<8x32xbf16> to vector<1x8x32xbf16>
    tpu.vector_store %arg4[%c0_97, %181, %c0_98], %184 {strides = array<i32>} : memref<2x64x32xbf16, #tpu.memory_space<vmem>>, vector<1x8x32xbf16>,
    %185 = vector.extract_strided_slice %173 {offsets = [8, 0], sizes = [8, 32], strides = [1, 1]} : vector<16x32xf32> to vector<8x32xf32>
    %186 = arith.truncf %185 : vector<8x32xf32> to vector<8x32xbf16>
    %c1_99 = arith.constant 1 : index
    %187 = arith.index_cast %178 : i32 to index
    %c0_100 = arith.constant 0 : index
    %188 = vector.load %arg4[%c1_99, %187, %c0_100] : memref<2x64x32xbf16, #tpu.memory_space<vmem>>, vector<1x8x32xbf16>
    %189 = vector.shape_cast %188 : vector<1x8x32xbf16> to vector<8x32xbf16>
    %190 = vector.shape_cast %186 : vector<8x32xbf16> to vector<1x8x32xbf16>
    tpu.vector_store %arg4[%c1_99, %187, %c0_100], %190 {strides = array<i32>} : memref<2x64x32xbf16, #tpu.memory_space<vmem>>, vector<1x8x32xbf16>,
    %c1_i32_101 = arith.constant 1 : i32
    %191 = arith.truncf %173 : vector<16x32xf32> to vector<16x32xbf16>
    %cst_102 = arith.constant dense<0.000000e+00> : vector<16x256xf32>
    %192 = tpu.matmul %191, %143, %cst_102 {dimension_numbers = #tpu.dot_dimension_numbers<[1], [0], [0], [1], [0, 0, 1, 1], [], []>} : vector<16x32xbf16>, vector<32x256xbf16>, vector<16x256xf32> -> vector<16x256xf32>
    %193 = vector.extract_strided_slice %192 {offsets = [0, 0], sizes = [16, 128], strides = [1, 1]} : vector<16x256xf32> to vector<16x128xf32>
    %194 = vector.extract_strided_slice %192 {offsets = [0, 128], sizes = [16, 128], strides = [1, 1]} : vector<16x256xf32> to vector<16x128xf32>
    %195 = arith.select %146, %193, %194 : vector<16x128xi1>, vector<16x128xf32>
    %c16_i32_103 = arith.constant 16 : i32
    %196 = arith.muli %c1_i32_101, %c16_i32_103 : i32
    %197 = tpu.assume_multiple %196, 8 : i32
    %198 = arith.index_cast %197 : i32 to index
    %c0_104 = arith.constant 0 : index
    %199 = vector.load %arg6[%198, %c0_104] : memref<128x128xf32, #tpu.memory_space<vmem>>, vector<16x128xf32>
    %200 = arith.addf %199, %195 : vector<16x128xf32>
    %201 = vector.extract_strided_slice %200 {offsets = [0, 0], sizes = [16, 96], strides = [1, 1]} : vector<16x128xf32> to vector<16x96xf32>
    %202 = arith.negf %201 : vector<16x96xf32>
    %203 = math.exp %202 : vector<16x96xf32>
    %cst_105 = arith.constant 1.000000e+00 : f32
    %204 = vector.broadcast %cst_105 : f32 to vector<16x96xf32>
    %205 = arith.addf %204, %203 : vector<16x96xf32>
    %206 = arith.divf %204, %205 : vector<16x96xf32>
    %207 = vector.extract_strided_slice %206 {offsets = [0, 0], sizes = [16, 32], strides = [1, 1]} : vector<16x96xf32> to vector<16x32xf32>
    %208 = vector.extract_strided_slice %206 {offsets = [0, 32], sizes = [16, 32], strides = [1, 1]} : vector<16x96xf32> to vector<16x32xf32>
    %209 = vector.extract_strided_slice %206 {offsets = [0, 64], sizes = [16, 32], strides = [1, 1]} : vector<16x96xf32> to vector<16x32xf32>
    %210 = vector.extract_strided_slice %200 {offsets = [0, 96], sizes = [16, 32], strides = [1, 1]} : vector<16x128xf32> to vector<16x32xf32>
    %211 = math.tanh %210 : vector<16x32xf32>
    %212 = arith.mulf %208, %171 : vector<16x32xf32>
    %213 = arith.mulf %207, %211 : vector<16x32xf32>
    %214 = arith.addf %212, %213 : vector<16x32xf32>
    %215 = math.tanh %214 : vector<16x32xf32>
    %216 = arith.mulf %209, %215 : vector<16x32xf32>
    %c8_i32_106 = arith.constant 8 : i32
    %217 = arith.muli %c1_i32_101, %c8_i32_106 : i32
    %218 = tpu.assume_multiple %217, 8 : i32
    %c7_i32_107 = arith.constant 7 : i32
    %219 = arith.subi %c7_i32_107, %c1_i32_101 : i32
    %c8_i32_108 = arith.constant 8 : i32
    %220 = arith.muli %219, %c8_i32_108 : i32
    %221 = tpu.assume_multiple %220, 8 : i32
    %222 = vector.extract_strided_slice %216 {offsets = [0, 0], sizes = [8, 32], strides = [1, 1]} : vector<16x32xf32> to vector<8x32xf32>
    %223 = arith.truncf %222 : vector<8x32xf32> to vector<8x32xbf16>
    %c0_109 = arith.constant 0 : index
    %224 = arith.index_cast %218 : i32 to index
    %c0_110 = arith.constant 0 : index
    %225 = vector.load %arg4[%c0_109, %224, %c0_110] : memref<2x64x32xbf16, #tpu.memory_space<vmem>>, vector<1x8x32xbf16>
    %226 = vector.shape_cast %225 : vector<1x8x32xbf16> to vector<8x32xbf16>
    %227 = vector.shape_cast %223 : vector<8x32xbf16> to vector<1x8x32xbf16>
    tpu.vector_store %arg4[%c0_109, %224, %c0_110], %227 {strides = array<i32>} : memref<2x64x32xbf16, #tpu.memory_space<vmem>>, vector<1x8x32xbf16>,
    %228 = vector.extract_strided_slice %216 {offsets = [8, 0], sizes = [8, 32], strides = [1, 1]} : vector<16x32xf32> to vector<8x32xf32>
    %229 = arith.truncf %228 : vector<8x32xf32> to vector<8x32xbf16>
    %c1_111 = arith.constant 1 : index
    %230 = arith.index_cast %221 : i32 to index
    %c0_112 = arith.constant 0 : index
    %231 = vector.load %arg4[%c1_111, %230, %c0_112] : memref<2x64x32xbf16, #tpu.memory_space<vmem>>, vector<1x8x32xbf16>
    %232 = vector.shape_cast %231 : vector<1x8x32xbf16> to vector<8x32xbf16>
    %233 = vector.shape_cast %229 : vector<8x32xbf16> to vector<1x8x32xbf16>
    tpu.vector_store %arg4[%c1_111, %230, %c0_112], %233 {strides = array<i32>} : memref<2x64x32xbf16, #tpu.memory_space<vmem>>, vector<1x8x32xbf16>,
    %c2_i32_113 = arith.constant 2 : i32
    %234 = arith.truncf %216 : vector<16x32xf32> to vector<16x32xbf16>
    %cst_114 = arith.constant dense<0.000000e+00> : vector<16x256xf32>
    %235 = tpu.matmul %234, %143, %cst_114 {dimension_numbers = #tpu.dot_dimension_numbers<[1], [0], [0], [1], [0, 0, 1, 1], [], []>} : vector<16x32xbf16>, vector<32x256xbf16>, vector<16x256xf32> -> vector<16x256xf32>
    %236 = vector.extract_strided_slice %235 {offsets = [0, 0], sizes = [16, 128], strides = [1, 1]} : vector<16x256xf32> to vector<16x128xf32>
    %237 = vector.extract_strided_slice %235 {offsets = [0, 128], sizes = [16, 128], strides = [1, 1]} : vector<16x256xf32> to vector<16x128xf32>
    %238 = arith.select %146, %236, %237 : vector<16x128xi1>, vector<16x128xf32>
    %c16_i32_115 = arith.constant 16 : i32
    %239 = arith.muli %c2_i32_113, %c16_i32_115 : i32
    %240 = tpu.assume_multiple %239, 8 : i32
    %241 = arith.index_cast %240 : i32 to index
    %c0_116 = arith.constant 0 : index
    %242 = vector.load %arg6[%241, %c0_116] : memref<128x128xf32, #tpu.memory_space<vmem>>, vector<16x128xf32>
    %243 = arith.addf %242, %238 : vector<16x128xf32>
    %244 = vector.extract_strided_slice %243 {offsets = [0, 0], sizes = [16, 96], strides = [1, 1]} : vector<16x128xf32> to vector<16x96xf32>
    %245 = arith.negf %244 : vector<16x96xf32>
    %246 = math.exp %245 : vector<16x96xf32>
    %cst_117 = arith.constant 1.000000e+00 : f32
    %247 = vector.broadcast %cst_117 : f32 to vector<16x96xf32>
    %248 = arith.addf %247, %246 : vector<16x96xf32>
    %249 = arith.divf %247, %248 : vector<16x96xf32>
    %250 = vector.extract_strided_slice %249 {offsets = [0, 0], sizes = [16, 32], strides = [1, 1]} : vector<16x96xf32> to vector<16x32xf32>
    %251 = vector.extract_strided_slice %249 {offsets = [0, 32], sizes = [16, 32], strides = [1, 1]} : vector<16x96xf32> to vector<16x32xf32>
    %252 = vector.extract_strided_slice %249 {offsets = [0, 64], sizes = [16, 32], strides = [1, 1]} : vector<16x96xf32> to vector<16x32xf32>
    %253 = vector.extract_strided_slice %243 {offsets = [0, 96], sizes = [16, 32], strides = [1, 1]} : vector<16x128xf32> to vector<16x32xf32>
    %254 = math.tanh %253 : vector<16x32xf32>
    %255 = arith.mulf %251, %214 : vector<16x32xf32>
    %256 = arith.mulf %250, %254 : vector<16x32xf32>
    %257 = arith.addf %255, %256 : vector<16x32xf32>
    %258 = math.tanh %257 : vector<16x32xf32>
    %259 = arith.mulf %252, %258 : vector<16x32xf32>
    %c8_i32_118 = arith.constant 8 : i32
    %260 = arith.muli %c2_i32_113, %c8_i32_118 : i32
    %261 = tpu.assume_multiple %260, 8 : i32
    %c7_i32_119 = arith.constant 7 : i32
    %262 = arith.subi %c7_i32_119, %c2_i32_113 : i32
    %c8_i32_120 = arith.constant 8 : i32
    %263 = arith.muli %262, %c8_i32_120 : i32
    %264 = tpu.assume_multiple %263, 8 : i32
    %265 = vector.extract_strided_slice %259 {offsets = [0, 0], sizes = [8, 32], strides = [1, 1]} : vector<16x32xf32> to vector<8x32xf32>
    %266 = arith.truncf %265 : vector<8x32xf32> to vector<8x32xbf16>
    %c0_121 = arith.constant 0 : index
    %267 = arith.index_cast %261 : i32 to index
    %c0_122 = arith.constant 0 : index
    %268 = vector.load %arg4[%c0_121, %267, %c0_122] : memref<2x64x32xbf16, #tpu.memory_space<vmem>>, vector<1x8x32xbf16>
    %269 = vector.shape_cast %268 : vector<1x8x32xbf16> to vector<8x32xbf16>
    %270 = vector.shape_cast %266 : vector<8x32xbf16> to vector<1x8x32xbf16>
    tpu.vector_store %arg4[%c0_121, %267, %c0_122], %270 {strides = array<i32>} : memref<2x64x32xbf16, #tpu.memory_space<vmem>>, vector<1x8x32xbf16>,
    %271 = vector.extract_strided_slice %259 {offsets = [8, 0], sizes = [8, 32], strides = [1, 1]} : vector<16x32xf32> to vector<8x32xf32>
    %272 = arith.truncf %271 : vector<8x32xf32> to vector<8x32xbf16>
    %c1_123 = arith.constant 1 : index
    %273 = arith.index_cast %264 : i32 to index
    %c0_124 = arith.constant 0 : index
    %274 = vector.load %arg4[%c1_123, %273, %c0_124] : memref<2x64x32xbf16, #tpu.memory_space<vmem>>, vector<1x8x32xbf16>
    %275 = vector.shape_cast %274 : vector<1x8x32xbf16> to vector<8x32xbf16>
    %276 = vector.shape_cast %272 : vector<8x32xbf16> to vector<1x8x32xbf16>
    tpu.vector_store %arg4[%c1_123, %273, %c0_124], %276 {strides = array<i32>} : memref<2x64x32xbf16, #tpu.memory_space<vmem>>, vector<1x8x32xbf16>,
    %c3_i32_125 = arith.constant 3 : i32
    %277 = arith.truncf %259 : vector<16x32xf32> to vector<16x32xbf16>
    %cst_126 = arith.constant dense<0.000000e+00> : vector<16x256xf32>
    %278 = tpu.matmul %277, %143, %cst_126 {dimension_numbers = #tpu.dot_dimension_numbers<[1], [0], [0], [1], [0, 0, 1, 1], [], []>} : vector<16x32xbf16>, vector<32x256xbf16>, vector<16x256xf32> -> vector<16x256xf32>
    %279 = vector.extract_strided_slice %278 {offsets = [0, 0], sizes = [16, 128], strides = [1, 1]} : vector<16x256xf32> to vector<16x128xf32>
    %280 = vector.extract_strided_slice %278 {offsets = [0, 128], sizes = [16, 128], strides = [1, 1]} : vector<16x256xf32> to vector<16x128xf32>
    %281 = arith.select %146, %279, %280 : vector<16x128xi1>, vector<16x128xf32>
    %c16_i32_127 = arith.constant 16 : i32
    %282 = arith.muli %c3_i32_125, %c16_i32_127 : i32
    %283 = tpu.assume_multiple %282, 8 : i32
    %284 = arith.index_cast %283 : i32 to index
    %c0_128 = arith.constant 0 : index
    %285 = vector.load %arg6[%284, %c0_128] : memref<128x128xf32, #tpu.memory_space<vmem>>, vector<16x128xf32>
    %286 = arith.addf %285, %281 : vector<16x128xf32>
    %287 = vector.extract_strided_slice %286 {offsets = [0, 0], sizes = [16, 96], strides = [1, 1]} : vector<16x128xf32> to vector<16x96xf32>
    %288 = arith.negf %287 : vector<16x96xf32>
    %289 = math.exp %288 : vector<16x96xf32>
    %cst_129 = arith.constant 1.000000e+00 : f32
    %290 = vector.broadcast %cst_129 : f32 to vector<16x96xf32>
    %291 = arith.addf %290, %289 : vector<16x96xf32>
    %292 = arith.divf %290, %291 : vector<16x96xf32>
    %293 = vector.extract_strided_slice %292 {offsets = [0, 0], sizes = [16, 32], strides = [1, 1]} : vector<16x96xf32> to vector<16x32xf32>
    %294 = vector.extract_strided_slice %292 {offsets = [0, 32], sizes = [16, 32], strides = [1, 1]} : vector<16x96xf32> to vector<16x32xf32>
    %295 = vector.extract_strided_slice %292 {offsets = [0, 64], sizes = [16, 32], strides = [1, 1]} : vector<16x96xf32> to vector<16x32xf32>
    %296 = vector.extract_strided_slice %286 {offsets = [0, 96], sizes = [16, 32], strides = [1, 1]} : vector<16x128xf32> to vector<16x32xf32>
    %297 = math.tanh %296 : vector<16x32xf32>
    %298 = arith.mulf %294, %257 : vector<16x32xf32>
    %299 = arith.mulf %293, %297 : vector<16x32xf32>
    %300 = arith.addf %298, %299 : vector<16x32xf32>
    %301 = math.tanh %300 : vector<16x32xf32>
    %302 = arith.mulf %295, %301 : vector<16x32xf32>
    %c8_i32_130 = arith.constant 8 : i32
    %303 = arith.muli %c3_i32_125, %c8_i32_130 : i32
    %304 = tpu.assume_multiple %303, 8 : i32
    %c7_i32_131 = arith.constant 7 : i32
    %305 = arith.subi %c7_i32_131, %c3_i32_125 : i32
    %c8_i32_132 = arith.constant 8 : i32
    %306 = arith.muli %305, %c8_i32_132 : i32
    %307 = tpu.assume_multiple %306, 8 : i32
    %308 = vector.extract_strided_slice %302 {offsets = [0, 0], sizes = [8, 32], strides = [1, 1]} : vector<16x32xf32> to vector<8x32xf32>
    %309 = arith.truncf %308 : vector<8x32xf32> to vector<8x32xbf16>
    %c0_133 = arith.constant 0 : index
    %310 = arith.index_cast %304 : i32 to index
    %c0_134 = arith.constant 0 : index
    %311 = vector.load %arg4[%c0_133, %310, %c0_134] : memref<2x64x32xbf16, #tpu.memory_space<vmem>>, vector<1x8x32xbf16>
    %312 = vector.shape_cast %311 : vector<1x8x32xbf16> to vector<8x32xbf16>
    %313 = vector.shape_cast %309 : vector<8x32xbf16> to vector<1x8x32xbf16>
    tpu.vector_store %arg4[%c0_133, %310, %c0_134], %313 {strides = array<i32>} : memref<2x64x32xbf16, #tpu.memory_space<vmem>>, vector<1x8x32xbf16>,
    %314 = vector.extract_strided_slice %302 {offsets = [8, 0], sizes = [8, 32], strides = [1, 1]} : vector<16x32xf32> to vector<8x32xf32>
    %315 = arith.truncf %314 : vector<8x32xf32> to vector<8x32xbf16>
    %c1_135 = arith.constant 1 : index
    %316 = arith.index_cast %307 : i32 to index
    %c0_136 = arith.constant 0 : index
    %317 = vector.load %arg4[%c1_135, %316, %c0_136] : memref<2x64x32xbf16, #tpu.memory_space<vmem>>, vector<1x8x32xbf16>
    %318 = vector.shape_cast %317 : vector<1x8x32xbf16> to vector<8x32xbf16>
    %319 = vector.shape_cast %315 : vector<8x32xbf16> to vector<1x8x32xbf16>
    tpu.vector_store %arg4[%c1_135, %316, %c0_136], %319 {strides = array<i32>} : memref<2x64x32xbf16, #tpu.memory_space<vmem>>, vector<1x8x32xbf16>,
    %c4_i32_137 = arith.constant 4 : i32
    %320 = arith.truncf %302 : vector<16x32xf32> to vector<16x32xbf16>
    %cst_138 = arith.constant dense<0.000000e+00> : vector<16x256xf32>
    %321 = tpu.matmul %320, %143, %cst_138 {dimension_numbers = #tpu.dot_dimension_numbers<[1], [0], [0], [1], [0, 0, 1, 1], [], []>} : vector<16x32xbf16>, vector<32x256xbf16>, vector<16x256xf32> -> vector<16x256xf32>
    %322 = vector.extract_strided_slice %321 {offsets = [0, 0], sizes = [16, 128], strides = [1, 1]} : vector<16x256xf32> to vector<16x128xf32>
    %323 = vector.extract_strided_slice %321 {offsets = [0, 128], sizes = [16, 128], strides = [1, 1]} : vector<16x256xf32> to vector<16x128xf32>
    %324 = arith.select %146, %322, %323 : vector<16x128xi1>, vector<16x128xf32>
    %c16_i32_139 = arith.constant 16 : i32
    %325 = arith.muli %c4_i32_137, %c16_i32_139 : i32
    %326 = tpu.assume_multiple %325, 8 : i32
    %327 = arith.index_cast %326 : i32 to index
    %c0_140 = arith.constant 0 : index
    %328 = vector.load %arg6[%327, %c0_140] : memref<128x128xf32, #tpu.memory_space<vmem>>, vector<16x128xf32>
    %329 = arith.addf %328, %324 : vector<16x128xf32>
    %330 = vector.extract_strided_slice %329 {offsets = [0, 0], sizes = [16, 96], strides = [1, 1]} : vector<16x128xf32> to vector<16x96xf32>
    %331 = arith.negf %330 : vector<16x96xf32>
    %332 = math.exp %331 : vector<16x96xf32>
    %cst_141 = arith.constant 1.000000e+00 : f32
    %333 = vector.broadcast %cst_141 : f32 to vector<16x96xf32>
    %334 = arith.addf %333, %332 : vector<16x96xf32>
    %335 = arith.divf %333, %334 : vector<16x96xf32>
    %336 = vector.extract_strided_slice %335 {offsets = [0, 0], sizes = [16, 32], strides = [1, 1]} : vector<16x96xf32> to vector<16x32xf32>
    %337 = vector.extract_strided_slice %335 {offsets = [0, 32], sizes = [16, 32], strides = [1, 1]} : vector<16x96xf32> to vector<16x32xf32>
    %338 = vector.extract_strided_slice %335 {offsets = [0, 64], sizes = [16, 32], strides = [1, 1]} : vector<16x96xf32> to vector<16x32xf32>
    %339 = vector.extract_strided_slice %329 {offsets = [0, 96], sizes = [16, 32], strides = [1, 1]} : vector<16x128xf32> to vector<16x32xf32>
    %340 = math.tanh %339 : vector<16x32xf32>
    %341 = arith.mulf %337, %300 : vector<16x32xf32>
    %342 = arith.mulf %336, %340 : vector<16x32xf32>
    %343 = arith.addf %341, %342 : vector<16x32xf32>
    %344 = math.tanh %343 : vector<16x32xf32>
    %345 = arith.mulf %338, %344 : vector<16x32xf32>
    %c8_i32_142 = arith.constant 8 : i32
    %346 = arith.muli %c4_i32_137, %c8_i32_142 : i32
    %347 = tpu.assume_multiple %346, 8 : i32
    %c7_i32_143 = arith.constant 7 : i32
    %348 = arith.subi %c7_i32_143, %c4_i32_137 : i32
    %c8_i32_144 = arith.constant 8 : i32
    %349 = arith.muli %348, %c8_i32_144 : i32
    %350 = tpu.assume_multiple %349, 8 : i32
    %351 = vector.extract_strided_slice %345 {offsets = [0, 0], sizes = [8, 32], strides = [1, 1]} : vector<16x32xf32> to vector<8x32xf32>
    %352 = arith.truncf %351 : vector<8x32xf32> to vector<8x32xbf16>
    %c0_145 = arith.constant 0 : index
    %353 = arith.index_cast %347 : i32 to index
    %c0_146 = arith.constant 0 : index
    %354 = vector.load %arg4[%c0_145, %353, %c0_146] : memref<2x64x32xbf16, #tpu.memory_space<vmem>>, vector<1x8x32xbf16>
    %355 = vector.shape_cast %354 : vector<1x8x32xbf16> to vector<8x32xbf16>
    %356 = vector.shape_cast %352 : vector<8x32xbf16> to vector<1x8x32xbf16>
    tpu.vector_store %arg4[%c0_145, %353, %c0_146], %356 {strides = array<i32>} : memref<2x64x32xbf16, #tpu.memory_space<vmem>>, vector<1x8x32xbf16>,
    %357 = vector.extract_strided_slice %345 {offsets = [8, 0], sizes = [8, 32], strides = [1, 1]} : vector<16x32xf32> to vector<8x32xf32>
    %358 = arith.truncf %357 : vector<8x32xf32> to vector<8x32xbf16>
    %c1_147 = arith.constant 1 : index
    %359 = arith.index_cast %350 : i32 to index
    %c0_148 = arith.constant 0 : index
    %360 = vector.load %arg4[%c1_147, %359, %c0_148] : memref<2x64x32xbf16, #tpu.memory_space<vmem>>, vector<1x8x32xbf16>
    %361 = vector.shape_cast %360 : vector<1x8x32xbf16> to vector<8x32xbf16>
    %362 = vector.shape_cast %358 : vector<8x32xbf16> to vector<1x8x32xbf16>
    tpu.vector_store %arg4[%c1_147, %359, %c0_148], %362 {strides = array<i32>} : memref<2x64x32xbf16, #tpu.memory_space<vmem>>, vector<1x8x32xbf16>,
    %c5_i32_149 = arith.constant 5 : i32
    %363 = arith.truncf %345 : vector<16x32xf32> to vector<16x32xbf16>
    %cst_150 = arith.constant dense<0.000000e+00> : vector<16x256xf32>
    %364 = tpu.matmul %363, %143, %cst_150 {dimension_numbers = #tpu.dot_dimension_numbers<[1], [0], [0], [1], [0, 0, 1, 1], [], []>} : vector<16x32xbf16>, vector<32x256xbf16>, vector<16x256xf32> -> vector<16x256xf32>
    %365 = vector.extract_strided_slice %364 {offsets = [0, 0], sizes = [16, 128], strides = [1, 1]} : vector<16x256xf32> to vector<16x128xf32>
    %366 = vector.extract_strided_slice %364 {offsets = [0, 128], sizes = [16, 128], strides = [1, 1]} : vector<16x256xf32> to vector<16x128xf32>
    %367 = arith.select %146, %365, %366 : vector<16x128xi1>, vector<16x128xf32>
    %c16_i32_151 = arith.constant 16 : i32
    %368 = arith.muli %c5_i32_149, %c16_i32_151 : i32
    %369 = tpu.assume_multiple %368, 8 : i32
    %370 = arith.index_cast %369 : i32 to index
    %c0_152 = arith.constant 0 : index
    %371 = vector.load %arg6[%370, %c0_152] : memref<128x128xf32, #tpu.memory_space<vmem>>, vector<16x128xf32>
    %372 = arith.addf %371, %367 : vector<16x128xf32>
    %373 = vector.extract_strided_slice %372 {offsets = [0, 0], sizes = [16, 96], strides = [1, 1]} : vector<16x128xf32> to vector<16x96xf32>
    %374 = arith.negf %373 : vector<16x96xf32>
    %375 = math.exp %374 : vector<16x96xf32>
    %cst_153 = arith.constant 1.000000e+00 : f32
    %376 = vector.broadcast %cst_153 : f32 to vector<16x96xf32>
    %377 = arith.addf %376, %375 : vector<16x96xf32>
    %378 = arith.divf %376, %377 : vector<16x96xf32>
    %379 = vector.extract_strided_slice %378 {offsets = [0, 0], sizes = [16, 32], strides = [1, 1]} : vector<16x96xf32> to vector<16x32xf32>
    %380 = vector.extract_strided_slice %378 {offsets = [0, 32], sizes = [16, 32], strides = [1, 1]} : vector<16x96xf32> to vector<16x32xf32>
    %381 = vector.extract_strided_slice %378 {offsets = [0, 64], sizes = [16, 32], strides = [1, 1]} : vector<16x96xf32> to vector<16x32xf32>
    %382 = vector.extract_strided_slice %372 {offsets = [0, 96], sizes = [16, 32], strides = [1, 1]} : vector<16x128xf32> to vector<16x32xf32>
    %383 = math.tanh %382 : vector<16x32xf32>
    %384 = arith.mulf %380, %343 : vector<16x32xf32>
    %385 = arith.mulf %379, %383 : vector<16x32xf32>
    %386 = arith.addf %384, %385 : vector<16x32xf32>
    %387 = math.tanh %386 : vector<16x32xf32>
    %388 = arith.mulf %381, %387 : vector<16x32xf32>
    %c8_i32_154 = arith.constant 8 : i32
    %389 = arith.muli %c5_i32_149, %c8_i32_154 : i32
    %390 = tpu.assume_multiple %389, 8 : i32
    %c7_i32_155 = arith.constant 7 : i32
    %391 = arith.subi %c7_i32_155, %c5_i32_149 : i32
    %c8_i32_156 = arith.constant 8 : i32
    %392 = arith.muli %391, %c8_i32_156 : i32
    %393 = tpu.assume_multiple %392, 8 : i32
    %394 = vector.extract_strided_slice %388 {offsets = [0, 0], sizes = [8, 32], strides = [1, 1]} : vector<16x32xf32> to vector<8x32xf32>
    %395 = arith.truncf %394 : vector<8x32xf32> to vector<8x32xbf16>
    %c0_157 = arith.constant 0 : index
    %396 = arith.index_cast %390 : i32 to index
    %c0_158 = arith.constant 0 : index
    %397 = vector.load %arg4[%c0_157, %396, %c0_158] : memref<2x64x32xbf16, #tpu.memory_space<vmem>>, vector<1x8x32xbf16>
    %398 = vector.shape_cast %397 : vector<1x8x32xbf16> to vector<8x32xbf16>
    %399 = vector.shape_cast %395 : vector<8x32xbf16> to vector<1x8x32xbf16>
    tpu.vector_store %arg4[%c0_157, %396, %c0_158], %399 {strides = array<i32>} : memref<2x64x32xbf16, #tpu.memory_space<vmem>>, vector<1x8x32xbf16>,
    %400 = vector.extract_strided_slice %388 {offsets = [8, 0], sizes = [8, 32], strides = [1, 1]} : vector<16x32xf32> to vector<8x32xf32>
    %401 = arith.truncf %400 : vector<8x32xf32> to vector<8x32xbf16>
    %c1_159 = arith.constant 1 : index
    %402 = arith.index_cast %393 : i32 to index
    %c0_160 = arith.constant 0 : index
    %403 = vector.load %arg4[%c1_159, %402, %c0_160] : memref<2x64x32xbf16, #tpu.memory_space<vmem>>, vector<1x8x32xbf16>
    %404 = vector.shape_cast %403 : vector<1x8x32xbf16> to vector<8x32xbf16>
    %405 = vector.shape_cast %401 : vector<8x32xbf16> to vector<1x8x32xbf16>
    tpu.vector_store %arg4[%c1_159, %402, %c0_160], %405 {strides = array<i32>} : memref<2x64x32xbf16, #tpu.memory_space<vmem>>, vector<1x8x32xbf16>,
    %c6_i32_161 = arith.constant 6 : i32
    %406 = arith.truncf %388 : vector<16x32xf32> to vector<16x32xbf16>
    %cst_162 = arith.constant dense<0.000000e+00> : vector<16x256xf32>
    %407 = tpu.matmul %406, %143, %cst_162 {dimension_numbers = #tpu.dot_dimension_numbers<[1], [0], [0], [1], [0, 0, 1, 1], [], []>} : vector<16x32xbf16>, vector<32x256xbf16>, vector<16x256xf32> -> vector<16x256xf32>
    %408 = vector.extract_strided_slice %407 {offsets = [0, 0], sizes = [16, 128], strides = [1, 1]} : vector<16x256xf32> to vector<16x128xf32>
    %409 = vector.extract_strided_slice %407 {offsets = [0, 128], sizes = [16, 128], strides = [1, 1]} : vector<16x256xf32> to vector<16x128xf32>
    %410 = arith.select %146, %408, %409 : vector<16x128xi1>, vector<16x128xf32>
    %c16_i32_163 = arith.constant 16 : i32
    %411 = arith.muli %c6_i32_161, %c16_i32_163 : i32
    %412 = tpu.assume_multiple %411, 8 : i32
    %413 = arith.index_cast %412 : i32 to index
    %c0_164 = arith.constant 0 : index
    %414 = vector.load %arg6[%413, %c0_164] : memref<128x128xf32, #tpu.memory_space<vmem>>, vector<16x128xf32>
    %415 = arith.addf %414, %410 : vector<16x128xf32>
    %416 = vector.extract_strided_slice %415 {offsets = [0, 0], sizes = [16, 96], strides = [1, 1]} : vector<16x128xf32> to vector<16x96xf32>
    %417 = arith.negf %416 : vector<16x96xf32>
    %418 = math.exp %417 : vector<16x96xf32>
    %cst_165 = arith.constant 1.000000e+00 : f32
    %419 = vector.broadcast %cst_165 : f32 to vector<16x96xf32>
    %420 = arith.addf %419, %418 : vector<16x96xf32>
    %421 = arith.divf %419, %420 : vector<16x96xf32>
    %422 = vector.extract_strided_slice %421 {offsets = [0, 0], sizes = [16, 32], strides = [1, 1]} : vector<16x96xf32> to vector<16x32xf32>
    %423 = vector.extract_strided_slice %421 {offsets = [0, 32], sizes = [16, 32], strides = [1, 1]} : vector<16x96xf32> to vector<16x32xf32>
    %424 = vector.extract_strided_slice %421 {offsets = [0, 64], sizes = [16, 32], strides = [1, 1]} : vector<16x96xf32> to vector<16x32xf32>
    %425 = vector.extract_strided_slice %415 {offsets = [0, 96], sizes = [16, 32], strides = [1, 1]} : vector<16x128xf32> to vector<16x32xf32>
    %426 = math.tanh %425 : vector<16x32xf32>
    %427 = arith.mulf %423, %386 : vector<16x32xf32>
    %428 = arith.mulf %422, %426 : vector<16x32xf32>
    %429 = arith.addf %427, %428 : vector<16x32xf32>
    %430 = math.tanh %429 : vector<16x32xf32>
    %431 = arith.mulf %424, %430 : vector<16x32xf32>
    %c8_i32_166 = arith.constant 8 : i32
    %432 = arith.muli %c6_i32_161, %c8_i32_166 : i32
    %433 = tpu.assume_multiple %432, 8 : i32
    %c7_i32_167 = arith.constant 7 : i32
    %434 = arith.subi %c7_i32_167, %c6_i32_161 : i32
    %c8_i32_168 = arith.constant 8 : i32
    %435 = arith.muli %434, %c8_i32_168 : i32
    %436 = tpu.assume_multiple %435, 8 : i32
    %437 = vector.extract_strided_slice %431 {offsets = [0, 0], sizes = [8, 32], strides = [1, 1]} : vector<16x32xf32> to vector<8x32xf32>
    %438 = arith.truncf %437 : vector<8x32xf32> to vector<8x32xbf16>
    %c0_169 = arith.constant 0 : index
    %439 = arith.index_cast %433 : i32 to index
    %c0_170 = arith.constant 0 : index
    %440 = vector.load %arg4[%c0_169, %439, %c0_170] : memref<2x64x32xbf16, #tpu.memory_space<vmem>>, vector<1x8x32xbf16>
    %441 = vector.shape_cast %440 : vector<1x8x32xbf16> to vector<8x32xbf16>
    %442 = vector.shape_cast %438 : vector<8x32xbf16> to vector<1x8x32xbf16>
    tpu.vector_store %arg4[%c0_169, %439, %c0_170], %442 {strides = array<i32>} : memref<2x64x32xbf16, #tpu.memory_space<vmem>>, vector<1x8x32xbf16>,
    %443 = vector.extract_strided_slice %431 {offsets = [8, 0], sizes = [8, 32], strides = [1, 1]} : vector<16x32xf32> to vector<8x32xf32>
    %444 = arith.truncf %443 : vector<8x32xf32> to vector<8x32xbf16>
    %c1_171 = arith.constant 1 : index
    %445 = arith.index_cast %436 : i32 to index
    %c0_172 = arith.constant 0 : index
    %446 = vector.load %arg4[%c1_171, %445, %c0_172] : memref<2x64x32xbf16, #tpu.memory_space<vmem>>, vector<1x8x32xbf16>
    %447 = vector.shape_cast %446 : vector<1x8x32xbf16> to vector<8x32xbf16>
    %448 = vector.shape_cast %444 : vector<8x32xbf16> to vector<1x8x32xbf16>
    tpu.vector_store %arg4[%c1_171, %445, %c0_172], %448 {strides = array<i32>} : memref<2x64x32xbf16, #tpu.memory_space<vmem>>, vector<1x8x32xbf16>,
    %c7_i32_173 = arith.constant 7 : i32
    %449 = arith.truncf %431 : vector<16x32xf32> to vector<16x32xbf16>
    %cst_174 = arith.constant dense<0.000000e+00> : vector<16x256xf32>
    %450 = tpu.matmul %449, %143, %cst_174 {dimension_numbers = #tpu.dot_dimension_numbers<[1], [0], [0], [1], [0, 0, 1, 1], [], []>} : vector<16x32xbf16>, vector<32x256xbf16>, vector<16x256xf32> -> vector<16x256xf32>
    %451 = vector.extract_strided_slice %450 {offsets = [0, 0], sizes = [16, 128], strides = [1, 1]} : vector<16x256xf32> to vector<16x128xf32>
    %452 = vector.extract_strided_slice %450 {offsets = [0, 128], sizes = [16, 128], strides = [1, 1]} : vector<16x256xf32> to vector<16x128xf32>
    %453 = arith.select %146, %451, %452 : vector<16x128xi1>, vector<16x128xf32>
    %c16_i32_175 = arith.constant 16 : i32
    %454 = arith.muli %c7_i32_173, %c16_i32_175 : i32
    %455 = tpu.assume_multiple %454, 8 : i32
    %456 = arith.index_cast %455 : i32 to index
    %c0_176 = arith.constant 0 : index
    %457 = vector.load %arg6[%456, %c0_176] : memref<128x128xf32, #tpu.memory_space<vmem>>, vector<16x128xf32>
    %458 = arith.addf %457, %453 : vector<16x128xf32>
    %459 = vector.extract_strided_slice %458 {offsets = [0, 0], sizes = [16, 96], strides = [1, 1]} : vector<16x128xf32> to vector<16x96xf32>
    %460 = arith.negf %459 : vector<16x96xf32>
    %461 = math.exp %460 : vector<16x96xf32>
    %cst_177 = arith.constant 1.000000e+00 : f32
    %462 = vector.broadcast %cst_177 : f32 to vector<16x96xf32>
    %463 = arith.addf %462, %461 : vector<16x96xf32>
    %464 = arith.divf %462, %463 : vector<16x96xf32>
    %465 = vector.extract_strided_slice %464 {offsets = [0, 0], sizes = [16, 32], strides = [1, 1]} : vector<16x96xf32> to vector<16x32xf32>
    %466 = vector.extract_strided_slice %464 {offsets = [0, 32], sizes = [16, 32], strides = [1, 1]} : vector<16x96xf32> to vector<16x32xf32>
    %467 = vector.extract_strided_slice %464 {offsets = [0, 64], sizes = [16, 32], strides = [1, 1]} : vector<16x96xf32> to vector<16x32xf32>
    %468 = vector.extract_strided_slice %458 {offsets = [0, 96], sizes = [16, 32], strides = [1, 1]} : vector<16x128xf32> to vector<16x32xf32>
    %469 = math.tanh %468 : vector<16x32xf32>
    %470 = arith.mulf %466, %429 : vector<16x32xf32>
    %471 = arith.mulf %465, %469 : vector<16x32xf32>
    %472 = arith.addf %470, %471 : vector<16x32xf32>
    %473 = math.tanh %472 : vector<16x32xf32>
    %474 = arith.mulf %467, %473 : vector<16x32xf32>
    %c8_i32_178 = arith.constant 8 : i32
    %475 = arith.muli %c7_i32_173, %c8_i32_178 : i32
    %476 = tpu.assume_multiple %475, 8 : i32
    %c7_i32_179 = arith.constant 7 : i32
    %477 = arith.subi %c7_i32_179, %c7_i32_173 : i32
    %c8_i32_180 = arith.constant 8 : i32
    %478 = arith.muli %477, %c8_i32_180 : i32
    %479 = tpu.assume_multiple %478, 8 : i32
    %480 = vector.extract_strided_slice %474 {offsets = [0, 0], sizes = [8, 32], strides = [1, 1]} : vector<16x32xf32> to vector<8x32xf32>
    %481 = arith.truncf %480 : vector<8x32xf32> to vector<8x32xbf16>
    %c0_181 = arith.constant 0 : index
    %482 = arith.index_cast %476 : i32 to index
    %c0_182 = arith.constant 0 : index
    %483 = vector.load %arg4[%c0_181, %482, %c0_182] : memref<2x64x32xbf16, #tpu.memory_space<vmem>>, vector<1x8x32xbf16>
    %484 = vector.shape_cast %483 : vector<1x8x32xbf16> to vector<8x32xbf16>
    %485 = vector.shape_cast %481 : vector<8x32xbf16> to vector<1x8x32xbf16>
    tpu.vector_store %arg4[%c0_181, %482, %c0_182], %485 {strides = array<i32>} : memref<2x64x32xbf16, #tpu.memory_space<vmem>>, vector<1x8x32xbf16>,
    %486 = vector.extract_strided_slice %474 {offsets = [8, 0], sizes = [8, 32], strides = [1, 1]} : vector<16x32xf32> to vector<8x32xf32>
    %487 = arith.truncf %486 : vector<8x32xf32> to vector<8x32xbf16>
    %c1_183 = arith.constant 1 : index
    %488 = arith.index_cast %479 : i32 to index
    %c0_184 = arith.constant 0 : index
    %489 = vector.load %arg4[%c1_183, %488, %c0_184] : memref<2x64x32xbf16, #tpu.memory_space<vmem>>, vector<1x8x32xbf16>
    %490 = vector.shape_cast %489 : vector<1x8x32xbf16> to vector<8x32xbf16>
    %491 = vector.shape_cast %487 : vector<8x32xbf16> to vector<1x8x32xbf16>
    tpu.vector_store %arg4[%c1_183, %488, %c0_184], %491 {strides = array<i32>} : memref<2x64x32xbf16, #tpu.memory_space<vmem>>, vector<1x8x32xbf16>,
    %c8_i32_185 = arith.constant 8 : i32
    return
  }
}

</mosaic_0001>

<llo_original>
// kernel: forward.4
$region0: #{forward.4}
  #allocation0 [shape = 'u32[]', space=smem, size = 0x4, offset = 0x4, fixed_abs, tag = 'smem constant byte address 0x4 - core index']
  #allocation1 [shape = 'u32[144,128]{1,0:T(1,128)}', space=vmem, size = 0x12000, scoped, tag = 'internal scratch']
  #allocation2 [shape = 'f32[64,256]{1,0:T(8,128)}', space=vmem, size = 0x10000, scoped, tag = 'scratch operand']
  #allocation3 [shape = 'f32[128,128]{1,0:T(8,128)}', space=vmem, size = 0x10000, scoped, tag = 'scratch operand']
  %s0 = inlined_call_operand.vmem [shape: bf16[2,64,32], index: 0, kind: input, shape index: {}]
  %s1 = inlined_call_operand.vmem [shape: bf16[2,32,256], index: 1, kind: input, shape index: {}]
  %s2 = inlined_call_operand.vmem [shape: f32[1,256], index: 2, kind: input, shape index: {}]
  %s3 = inlined_call_operand.vmem [shape: bf16[32,256], index: 3, kind: input, shape index: {}]
  %s4 = inlined_call_operand.vmem [shape: bf16[2,64,32], index: 4, kind: output, shape index: {}]
  %s5 = sld [smem:[#allocation0]]
  $region26: #{forward.4} parent=0
    _
  %s7 = ssub.s32 1, %s5
  %s8 = scalar_select 0, %s7, %s5
  // Predicated region
  $region2: #{forward.4} parent=0 // pred_check
    _
  $region3: #{forward.4} parent=0 // pred_check_branch
    %10 = sbr.rel (0) target = $region5
  $region4: #{forward.4} parent=0 // pred_region
    _
  $region5: #{forward.4} parent=0 // pred_fallthru
    _
  // Predicated region
  $region6: #{forward.4} parent=0 // pred_check
    _
  $region7: #{forward.4} parent=0 // pred_check_branch
    %12 = sbr.rel (0) target = $region9
  $region8: #{forward.4} parent=0 // pred_region
    _
  $region9: #{forward.4} parent=0 // pred_fallthru
    _
  // Predicated region
  $region10: #{forward.4} parent=0 // pred_check
    _
  $region11: #{forward.4} parent=0 // pred_check_branch
    %14 = sbr.rel (0) target = $region13
  $region12: #{forward.4} parent=0 // pred_region
    _
  $region13: #{forward.4} parent=0 // pred_fallthru
    _
  // Predicated region
  $region14: #{forward.4} parent=0 // pred_check
    _
  $region15: #{forward.4} parent=0 // pred_check_branch
    %16 = sbr.rel (0) target = $region17
  $region16: #{forward.4} parent=0 // pred_region
    _
  $region17: #{forward.4} parent=0 // pred_fallthru
    _
  %v18 = vld [vmem:[%s0] sm:$0xf]
  %v19 = vld [vmem:[%s0 + $0x4] sm:$0xf]
  %v20 = vld [vmem:[%s0 + $0x8] sm:$0xf]
  %v21 = vld [vmem:[%s0 + $0xc] sm:$0xf]
  %v22 = vld [vmem:[%s0 + $0x10] sm:$0xf]
  %v23 = vld [vmem:[%s0 + $0x14] sm:$0xf]
  %v24 = vld [vmem:[%s0 + $0x18] sm:$0xf]
  %v25 = vld [vmem:[%s0 + $0x1c] sm:$0xf]
  %v26 = vld [vmem:[%s1] sm:$0xff]
  %v27 = vld [vmem:[%s1 + $0x8] sm:$0xff]
  %v28 = vld [vmem:[%s1 + $0x10] sm:$0xff]
  %v29 = vld [vmem:[%s1 + $0x18] sm:$0xff]
  %s30 = scalar_lea.vmem %s0, 32
  %v31 = vld [vmem:[%s30] sm:$0xf]
  %v32 = vld [vmem:[%s30 + $0x4] sm:$0xf]
  %v33 = vld [vmem:[%s30 + $0x8] sm:$0xf]
  %v34 = vld [vmem:[%s30 + $0xc] sm:$0xf]
  %v35 = vld [vmem:[%s30 + $0x10] sm:$0xf]
  %v36 = vld [vmem:[%s30 + $0x14] sm:$0xf]
  %v37 = vld [vmem:[%s30 + $0x18] sm:$0xf]
  %v38 = vld [vmem:[%s30 + $0x1c] sm:$0xf]
  %s39 = scalar_lea.vmem %s1, 32
  %v40 = vld [vmem:[%s39] sm:$0xff]
  %v41 = vld [vmem:[%s39 + $0x8] sm:$0xff]
  %v42 = vld [vmem:[%s39 + $0x10] sm:$0xff]
  %v43 = vld [vmem:[%s39 + $0x18] sm:$0xff]
  %v52 = vunpack.c.l.b16 %v31
  %v53 = vunpack.c.l.b16 %v32
  %v54 = vunpack.c.l.b16 %v33
  %v55 = vunpack.c.l.b16 %v34
  %v56 = vunpack.c.l.b16 %v35
  %v57 = vunpack.c.l.b16 %v36
  %v58 = vunpack.c.l.b16 %v37
  %v59 = vunpack.c.l.b16 %v38
  %v60 = vpack.c.b16 %v53, %v52
  %v61 = vpack.c.b16 %v55, %v54
  %v62 = vpack.c.b16 %v57, %v56
  %v63 = vpack.c.b16 %v59, %v58
  %v68 = vunpack.c.l.b16 %v40
  %v69 = vunpack.c.h.b16 %v40
  %v70 = vunpack.c.l.b16 %v41
  %v71 = vunpack.c.h.b16 %v41
  %v72 = vunpack.c.l.b16 %v42
  %v73 = vunpack.c.h.b16 %v42
  %v74 = vunpack.c.l.b16 %v43
  %v75 = vunpack.c.h.b16 %v43
  %v76 = vpack.c.b16 %v70, %v68
  %v77 = vpack.c.b16 %v71, %v69
  %v78 = vpack.c.b16 %v74, %v72
  %v79 = vpack.c.b16 %v75, %v73
  %vm84 = vcmask 261120
  %v86 = vsel %vm84, %v60, 0
  %v89 = vsel %vm84, %v61, 0
  %v92 = vsel %vm84, %v62, 0
  %v95 = vsel %vm84, %v63, 0
  %97 = vmatprep.subr.bf16.mxu0 %v77
  %98 = vmatpush1.bf16.msra.mxu0 %v76
  %99 = vmatprep.subr.bf16.mxu0 %v79
  %100 = vmatpush1.bf16.msra.mxu0 %v78
  %101 = vmatprep.subr.bf16.mxu0 0
  %102 = vmatpush1.bf16.msra.mxu0 0
  %103 = vmatprep.subr.bf16.mxu0 0
  %104 = vmatpush1.bf16.msra.mxu0 0
  %105 = vmatprep.subr.bf16.mxu0 0
  %106 = vmatpush1.bf16.msra.mxu0 0
  %107 = vmatprep.subr.bf16.mxu0 0
  %108 = vmatpush1.bf16.msra.mxu0 0
  %109 = vmatprep.subr.bf16.mxu0 0
  %110 = vmatpush1.bf16.msra.mxu0 0
  %111 = vmatprep.subr.bf16.mxu0 0
  %112 = vmatpush1.bf16.msra.mxu0 0
  %113 = vmatprep.subr.bf16.mxu0 0
  %114 = vmatpush1.bf16.msra.mxu0 0
  %115 = vmatprep.subr.bf16.mxu0 0
  %116 = vmatpush1.bf16.msra.mxu0 0
  %117 = vmatprep.subr.bf16.mxu0 0
  %118 = vmatpush1.bf16.msra.mxu0 0
  %119 = vmatprep.subr.bf16.mxu0 0
  %120 = vmatpush1.bf16.msra.mxu0 0
  %121 = vmatprep.subr.bf16.mxu0 0
  %122 = vmatpush1.bf16.msra.mxu0 0
  %123 = vmatprep.subr.bf16.mxu0 0
  %124 = vmatpush1.bf16.msra.mxu0 0
  %125 = vmatprep.subr.bf16.mxu0 0
  %126 = vmatpush1.bf16.msra.mxu0 0
  %127 = vmatprep.subr.bf16.mxu0 0
  %128 = vmatpush1.bf16.msra.mxu0 0
  %129 = vmatprep.mubr.bf16.mxu0 0
  %130 = vmatmul.mubr.bf16.gmra.mrb[0].mxu0 %v86
  %v131 = vpop.f32.mrb[0].mxu0
  %v132 = vadd.f32 0.0, %v131
  %v133 = vpop.f32.mrb[0].mxu0
  %v134 = vadd.f32 0.0, %v133
  %v135 = vpop.f32.mrb[0].mxu0
  %v136 = vadd.f32 0.0, %v135
  %v137 = vpop.f32.mrb[0].mxu0
  %v138 = vadd.f32 0.0, %v137
  %139 = vmatprep.mubr.bf16.mxu0 0
  %140 = vmatmul.mubr.bf16.gmra.mrb[0].mxu0 %v89
  %v141 = vpop.f32.mrb[0].mxu0
  %v142 = vadd.f32 0.0, %v141
  %v143 = vpop.f32.mrb[0].mxu0
  %v144 = vadd.f32 0.0, %v143
  %v145 = vpop.f32.mrb[0].mxu0
  %v146 = vadd.f32 0.0, %v145
  %v147 = vpop.f32.mrb[0].mxu0
  %v148 = vadd.f32 0.0, %v147
  %149 = vmatprep.mubr.bf16.mxu0 0
  %150 = vmatmul.mubr.bf16.gmra.mrb[0].mxu0 %v92
  %v151 = vpop.f32.mrb[0].mxu0
  %v152 = vadd.f32 0.0, %v151
  %v153 = vpop.f32.mrb[0].mxu0
  %v154 = vadd.f32 0.0, %v153
  %v155 = vpop.f32.mrb[0].mxu0
  %v156 = vadd.f32 0.0, %v155
  %v157 = vpop.f32.mrb[0].mxu0
  %v158 = vadd.f32 0.0, %v157
  %159 = vmatprep.mubr.bf16.mxu0 0
  %160 = vmatmul.mubr.bf16.gmra.mrb[0].mxu0 %v95
  %v161 = vpop.f32.mrb[0].mxu0
  %v162 = vadd.f32 0.0, %v161
  %v163 = vpop.f32.mrb[0].mxu0
  %v164 = vadd.f32 0.0, %v163
  %v165 = vpop.f32.mrb[0].mxu0
  %v166 = vadd.f32 0.0, %v165
  %v167 = vpop.f32.mrb[0].mxu0
  %v168 = vadd.f32 0.0, %v167
  %169 = vdwg.mxu0
  %v178 = vunpack.c.l.b16 %v18
  %v179 = vunpack.c.l.b16 %v19
  %v180 = vunpack.c.l.b16 %v20
  %v181 = vunpack.c.l.b16 %v21
  %v182 = vunpack.c.l.b16 %v22
  %v183 = vunpack.c.l.b16 %v23
  %v184 = vunpack.c.l.b16 %v24
  %v185 = vunpack.c.l.b16 %v25
  %v186 = vpack.c.b16 %v179, %v178
  %v187 = vpack.c.b16 %v181, %v180
  %v188 = vpack.c.b16 %v183, %v182
  %v189 = vpack.c.b16 %v185, %v184
  %v194 = vunpack.c.l.b16 %v26
  %v195 = vunpack.c.h.b16 %v26
  %v196 = vunpack.c.l.b16 %v27
  %v197 = vunpack.c.h.b16 %v27
  %v198 = vunpack.c.l.b16 %v28
  %v199 = vunpack.c.h.b16 %v28
  %v200 = vunpack.c.l.b16 %v29
  %v201 = vunpack.c.h.b16 %v29
  %v202 = vpack.c.b16 %v196, %v194
  %v203 = vpack.c.b16 %v197, %v195
  %v204 = vpack.c.b16 %v200, %v198
  %v205 = vpack.c.b16 %v201, %v199
  %v211 = vsel %vm84, %v186, 0
  %v214 = vsel %vm84, %v187, 0
  %v217 = vsel %vm84, %v188, 0
  %v220 = vsel %vm84, %v189, 0
  %222 = vmatprep.subr.bf16.mxu0 %v203
  %223 = vmatpush1.bf16.msra.mxu0 %v202
  %224 = vmatprep.subr.bf16.mxu0 %v205
  %225 = vmatpush1.bf16.msra.mxu0 %v204
  %226 = vmatprep.subr.bf16.mxu0 0
  %227 = vmatpush1.bf16.msra.mxu0 0
  %228 = vmatprep.subr.bf16.mxu0 0
  %229 = vmatpush1.bf16.msra.mxu0 0
  %230 = vmatprep.subr.bf16.mxu0 0
  %231 = vmatpush1.bf16.msra.mxu0 0
  %232 = vmatprep.subr.bf16.mxu0 0
  %233 = vmatpush1.bf16.msra.mxu0 0
  %234 = vmatprep.subr.bf16.mxu0 0
  %235 = vmatpush1.bf16.msra.mxu0 0
  %236 = vmatprep.subr.bf16.mxu0 0
  %237 = vmatpush1.bf16.msra.mxu0 0
  %238 = vmatprep.subr.bf16.mxu0 0
  %239 = vmatpush1.bf16.msra.mxu0 0
  %240 = vmatprep.subr.bf16.mxu0 0
  %241 = vmatpush1.bf16.msra.mxu0 0
  %242 = vmatprep.subr.bf16.mxu0 0
  %243 = vmatpush1.bf16.msra.mxu0 0
  %244 = vmatprep.subr.bf16.mxu0 0
  %245 = vmatpush1.bf16.msra.mxu0 0
  %246 = vmatprep.subr.bf16.mxu0 0
  %247 = vmatpush1.bf16.msra.mxu0 0
  %248 = vmatprep.subr.bf16.mxu0 0
  %249 = vmatpush1.bf16.msra.mxu0 0
  %250 = vmatprep.subr.bf16.mxu0 0
  %251 = vmatpush1.bf16.msra.mxu0 0
  %252 = vmatprep.subr.bf16.mxu0 0
  %253 = vmatpush1.bf16.msra.mxu0 0
  %254 = vmatprep.mubr.bf16.mxu0 0
  %255 = vmatmul.mubr.bf16.gmra.mrb[0].mxu0 %v211
  %v256 = vpop.f32.mrb[0].mxu0
  %v257 = vadd.f32 %v132, %v256
  %v258 = vpop.f32.mrb[0].mxu0
  %v259 = vadd.f32 %v134, %v258
  %v260 = vpop.f32.mrb[0].mxu0
  %v261 = vadd.f32 %v136, %v260
  %v262 = vpop.f32.mrb[0].mxu0
  %v263 = vadd.f32 %v138, %v262
  %264 = vmatprep.mubr.bf16.mxu0 0
  %265 = vmatmul.mubr.bf16.gmra.mrb[0].mxu0 %v214
  %v266 = vpop.f32.mrb[0].mxu0
  %v267 = vadd.f32 %v142, %v266
  %v268 = vpop.f32.mrb[0].mxu0
  %v269 = vadd.f32 %v144, %v268
  %v270 = vpop.f32.mrb[0].mxu0
  %v271 = vadd.f32 %v146, %v270
  %v272 = vpop.f32.mrb[0].mxu0
  %v273 = vadd.f32 %v148, %v272
  %274 = vmatprep.mubr.bf16.mxu0 0
  %275 = vmatmul.mubr.bf16.gmra.mrb[0].mxu0 %v217
  %v276 = vpop.f32.mrb[0].mxu0
  %v277 = vadd.f32 %v152, %v276
  %v278 = vpop.f32.mrb[0].mxu0
  %v279 = vadd.f32 %v154, %v278
  %v280 = vpop.f32.mrb[0].mxu0
  %v281 = vadd.f32 %v156, %v280
  %v282 = vpop.f32.mrb[0].mxu0
  %v283 = vadd.f32 %v158, %v282
  %284 = vmatprep.mubr.bf16.mxu0 0
  %285 = vmatmul.mubr.bf16.gmra.mrb[0].mxu0 %v220
  %v286 = vpop.f32.mrb[0].mxu0
  %v287 = vadd.f32 %v162, %v286
  %v288 = vpop.f32.mrb[0].mxu0
  %v289 = vadd.f32 %v164, %v288
  %v290 = vpop.f32.mrb[0].mxu0
  %v291 = vadd.f32 %v166, %v290
  %v292 = vpop.f32.mrb[0].mxu0
  %v293 = vadd.f32 %v168, %v292
  %294 = vdwg.mxu0
  %v295 = vld [vmem:[%s2] sm:$0x3]
  %v297 = vlaneseq
  %v298 = vshrl.u32 %v297, 7
  %v299 = vsub.s32 0, %v298
  %v300 = vrot.slane %v295, %v299
  %v301 = vlaneseq
  %v302 = vshrl.u32 %v301, 7
  %v303 = vsub.s32 1, %v302
  %v304 = vrot.slane %v295, %v303
  %v307 = vadd.f32 %v257, %v300
  %v308 = vadd.f32 %v259, %v304
  %v309 = vadd.f32 %v261, %v300
  %v310 = vadd.f32 %v263, %v304
  %v311 = vadd.f32 %v267, %v300
  %v312 = vadd.f32 %v269, %v304
  %v313 = vadd.f32 %v271, %v300
  %v314 = vadd.f32 %v273, %v304
  %v315 = vadd.f32 %v277, %v300
  %v316 = vadd.f32 %v279, %v304
  %v317 = vadd.f32 %v281, %v300
  %v318 = vadd.f32 %v283, %v304
  %v319 = vadd.f32 %v287, %v300
  %v320 = vadd.f32 %v289, %v304
  %v321 = vadd.f32 %v291, %v300
  %v322 = vadd.f32 %v293, %v304
  %323 = vst [vmem:[#allocation2] sm:$0xff] %v307
  %324 = vst [vmem:[#allocation2 + $0x8] sm:$0xff] %v308
  %325 = vst [vmem:[#allocation2 + $0x10] sm:$0xff] %v309
  %326 = vst [vmem:[#allocation2 + $0x18] sm:$0xff] %v310
  %327 = vst [vmem:[#allocation2 + $0x20] sm:$0xff] %v311
  %328 = vst [vmem:[#allocation2 + $0x28] sm:$0xff] %v312
  %329 = vst [vmem:[#allocation2 + $0x30] sm:$0xff] %v313
  %330 = vst [vmem:[#allocation2 + $0x38] sm:$0xff] %v314
  %331 = vst [vmem:[#allocation2 + $0x40] sm:$0xff] %v315
  %332 = vst [vmem:[#allocation2 + $0x48] sm:$0xff] %v316
  %333 = vst [vmem:[#allocation2 + $0x50] sm:$0xff] %v317
  %334 = vst [vmem:[#allocation2 + $0x58] sm:$0xff] %v318
  %335 = vst [vmem:[#allocation2 + $0x60] sm:$0xff] %v319
  %336 = vst [vmem:[#allocation2 + $0x68] sm:$0xff] %v320
  %337 = vst [vmem:[#allocation2 + $0x70] sm:$0xff] %v321
  %338 = vst [vmem:[#allocation2 + $0x78] sm:$0xff] %v322
  %s339 = smul.u32 0, 2
  %s340 = smul.addr %s339, 8
  %s341 = scalar_lea.vmem [#allocation2], %s340
  %v342 = vld [vmem:[%s341] sm:$0xff]
  %343 = vst [vmem:[#allocation3] sm:$0xff] %v342
  %s344 = smul.u32 7, 2
  %s345 = smul.addr %s344, 8
  %s346 = scalar_lea.vmem [#allocation2], %s345
  %v347 = vld [vmem:[%s346 + $0x8] sm:$0xff]
  %s348 = sadd.s32 0, 8
  %s349 = scalar_lea.vmem [#allocation3], %s348
  %350 = vst [vmem:[%s349] sm:$0xff] %v347
  %s351 = smul.u32 1, 2
  %s352 = smul.addr %s351, 8
  %s353 = scalar_lea.vmem [#allocation2], %s352
  %v354 = vld [vmem:[%s353] sm:$0xff]
  %s355 = scalar_lea.vmem [#allocation3], 16
  %356 = vst [vmem:[%s355] sm:$0xff] %v354
  %s357 = smul.u32 6, 2
  %s358 = smul.addr %s357, 8
  %s359 = scalar_lea.vmem [#allocation2], %s358
  %v360 = vld [vmem:[%s359 + $0x8] sm:$0xff]
  %s361 = sadd.s32 16, 8
  %s362 = scalar_lea.vmem [#allocation3], %s361
  %363 = vst [vmem:[%s362] sm:$0xff] %v360
  %s364 = smul.u32 2, 2
  %s365 = smul.addr %s364, 8
  %s366 = scalar_lea.vmem [#allocation2], %s365
  %v367 = vld [vmem:[%s366] sm:$0xff]
  %s368 = scalar_lea.vmem [#allocation3], 32
  %369 = vst [vmem:[%s368] sm:$0xff] %v367
  %s370 = smul.u32 5, 2
  %s371 = smul.addr %s370, 8
  %s372 = scalar_lea.vmem [#allocation2], %s371
  %v373 = vld [vmem:[%s372 + $0x8] sm:$0xff]
  %s374 = sadd.s32 32, 8
  %s375 = scalar_lea.vmem [#allocation3], %s374
  %376 = vst [vmem:[%s375] sm:$0xff] %v373
  %s377 = smul.u32 3, 2
  %s378 = smul.addr %s377, 8
  %s379 = scalar_lea.vmem [#allocation2], %s378
  %v380 = vld [vmem:[%s379] sm:$0xff]
  %s381 = scalar_lea.vmem [#allocation3], 48
  %382 = vst [vmem:[%s381] sm:$0xff] %v380
  %s383 = smul.u32 4, 2
  %s384 = smul.addr %s383, 8
  %s385 = scalar_lea.vmem [#allocation2], %s384
  %v386 = vld [vmem:[%s385 + $0x8] sm:$0xff]
  %s387 = sadd.s32 48, 8
  %s388 = scalar_lea.vmem [#allocation3], %s387
  %389 = vst [vmem:[%s388] sm:$0xff] %v386
  %v390 = vld [vmem:[%s385] sm:$0xff]
  %s391 = scalar_lea.vmem [#allocation3], 64
  %392 = vst [vmem:[%s391] sm:$0xff] %v390
  %v393 = vld [vmem:[%s379 + $0x8] sm:$0xff]
  %s394 = sadd.s32 64, 8
  %s395 = scalar_lea.vmem [#allocation3], %s394
  %396 = vst [vmem:[%s395] sm:$0xff] %v393
  %v397 = vld [vmem:[%s372] sm:$0xff]
  %s398 = scalar_lea.vmem [#allocation3], 80
  %399 = vst [vmem:[%s398] sm:$0xff] %v397
  %v400 = vld [vmem:[%s366 + $0x8] sm:$0xff]
  %s401 = sadd.s32 80, 8
  %s402 = scalar_lea.vmem [#allocation3], %s401
  %403 = vst [vmem:[%s402] sm:$0xff] %v400
  %v404 = vld [vmem:[%s359] sm:$0xff]
  %s405 = scalar_lea.vmem [#allocation3], 96
  %406 = vst [vmem:[%s405] sm:$0xff] %v404
  %v407 = vld [vmem:[%s353 + $0x8] sm:$0xff]
  %s408 = sadd.s32 96, 8
  %s409 = scalar_lea.vmem [#allocation3], %s408
  %410 = vst [vmem:[%s409] sm:$0xff] %v407
  %v411 = vld [vmem:[%s346] sm:$0xff]
  %s412 = scalar_lea.vmem [#allocation3], 112
  %413 = vst [vmem:[%s412] sm:$0xff] %v411
  %v414 = vld [vmem:[%s341 + $0x8] sm:$0xff]
  %s415 = sadd.s32 112, 8
  %s416 = scalar_lea.vmem [#allocation3], %s415
  %417 = vst [vmem:[%s416] sm:$0xff] %v414
  %v418 = vld [vmem:[%s3] sm:$0xff]
  %v419 = vld [vmem:[%s3 + $0x8] sm:$0xff]
  %v420 = vld [vmem:[%s3 + $0x10] sm:$0xff]
  %v421 = vld [vmem:[%s3 + $0x18] sm:$0xff]
  %v422 = vlaneseq
  %v423 = vshrl.u32 %v422, 7
  %v424 = vadd.s32 %v423, 8
  %vm425 = vcmp.lt.s32.totalorder %v423, 8
  %vm426 = vcmp.lt.s32.totalorder %v424, 8
  %v431 = vunpack.c.l.b16 %v418
  %v432 = vunpack.c.h.b16 %v418
  %v433 = vunpack.c.l.b16 %v419
  %v434 = vunpack.c.h.b16 %v419
  %v435 = vunpack.c.l.b16 %v420
  %v436 = vunpack.c.h.b16 %v420
  %v437 = vunpack.c.l.b16 %v421
  %v438 = vunpack.c.h.b16 %v421
  %v439 = vpack.c.b16 %v433, %v431
  %v440 = vpack.c.b16 %v434, %v432
  %v441 = vpack.c.b16 %v437, %v435
  %v442 = vpack.c.b16 %v438, %v436
  %v448 = vsel %vm84, 0, 0
  %450 = vmatprep.subr.bf16.mxu0 %v440
  %451 = vmatpush1.bf16.msra.mxu0 %v439
  %452 = vmatprep.subr.bf16.mxu0 %v442
  %453 = vmatpush1.bf16.msra.mxu0 %v441
  %454 = vmatprep.subr.bf16.mxu0 0
  %455 = vmatpush1.bf16.msra.mxu0 0
  %456 = vmatprep.subr.bf16.mxu0 0
  %457 = vmatpush1.bf16.msra.mxu0 0
  %458 = vmatprep.subr.bf16.mxu0 0
  %459 = vmatpush1.bf16.msra.mxu0 0
  %460 = vmatprep.subr.bf16.mxu0 0
  %461 = vmatpush1.bf16.msra.mxu0 0
  %462 = vmatprep.subr.bf16.mxu0 0
  %463 = vmatpush1.bf16.msra.mxu0 0
  %464 = vmatprep.subr.bf16.mxu0 0
  %465 = vmatpush1.bf16.msra.mxu0 0
  %466 = vmatprep.subr.bf16.mxu0 0
  %467 = vmatpush1.bf16.msra.mxu0 0
  %468 = vmatprep.subr.bf16.mxu0 0
  %469 = vmatpush1.bf16.msra.mxu0 0
  %470 = vmatprep.subr.bf16.mxu0 0
  %471 = vmatpush1.bf16.msra.mxu0 0
  %472 = vmatprep.subr.bf16.mxu0 0
  %473 = vmatpush1.bf16.msra.mxu0 0
  %474 = vmatprep.subr.bf16.mxu0 0
  %475 = vmatpush1.bf16.msra.mxu0 0
  %476 = vmatprep.subr.bf16.mxu0 0
  %477 = vmatpush1.bf16.msra.mxu0 0
  %478 = vmatprep.subr.bf16.mxu0 0
  %479 = vmatpush1.bf16.msra.mxu0 0
  %480 = vmatprep.subr.bf16.mxu0 0
  %481 = vmatpush1.bf16.msra.mxu0 0
  %482 = vmatprep.mubr.bf16.mxu0 0
  %483 = vmatmul.mubr.bf16.gmra.mrb[0].mxu0 %v448
  %v484 = vpop.f32.mrb[0].mxu0
  %v485 = vadd.f32 0.0, %v484
  %v486 = vpop.f32.mrb[0].mxu0
  %v487 = vadd.f32 0.0, %v486
  %v488 = vpop.f32.mrb[0].mxu0
  %v489 = vadd.f32 0.0, %v488
  %v490 = vpop.f32.mrb[0].mxu0
  %v491 = vadd.f32 0.0, %v490
  %492 = vdwg.mxu0
  %v493 = vsel %vm425, %v485, %v487
  %v494 = vsel %vm426, %v489, %v491
  %v495 = vld [vmem:[#allocation3] sm:$0xff]
  %v496 = vld [vmem:[#allocation3 + $0x8] sm:$0xff]
  %v497 = vadd.f32 %v495, %v493
  %v498 = vadd.f32 %v496, %v494
  %v499 = vxor.u32 %v497, 2147483648
  %v500 = vxor.u32 %v498, 2147483648
  %v501 = vmul.f32 %v499, 1.442695
  %v502 = vpow.pop %v501
  %v503 = vmul.f32 %v500, 1.442695
  %v504 = vpow.pop %v503
  %v505 = vadd.f32 %v502, 1.0
  %v506 = vadd.f32 %v504, 1.0
  %v507 = vrcp.pop %v505
  %v508 = vmul.f32 1.0, %v507
  %v509 = vrcp.pop %v506
  %v510 = vmul.f32 1.0, %v509
  %v511 = vtanh.pop %v497
  %v512 = vtanh.pop %v498
  %v513 = vmul.f32 %v508, 0.0
  %v514 = vmul.f32 %v510, 0.0
  %517 = vrot.lane.b32.xlu0 %v511, 32
  %v518 = vpop.permute.xlu0 %517
  %519 = vrot.lane.b32.xlu0 %v512, 32
  %v520 = vpop.permute.xlu0 %519
  %v523 = vmul.f32 %v508, %v518
  %v524 = vmul.f32 %v510, %v520
  %527 = vrot.lane.b32.xlu0 %v523, 32
  %v528 = vpop.permute.xlu0 %527
  %529 = vrot.lane.b32.xlu0 %v524, 32
  %v530 = vpop.permute.xlu0 %529
  %v533 = vadd.f32 %v513, %v528
  %v534 = vadd.f32 %v514, %v530
  %v535 = vtanh.pop %v533
  %v536 = vtanh.pop %v534
  %539 = vrot.lane.b32.xlu0 %v535, 32
  %v540 = vpop.permute.xlu0 %539
  %541 = vrot.lane.b32.xlu0 %v536, 32
  %v542 = vpop.permute.xlu0 %541
  %v545 = vmul.f32 %v508, %v540
  %v546 = vmul.f32 %v510, %v542
  %v547 = vpack.c.bf16 %v545, %v545
  %v549 = vunpack.c.l.b16 %v547
  %v550 = vpack.c.b16 %v549, %v549
  %551 = vrot.lane.b32.xlu0 %v550, 64
  %v552 = vpop.permute.xlu0 %551
  %vm554 = vcmask 257024
  %555 = vst.msk [vmem:[%s4] sm:$0xf] %vm554, %v552
  %v556 = vpack.c.bf16 %v546, %v546
  %v558 = vunpack.c.l.b16 %v556
  %v559 = vpack.c.b16 %v558, %v558
  %560 = vrot.lane.b32.xlu0 %v559, 64
  %v561 = vpop.permute.xlu0 %560
  %s563 = sadd.s32 7, 8
  %s564 = smul.addr %s563, 4
  %s565 = scalar_lea.vmem %s4, %s564
  %566 = vst.msk [vmem:[%s565] sm:$0xf] %vm554, %v561
  %v567 = vpack.c.bf16 %v546, %v545
  %569 = vrot.lane.b32.xlu0 %v567, 64
  %v570 = vpop.permute.xlu0 %569
  %v572 = vsel %vm84, %v570, 0
  %574 = vmatprep.subr.bf16.mxu0 %v440
  %575 = vmatpush1.bf16.msra.mxu0 %v439
  %576 = vmatprep.subr.bf16.mxu0 %v442
  %577 = vmatpush1.bf16.msra.mxu0 %v441
  %578 = vmatprep.subr.bf16.mxu0 0
  %579 = vmatpush1.bf16.msra.mxu0 0
  %580 = vmatprep.subr.bf16.mxu0 0
  %581 = vmatpush1.bf16.msra.mxu0 0
  %582 = vmatprep.subr.bf16.mxu0 0
  %583 = vmatpush1.bf16.msra.mxu0 0
  %584 = vmatprep.subr.bf16.mxu0 0
  %585 = vmatpush1.bf16.msra.mxu0 0
  %586 = vmatprep.subr.bf16.mxu0 0
  %587 = vmatpush1.bf16.msra.mxu0 0
  %588 = vmatprep.subr.bf16.mxu0 0
  %589 = vmatpush1.bf16.msra.mxu0 0
  %590 = vmatprep.subr.bf16.mxu0 0
  %591 = vmatpush1.bf16.msra.mxu0 0
  %592 = vmatprep.subr.bf16.mxu0 0
  %593 = vmatpush1.bf16.msra.mxu0 0
  %594 = vmatprep.subr.bf16.mxu0 0
  %595 = vmatpush1.bf16.msra.mxu0 0
  %596 = vmatprep.subr.bf16.mxu0 0
  %597 = vmatpush1.bf16.msra.mxu0 0
  %598 = vmatprep.subr.bf16.mxu0 0
  %599 = vmatpush1.bf16.msra.mxu0 0
  %600 = vmatprep.subr.bf16.mxu0 0
  %601 = vmatpush1.bf16.msra.mxu0 0
  %602 = vmatprep.subr.bf16.mxu0 0
  %603 = vmatpush1.bf16.msra.mxu0 0
  %604 = vmatprep.subr.bf16.mxu0 0
  %605 = vmatpush1.bf16.msra.mxu0 0
  %606 = vmatprep.mubr.bf16.mxu0 0
  %607 = vmatmul.mubr.bf16.gmra.mrb[0].mxu0 %v572
  %v608 = vpop.f32.mrb[0].mxu0
  %v609 = vadd.f32 0.0, %v608
  %v610 = vpop.f32.mrb[0].mxu0
  %v611 = vadd.f32 0.0, %v610
  %v612 = vpop.f32.mrb[0].mxu0
  %v613 = vadd.f32 0.0, %v612
  %v614 = vpop.f32.mrb[0].mxu0
  %v615 = vadd.f32 0.0, %v614
  %616 = vdwg.mxu0
  %v617 = vsel %vm425, %v609, %v611
  %v618 = vsel %vm426, %v613, %v615
  %v619 = vld [vmem:[%s355] sm:$0xff]
  %v620 = vld [vmem:[%s355 + $0x8] sm:$0xff]
  %v621 = vadd.f32 %v619, %v617
  %v622 = vadd.f32 %v620, %v618
  %v623 = vxor.u32 %v621, 2147483648
  %v624 = vxor.u32 %v622, 2147483648
  %v625 = vmul.f32 %v623, 1.442695
  %v626 = vpow.pop %v625
  %v627 = vmul.f32 %v624, 1.442695
  %v628 = vpow.pop %v627
  %v629 = vadd.f32 %v626, 1.0
  %v630 = vadd.f32 %v628, 1.0
  %v631 = vrcp.pop %v629
  %v632 = vmul.f32 1.0, %v631
  %v633 = vrcp.pop %v630
  %v634 = vmul.f32 1.0, %v633
  %v635 = vtanh.pop %v621
  %v636 = vtanh.pop %v622
  %v637 = vmul.f32 %v632, %v533
  %v638 = vmul.f32 %v634, %v534
  %641 = vrot.lane.b32.xlu0 %v635, 32
  %v642 = vpop.permute.xlu0 %641
  %643 = vrot.lane.b32.xlu0 %v636, 32
  %v644 = vpop.permute.xlu0 %643
  %v647 = vmul.f32 %v632, %v642
  %v648 = vmul.f32 %v634, %v644
  %651 = vrot.lane.b32.xlu0 %v647, 32
  %v652 = vpop.permute.xlu0 %651
  %653 = vrot.lane.b32.xlu0 %v648, 32
  %v654 = vpop.permute.xlu0 %653
  %v657 = vadd.f32 %v637, %v652
  %v658 = vadd.f32 %v638, %v654
  %v659 = vtanh.pop %v657
  %v660 = vtanh.pop %v658
  %663 = vrot.lane.b32.xlu0 %v659, 32
  %v664 = vpop.permute.xlu0 %663
  %665 = vrot.lane.b32.xlu0 %v660, 32
  %v666 = vpop.permute.xlu0 %665
  %v669 = vmul.f32 %v632, %v664
  %v670 = vmul.f32 %v634, %v666
  %v671 = vpack.c.bf16 %v669, %v669
  %v673 = vunpack.c.l.b16 %v671
  %v674 = vpack.c.b16 %v673, %v673
  %675 = vrot.lane.b32.xlu0 %v674, 64
  %v676 = vpop.permute.xlu0 %675
  %s678 = scalar_lea.vmem %s4, 4
  %679 = vst.msk [vmem:[%s678] sm:$0xf] %vm554, %v676
  %v680 = vpack.c.bf16 %v670, %v670
  %v682 = vunpack.c.l.b16 %v680
  %v683 = vpack.c.b16 %v682, %v682
  %684 = vrot.lane.b32.xlu0 %v683, 64
  %v685 = vpop.permute.xlu0 %684
  %s687 = sadd.s32 6, 8
  %s688 = smul.addr %s687, 4
  %s689 = scalar_lea.vmem %s4, %s688
  %690 = vst.msk [vmem:[%s689] sm:$0xf] %vm554, %v685
  %v691 = vpack.c.bf16 %v670, %v669
  %693 = vrot.lane.b32.xlu0 %v691, 64
  %v694 = vpop.permute.xlu0 %693
  %v696 = vsel %vm84, %v694, 0
  %698 = vmatprep.subr.bf16.mxu0 %v440
  %699 = vmatpush1.bf16.msra.mxu0 %v439
  %700 = vmatprep.subr.bf16.mxu0 %v442
  %701 = vmatpush1.bf16.msra.mxu0 %v441
  %702 = vmatprep.subr.bf16.mxu0 0
  %703 = vmatpush1.bf16.msra.mxu0 0
  %704 = vmatprep.subr.bf16.mxu0 0
  %705 = vmatpush1.bf16.msra.mxu0 0
  %706 = vmatprep.subr.bf16.mxu0 0
  %707 = vmatpush1.bf16.msra.mxu0 0
  %708 = vmatprep.subr.bf16.mxu0 0
  %709 = vmatpush1.bf16.msra.mxu0 0
  %710 = vmatprep.subr.bf16.mxu0 0
  %711 = vmatpush1.bf16.msra.mxu0 0
  %712 = vmatprep.subr.bf16.mxu0 0
  %713 = vmatpush1.bf16.msra.mxu0 0
  %714 = vmatprep.subr.bf16.mxu0 0
  %715 = vmatpush1.bf16.msra.mxu0 0
  %716 = vmatprep.subr.bf16.mxu0 0
  %717 = vmatpush1.bf16.msra.mxu0 0
  %718 = vmatprep.subr.bf16.mxu0 0
  %719 = vmatpush1.bf16.msra.mxu0 0
  %720 = vmatprep.subr.bf16.mxu0 0
  %721 = vmatpush1.bf16.msra.mxu0 0
  %722 = vmatprep.subr.bf16.mxu0 0
  %723 = vmatpush1.bf16.msra.mxu0 0
  %724 = vmatprep.subr.bf16.mxu0 0
  %725 = vmatpush1.bf16.msra.mxu0 0
  %726 = vmatprep.subr.bf16.mxu0 0
  %727 = vmatpush1.bf16.msra.mxu0 0
  %728 = vmatprep.subr.bf16.mxu0 0
  %729 = vmatpush1.bf16.msra.mxu0 0
  %730 = vmatprep.mubr.bf16.mxu0 0
  %731 = vmatmul.mubr.bf16.gmra.mrb[0].mxu0 %v696
  %v732 = vpop.f32.mrb[0].mxu0
  %v733 = vadd.f32 0.0, %v732
  %v734 = vpop.f32.mrb[0].mxu0
  %v735 = vadd.f32 0.0, %v734
  %v736 = vpop.f32.mrb[0].mxu0
  %v737 = vadd.f32 0.0, %v736
  %v738 = vpop.f32.mrb[0].mxu0
  %v739 = vadd.f32 0.0, %v738
  %740 = vdwg.mxu0
  %v741 = vsel %vm425, %v733, %v735
  %v742 = vsel %vm426, %v737, %v739
  %v743 = vld [vmem:[%s368] sm:$0xff]
  %v744 = vld [vmem:[%s368 + $0x8] sm:$0xff]
  %v745 = vadd.f32 %v743, %v741
  %v746 = vadd.f32 %v744, %v742
  %v747 = vxor.u32 %v745, 2147483648
  %v748 = vxor.u32 %v746, 2147483648
  %v749 = vmul.f32 %v747, 1.442695
  %v750 = vpow.pop %v749
  %v751 = vmul.f32 %v748, 1.442695
  %v752 = vpow.pop %v751
  %v753 = vadd.f32 %v750, 1.0
  %v754 = vadd.f32 %v752, 1.0
  %v755 = vrcp.pop %v753
  %v756 = vmul.f32 1.0, %v755
  %v757 = vrcp.pop %v754
  %v758 = vmul.f32 1.0, %v757
  %v759 = vtanh.pop %v745
  %v760 = vtanh.pop %v746
  %v761 = vmul.f32 %v756, %v657
  %v762 = vmul.f32 %v758, %v658
  %765 = vrot.lane.b32.xlu0 %v759, 32
  %v766 = vpop.permute.xlu0 %765
  %767 = vrot.lane.b32.xlu0 %v760, 32
  %v768 = vpop.permute.xlu0 %767
  %v771 = vmul.f32 %v756, %v766
  %v772 = vmul.f32 %v758, %v768
  %775 = vrot.lane.b32.xlu0 %v771, 32
  %v776 = vpop.permute.xlu0 %775
  %777 = vrot.lane.b32.xlu0 %v772, 32
  %v778 = vpop.permute.xlu0 %777
  %v781 = vadd.f32 %v761, %v776
  %v782 = vadd.f32 %v762, %v778
  %v783 = vtanh.pop %v781
  %v784 = vtanh.pop %v782
  %787 = vrot.lane.b32.xlu0 %v783, 32
  %v788 = vpop.permute.xlu0 %787
  %789 = vrot.lane.b32.xlu0 %v784, 32
  %v790 = vpop.permute.xlu0 %789
  %v793 = vmul.f32 %v756, %v788
  %v794 = vmul.f32 %v758, %v790
  %v795 = vpack.c.bf16 %v793, %v793
  %v797 = vunpack.c.l.b16 %v795
  %v798 = vpack.c.b16 %v797, %v797
  %799 = vrot.lane.b32.xlu0 %v798, 64
  %v800 = vpop.permute.xlu0 %799
  %s802 = scalar_lea.vmem %s4, 8
  %803 = vst.msk [vmem:[%s802] sm:$0xf] %vm554, %v800
  %v804 = vpack.c.bf16 %v794, %v794
  %v806 = vunpack.c.l.b16 %v804
  %v807 = vpack.c.b16 %v806, %v806
  %808 = vrot.lane.b32.xlu0 %v807, 64
  %v809 = vpop.permute.xlu0 %808
  %s811 = sadd.s32 5, 8
  %s812 = smul.addr %s811, 4
  %s813 = scalar_lea.vmem %s4, %s812
  %814 = vst.msk [vmem:[%s813] sm:$0xf] %vm554, %v809
  %v815 = vpack.c.bf16 %v794, %v793
  %817 = vrot.lane.b32.xlu0 %v815, 64
  %v818 = vpop.permute.xlu0 %817
  %v820 = vsel %vm84, %v818, 0
  %822 = vmatprep.subr.bf16.mxu0 %v440
  %823 = vmatpush1.bf16.msra.mxu0 %v439
  %824 = vmatprep.subr.bf16.mxu0 %v442
  %825 = vmatpush1.bf16.msra.mxu0 %v441
  %826 = vmatprep.subr.bf16.mxu0 0
  %827 = vmatpush1.bf16.msra.mxu0 0
  %828 = vmatprep.subr.bf16.mxu0 0
  %829 = vmatpush1.bf16.msra.mxu0 0
  %830 = vmatprep.subr.bf16.mxu0 0
  %831 = vmatpush1.bf16.msra.mxu0 0
  %832 = vmatprep.subr.bf16.mxu0 0
  %833 = vmatpush1.bf16.msra.mxu0 0
  %834 = vmatprep.subr.bf16.mxu0 0
  %835 = vmatpush1.bf16.msra.mxu0 0
  %836 = vmatprep.subr.bf16.mxu0 0
  %837 = vmatpush1.bf16.msra.mxu0 0
  %838 = vmatprep.subr.bf16.mxu0 0
  %839 = vmatpush1.bf16.msra.mxu0 0
  %840 = vmatprep.subr.bf16.mxu0 0
  %841 = vmatpush1.bf16.msra.mxu0 0
  %842 = vmatprep.subr.bf16.mxu0 0
  %843 = vmatpush1.bf16.msra.mxu0 0
  %844 = vmatprep.subr.bf16.mxu0 0
  %845 = vmatpush1.bf16.msra.mxu0 0
  %846 = vmatprep.subr.bf16.mxu0 0
  %847 = vmatpush1.bf16.msra.mxu0 0
  %848 = vmatprep.subr.bf16.mxu0 0
  %849 = vmatpush1.bf16.msra.mxu0 0
  %850 = vmatprep.subr.bf16.mxu0 0
  %851 = vmatpush1.bf16.msra.mxu0 0
  %852 = vmatprep.subr.bf16.mxu0 0
  %853 = vmatpush1.bf16.msra.mxu0 0
  %854 = vmatprep.mubr.bf16.mxu0 0
  %855 = vmatmul.mubr.bf16.gmra.mrb[0].mxu0 %v820
  %v856 = vpop.f32.mrb[0].mxu0
  %v857 = vadd.f32 0.0, %v856
  %v858 = vpop.f32.mrb[0].mxu0
  %v859 = vadd.f32 0.0, %v858
  %v860 = vpop.f32.mrb[0].mxu0
  %v861 = vadd.f32 0.0, %v860
  %v862 = vpop.f32.mrb[0].mxu0
  %v863 = vadd.f32 0.0, %v862
  %864 = vdwg.mxu0
  %v865 = vsel %vm425, %v857, %v859
  %v866 = vsel %vm426, %v861, %v863
  %v867 = vld [vmem:[%s381] sm:$0xff]
  %v868 = vld [vmem:[%s381 + $0x8] sm:$0xff]
  %v869 = vadd.f32 %v867, %v865
  %v870 = vadd.f32 %v868, %v866
  %v871 = vxor.u32 %v869, 2147483648
  %v872 = vxor.u32 %v870, 2147483648
  %v873 = vmul.f32 %v871, 1.442695
  %v874 = vpow.pop %v873
  %v875 = vmul.f32 %v872, 1.442695
  %v876 = vpow.pop %v875
  %v877 = vadd.f32 %v874, 1.0
  %v878 = vadd.f32 %v876, 1.0
  %v879 = vrcp.pop %v877
  %v880 = vmul.f32 1.0, %v879
  %v881 = vrcp.pop %v878
  %v882 = vmul.f32 1.0, %v881
  %v883 = vtanh.pop %v869
  %v884 = vtanh.pop %v870
  %v885 = vmul.f32 %v880, %v781
  %v886 = vmul.f32 %v882, %v782
  %889 = vrot.lane.b32.xlu0 %v883, 32
  %v890 = vpop.permute.xlu0 %889
  %891 = vrot.lane.b32.xlu0 %v884, 32
  %v892 = vpop.permute.xlu0 %891
  %v895 = vmul.f32 %v880, %v890
  %v896 = vmul.f32 %v882, %v892
  %899 = vrot.lane.b32.xlu0 %v895, 32
  %v900 = vpop.permute.xlu0 %899
  %901 = vrot.lane.b32.xlu0 %v896, 32
  %v902 = vpop.permute.xlu0 %901
  %v905 = vadd.f32 %v885, %v900
  %v906 = vadd.f32 %v886, %v902
  %v907 = vtanh.pop %v905
  %v908 = vtanh.pop %v906
  %911 = vrot.lane.b32.xlu0 %v907, 32
  %v912 = vpop.permute.xlu0 %911
  %913 = vrot.lane.b32.xlu0 %v908, 32
  %v914 = vpop.permute.xlu0 %913
  %v917 = vmul.f32 %v880, %v912
  %v918 = vmul.f32 %v882, %v914
  %v919 = vpack.c.bf16 %v917, %v917
  %v921 = vunpack.c.l.b16 %v919
  %v922 = vpack.c.b16 %v921, %v921
  %923 = vrot.lane.b32.xlu0 %v922, 64
  %v924 = vpop.permute.xlu0 %923
  %s926 = scalar_lea.vmem %s4, 12
  %927 = vst.msk [vmem:[%s926] sm:$0xf] %vm554, %v924
  %v928 = vpack.c.bf16 %v918, %v918
  %v930 = vunpack.c.l.b16 %v928
  %v931 = vpack.c.b16 %v930, %v930
  %932 = vrot.lane.b32.xlu0 %v931, 64
  %v933 = vpop.permute.xlu0 %932
  %s935 = sadd.s32 4, 8
  %s936 = smul.addr %s935, 4
  %s937 = scalar_lea.vmem %s4, %s936
  %938 = vst.msk [vmem:[%s937] sm:$0xf] %vm554, %v933
  %v939 = vpack.c.bf16 %v918, %v917
  %941 = vrot.lane.b32.xlu0 %v939, 64
  %v942 = vpop.permute.xlu0 %941
  %v944 = vsel %vm84, %v942, 0
  %946 = vmatprep.subr.bf16.mxu0 %v440
  %947 = vmatpush1.bf16.msra.mxu0 %v439
  %948 = vmatprep.subr.bf16.mxu0 %v442
  %949 = vmatpush1.bf16.msra.mxu0 %v441
  %950 = vmatprep.subr.bf16.mxu0 0
  %951 = vmatpush1.bf16.msra.mxu0 0
  %952 = vmatprep.subr.bf16.mxu0 0
  %953 = vmatpush1.bf16.msra.mxu0 0
  %954 = vmatprep.subr.bf16.mxu0 0
  %955 = vmatpush1.bf16.msra.mxu0 0
  %956 = vmatprep.subr.bf16.mxu0 0
  %957 = vmatpush1.bf16.msra.mxu0 0
  %958 = vmatprep.subr.bf16.mxu0 0
  %959 = vmatpush1.bf16.msra.mxu0 0
  %960 = vmatprep.subr.bf16.mxu0 0
  %961 = vmatpush1.bf16.msra.mxu0 0
  %962 = vmatprep.subr.bf16.mxu0 0
  %963 = vmatpush1.bf16.msra.mxu0 0
  %964 = vmatprep.subr.bf16.mxu0 0
  %965 = vmatpush1.bf16.msra.mxu0 0
  %966 = vmatprep.subr.bf16.mxu0 0
  %967 = vmatpush1.bf16.msra.mxu0 0
  %968 = vmatprep.subr.bf16.mxu0 0
  %969 = vmatpush1.bf16.msra.mxu0 0
  %970 = vmatprep.subr.bf16.mxu0 0
  %971 = vmatpush1.bf16.msra.mxu0 0
  %972 = vmatprep.subr.bf16.mxu0 0
  %973 = vmatpush1.bf16.msra.mxu0 0
  %974 = vmatprep.subr.bf16.mxu0 0
  %975 = vmatpush1.bf16.msra.mxu0 0
  %976 = vmatprep.subr.bf16.mxu0 0
  %977 = vmatpush1.bf16.msra.mxu0 0
  %978 = vmatprep.mubr.bf16.mxu0 0
  %979 = vmatmul.mubr.bf16.gmra.mrb[0].mxu0 %v944
  %v980 = vpop.f32.mrb[0].mxu0
  %v981 = vadd.f32 0.0, %v980
  %v982 = vpop.f32.mrb[0].mxu0
  %v983 = vadd.f32 0.0, %v982
  %v984 = vpop.f32.mrb[0].mxu0
  %v985 = vadd.f32 0.0, %v984
  %v986 = vpop.f32.mrb[0].mxu0
  %v987 = vadd.f32 0.0, %v986
  %988 = vdwg.mxu0
  %v989 = vsel %vm425, %v981, %v983
  %v990 = vsel %vm426, %v985, %v987
  %v991 = vld [vmem:[%s391] sm:$0xff]
  %v992 = vld [vmem:[%s391 + $0x8] sm:$0xff]
  %v993 = vadd.f32 %v991, %v989
  %v994 = vadd.f32 %v992, %v990
  %v995 = vxor.u32 %v993, 2147483648
  %v996 = vxor.u32 %v994, 2147483648
  %v997 = vmul.f32 %v995, 1.442695
  %v998 = vpow.pop %v997
  %v999 = vmul.f32 %v996, 1.442695
  %v1000 = vpow.pop %v999
  %v1001 = vadd.f32 %v998, 1.0
  %v1002 = vadd.f32 %v1000, 1.0
  %v1003 = vrcp.pop %v1001
  %v1004 = vmul.f32 1.0, %v1003
  %v1005 = vrcp.pop %v1002
  %v1006 = vmul.f32 1.0, %v1005
  %v1007 = vtanh.pop %v993
  %v1008 = vtanh.pop %v994
  %v1009 = vmul.f32 %v1004, %v905
  %v1010 = vmul.f32 %v1006, %v906
  %1013 = vrot.lane.b32.xlu0 %v1007, 32
  %v1014 = vpop.permute.xlu0 %1013
  %1015 = vrot.lane.b32.xlu0 %v1008, 32
  %v1016 = vpop.permute.xlu0 %1015
  %v1019 = vmul.f32 %v1004, %v1014
  %v1020 = vmul.f32 %v1006, %v1016
  %1023 = vrot.lane.b32.xlu0 %v1019, 32
  %v1024 = vpop.permute.xlu0 %1023
  %1025 = vrot.lane.b32.xlu0 %v1020, 32
  %v1026 = vpop.permute.xlu0 %1025
  %v1029 = vadd.f32 %v1009, %v1024
  %v1030 = vadd.f32 %v1010, %v1026
  %v1031 = vtanh.pop %v1029
  %v1032 = vtanh.pop %v1030
  %1035 = vrot.lane.b32.xlu0 %v1031, 32
  %v1036 = vpop.permute.xlu0 %1035
  %1037 = vrot.lane.b32.xlu0 %v1032, 32
  %v1038 = vpop.permute.xlu0 %1037
  %v1041 = vmul.f32 %v1004, %v1036
  %v1042 = vmul.f32 %v1006, %v1038
  %v1043 = vpack.c.bf16 %v1041, %v1041
  %v1045 = vunpack.c.l.b16 %v1043
  %v1046 = vpack.c.b16 %v1045, %v1045
  %1047 = vrot.lane.b32.xlu0 %v1046, 64
  %v1048 = vpop.permute.xlu0 %1047
  %s1050 = scalar_lea.vmem %s4, 16
  %1051 = vst.msk [vmem:[%s1050] sm:$0xf] %vm554, %v1048
  %v1052 = vpack.c.bf16 %v1042, %v1042
  %v1054 = vunpack.c.l.b16 %v1052
  %v1055 = vpack.c.b16 %v1054, %v1054
  %1056 = vrot.lane.b32.xlu0 %v1055, 64
  %v1057 = vpop.permute.xlu0 %1056
  %s1059 = sadd.s32 3, 8
  %s1060 = smul.addr %s1059, 4
  %s1061 = scalar_lea.vmem %s4, %s1060
  %1062 = vst.msk [vmem:[%s1061] sm:$0xf] %vm554, %v1057
  %v1063 = vpack.c.bf16 %v1042, %v1041
  %1065 = vrot.lane.b32.xlu0 %v1063, 64
  %v1066 = vpop.permute.xlu0 %1065
  %v1068 = vsel %vm84, %v1066, 0
  %1070 = vmatprep.subr.bf16.mxu0 %v440
  %1071 = vmatpush1.bf16.msra.mxu0 %v439
  %1072 = vmatprep.subr.bf16.mxu0 %v442
  %1073 = vmatpush1.bf16.msra.mxu0 %v441
  %1074 = vmatprep.subr.bf16.mxu0 0
  %1075 = vmatpush1.bf16.msra.mxu0 0
  %1076 = vmatprep.subr.bf16.mxu0 0
  %1077 = vmatpush1.bf16.msra.mxu0 0
  %1078 = vmatprep.subr.bf16.mxu0 0
  %1079 = vmatpush1.bf16.msra.mxu0 0
  %1080 = vmatprep.subr.bf16.mxu0 0
  %1081 = vmatpush1.bf16.msra.mxu0 0
  %1082 = vmatprep.subr.bf16.mxu0 0
  %1083 = vmatpush1.bf16.msra.mxu0 0
  %1084 = vmatprep.subr.bf16.mxu0 0
  %1085 = vmatpush1.bf16.msra.mxu0 0
  %1086 = vmatprep.subr.bf16.mxu0 0
  %1087 = vmatpush1.bf16.msra.mxu0 0
  %1088 = vmatprep.subr.bf16.mxu0 0
  %1089 = vmatpush1.bf16.msra.mxu0 0
  %1090 = vmatprep.subr.bf16.mxu0 0
  %1091 = vmatpush1.bf16.msra.mxu0 0
  %1092 = vmatprep.subr.bf16.mxu0 0
  %1093 = vmatpush1.bf16.msra.mxu0 0
  %1094 = vmatprep.subr.bf16.mxu0 0
  %1095 = vmatpush1.bf16.msra.mxu0 0
  %1096 = vmatprep.subr.bf16.mxu0 0
  %1097 = vmatpush1.bf16.msra.mxu0 0
  %1098 = vmatprep.subr.bf16.mxu0 0
  %1099 = vmatpush1.bf16.msra.mxu0 0
  %1100 = vmatprep.subr.bf16.mxu0 0
  %1101 = vmatpush1.bf16.msra.mxu0 0
  %1102 = vmatprep.mubr.bf16.mxu0 0
  %1103 = vmatmul.mubr.bf16.gmra.mrb[0].mxu0 %v1068
  %v1104 = vpop.f32.mrb[0].mxu0
  %v1105 = vadd.f32 0.0, %v1104
  %v1106 = vpop.f32.mrb[0].mxu0
  %v1107 = vadd.f32 0.0, %v1106
  %v1108 = vpop.f32.mrb[0].mxu0
  %v1109 = vadd.f32 0.0, %v1108
  %v1110 = vpop.f32.mrb[0].mxu0
  %v1111 = vadd.f32 0.0, %v1110
  %1112 = vdwg.mxu0
  %v1113 = vsel %vm425, %v1105, %v1107
  %v1114 = vsel %vm426, %v1109, %v1111
  %v1115 = vld [vmem:[%s398] sm:$0xff]
  %v1116 = vld [vmem:[%s398 + $0x8] sm:$0xff]
  %v1117 = vadd.f32 %v1115, %v1113
  %v1118 = vadd.f32 %v1116, %v1114
  %v1119 = vxor.u32 %v1117, 2147483648
  %v1120 = vxor.u32 %v1118, 2147483648
  %v1121 = vmul.f32 %v1119, 1.442695
  %v1122 = vpow.pop %v1121
  %v1123 = vmul.f32 %v1120, 1.442695
  %v1124 = vpow.pop %v1123
  %v1125 = vadd.f32 %v1122, 1.0
  %v1126 = vadd.f32 %v1124, 1.0
  %v1127 = vrcp.pop %v1125
  %v1128 = vmul.f32 1.0, %v1127
  %v1129 = vrcp.pop %v1126
  %v1130 = vmul.f32 1.0, %v1129
  %v1131 = vtanh.pop %v1117
  %v1132 = vtanh.pop %v1118
  %v1133 = vmul.f32 %v1128, %v1029
  %v1134 = vmul.f32 %v1130, %v1030
  %1137 = vrot.lane.b32.xlu0 %v1131, 32
  %v1138 = vpop.permute.xlu0 %1137
  %1139 = vrot.lane.b32.xlu0 %v1132, 32
  %v1140 = vpop.permute.xlu0 %1139
  %v1143 = vmul.f32 %v1128, %v1138
  %v1144 = vmul.f32 %v1130, %v1140
  %1147 = vrot.lane.b32.xlu0 %v1143, 32
  %v1148 = vpop.permute.xlu0 %1147
  %1149 = vrot.lane.b32.xlu0 %v1144, 32
  %v1150 = vpop.permute.xlu0 %1149
  %v1153 = vadd.f32 %v1133, %v1148
  %v1154 = vadd.f32 %v1134, %v1150
  %v1155 = vtanh.pop %v1153
  %v1156 = vtanh.pop %v1154
  %1159 = vrot.lane.b32.xlu0 %v1155, 32
  %v1160 = vpop.permute.xlu0 %1159
  %1161 = vrot.lane.b32.xlu0 %v1156, 32
  %v1162 = vpop.permute.xlu0 %1161
  %v1165 = vmul.f32 %v1128, %v1160
  %v1166 = vmul.f32 %v1130, %v1162
  %v1167 = vpack.c.bf16 %v1165, %v1165
  %v1169 = vunpack.c.l.b16 %v1167
  %v1170 = vpack.c.b16 %v1169, %v1169
  %1171 = vrot.lane.b32.xlu0 %v1170, 64
  %v1172 = vpop.permute.xlu0 %1171
  %s1174 = scalar_lea.vmem %s4, 20
  %1175 = vst.msk [vmem:[%s1174] sm:$0xf] %vm554, %v1172
  %v1176 = vpack.c.bf16 %v1166, %v1166
  %v1178 = vunpack.c.l.b16 %v1176
  %v1179 = vpack.c.b16 %v1178, %v1178
  %1180 = vrot.lane.b32.xlu0 %v1179, 64
  %v1181 = vpop.permute.xlu0 %1180
  %s1183 = sadd.s32 2, 8
  %s1184 = smul.addr %s1183, 4
  %s1185 = scalar_lea.vmem %s4, %s1184
  %1186 = vst.msk [vmem:[%s1185] sm:$0xf] %vm554, %v1181
  %v1187 = vpack.c.bf16 %v1166, %v1165
  %1189 = vrot.lane.b32.xlu0 %v1187, 64
  %v1190 = vpop.permute.xlu0 %1189
  %v1192 = vsel %vm84, %v1190, 0
  %1194 = vmatprep.subr.bf16.mxu0 %v440
  %1195 = vmatpush1.bf16.msra.mxu0 %v439
  %1196 = vmatprep.subr.bf16.mxu0 %v442
  %1197 = vmatpush1.bf16.msra.mxu0 %v441
  %1198 = vmatprep.subr.bf16.mxu0 0
  %1199 = vmatpush1.bf16.msra.mxu0 0
  %1200 = vmatprep.subr.bf16.mxu0 0
  %1201 = vmatpush1.bf16.msra.mxu0 0
  %1202 = vmatprep.subr.bf16.mxu0 0
  %1203 = vmatpush1.bf16.msra.mxu0 0
  %1204 = vmatprep.subr.bf16.mxu0 0
  %1205 = vmatpush1.bf16.msra.mxu0 0
  %1206 = vmatprep.subr.bf16.mxu0 0
  %1207 = vmatpush1.bf16.msra.mxu0 0
  %1208 = vmatprep.subr.bf16.mxu0 0
  %1209 = vmatpush1.bf16.msra.mxu0 0
  %1210 = vmatprep.subr.bf16.mxu0 0
  %1211 = vmatpush1.bf16.msra.mxu0 0
  %1212 = vmatprep.subr.bf16.mxu0 0
  %1213 = vmatpush1.bf16.msra.mxu0 0
  %1214 = vmatprep.subr.bf16.mxu0 0
  %1215 = vmatpush1.bf16.msra.mxu0 0
  %1216 = vmatprep.subr.bf16.mxu0 0
  %1217 = vmatpush1.bf16.msra.mxu0 0
  %1218 = vmatprep.subr.bf16.mxu0 0
  %1219 = vmatpush1.bf16.msra.mxu0 0
  %1220 = vmatprep.subr.bf16.mxu0 0
  %1221 = vmatpush1.bf16.msra.mxu0 0
  %1222 = vmatprep.subr.bf16.mxu0 0
  %1223 = vmatpush1.bf16.msra.mxu0 0
  %1224 = vmatprep.subr.bf16.mxu0 0
  %1225 = vmatpush1.bf16.msra.mxu0 0
  %1226 = vmatprep.mubr.bf16.mxu0 0
  %1227 = vmatmul.mubr.bf16.gmra.mrb[0].mxu0 %v1192
  %v1228 = vpop.f32.mrb[0].mxu0
  %v1229 = vadd.f32 0.0, %v1228
  %v1230 = vpop.f32.mrb[0].mxu0
  %v1231 = vadd.f32 0.0, %v1230
  %v1232 = vpop.f32.mrb[0].mxu0
  %v1233 = vadd.f32 0.0, %v1232
  %v1234 = vpop.f32.mrb[0].mxu0
  %v1235 = vadd.f32 0.0, %v1234
  %1236 = vdwg.mxu0
  %v1237 = vsel %vm425, %v1229, %v1231
  %v1238 = vsel %vm426, %v1233, %v1235
  %v1239 = vld [vmem:[%s405] sm:$0xff]
  %v1240 = vld [vmem:[%s405 + $0x8] sm:$0xff]
  %v1241 = vadd.f32 %v1239, %v1237
  %v1242 = vadd.f32 %v1240, %v1238
  %v1243 = vxor.u32 %v1241, 2147483648
  %v1244 = vxor.u32 %v1242, 2147483648
  %v1245 = vmul.f32 %v1243, 1.442695
  %v1246 = vpow.pop %v1245
  %v1247 = vmul.f32 %v1244, 1.442695
  %v1248 = vpow.pop %v1247
  %v1249 = vadd.f32 %v1246, 1.0
  %v1250 = vadd.f32 %v1248, 1.0
  %v1251 = vrcp.pop %v1249
  %v1252 = vmul.f32 1.0, %v1251
  %v1253 = vrcp.pop %v1250
  %v1254 = vmul.f32 1.0, %v1253
  %v1255 = vtanh.pop %v1241
  %v1256 = vtanh.pop %v1242
  %v1257 = vmul.f32 %v1252, %v1153
  %v1258 = vmul.f32 %v1254, %v1154
  %1261 = vrot.lane.b32.xlu0 %v1255, 32
  %v1262 = vpop.permute.xlu0 %1261
  %1263 = vrot.lane.b32.xlu0 %v1256, 32
  %v1264 = vpop.permute.xlu0 %1263
  %v1267 = vmul.f32 %v1252, %v1262
  %v1268 = vmul.f32 %v1254, %v1264
  %1271 = vrot.lane.b32.xlu0 %v1267, 32
  %v1272 = vpop.permute.xlu0 %1271
  %1273 = vrot.lane.b32.xlu0 %v1268, 32
  %v1274 = vpop.permute.xlu0 %1273
  %v1277 = vadd.f32 %v1257, %v1272
  %v1278 = vadd.f32 %v1258, %v1274
  %v1279 = vtanh.pop %v1277
  %v1280 = vtanh.pop %v1278
  %1283 = vrot.lane.b32.xlu0 %v1279, 32
  %v1284 = vpop.permute.xlu0 %1283
  %1285 = vrot.lane.b32.xlu0 %v1280, 32
  %v1286 = vpop.permute.xlu0 %1285
  %v1289 = vmul.f32 %v1252, %v1284
  %v1290 = vmul.f32 %v1254, %v1286
  %v1291 = vpack.c.bf16 %v1289, %v1289
  %v1293 = vunpack.c.l.b16 %v1291
  %v1294 = vpack.c.b16 %v1293, %v1293
  %1295 = vrot.lane.b32.xlu0 %v1294, 64
  %v1296 = vpop.permute.xlu0 %1295
  %s1298 = scalar_lea.vmem %s4, 24
  %1299 = vst.msk [vmem:[%s1298] sm:$0xf] %vm554, %v1296
  %v1300 = vpack.c.bf16 %v1290, %v1290
  %v1302 = vunpack.c.l.b16 %v1300
  %v1303 = vpack.c.b16 %v1302, %v1302
  %1304 = vrot.lane.b32.xlu0 %v1303, 64
  %v1305 = vpop.permute.xlu0 %1304
  %s1307 = sadd.s32 1, 8
  %s1308 = smul.addr %s1307, 4
  %s1309 = scalar_lea.vmem %s4, %s1308
  %1310 = vst.msk [vmem:[%s1309] sm:$0xf] %vm554, %v1305
  %v1311 = vpack.c.bf16 %v1290, %v1289
  %1313 = vrot.lane.b32.xlu0 %v1311, 64
  %v1314 = vpop.permute.xlu0 %1313
  %v1316 = vsel %vm84, %v1314, 0
  %1318 = vmatprep.subr.bf16.mxu0 %v440
  %1319 = vmatpush1.bf16.msra.mxu0 %v439
  %1320 = vmatprep.subr.bf16.mxu0 %v442
  %1321 = vmatpush1.bf16.msra.mxu0 %v441
  %1322 = vmatprep.subr.bf16.mxu0 0
  %1323 = vmatpush1.bf16.msra.mxu0 0
  %1324 = vmatprep.subr.bf16.mxu0 0
  %1325 = vmatpush1.bf16.msra.mxu0 0
  %1326 = vmatprep.subr.bf16.mxu0 0
  %1327 = vmatpush1.bf16.msra.mxu0 0
  %1328 = vmatprep.subr.bf16.mxu0 0
  %1329 = vmatpush1.bf16.msra.mxu0 0
  %1330 = vmatprep.subr.bf16.mxu0 0
  %1331 = vmatpush1.bf16.msra.mxu0 0
  %1332 = vmatprep.subr.bf16.mxu0 0
  %1333 = vmatpush1.bf16.msra.mxu0 0
  %1334 = vmatprep.subr.bf16.mxu0 0
  %1335 = vmatpush1.bf16.msra.mxu0 0
  %1336 = vmatprep.subr.bf16.mxu0 0
  %1337 = vmatpush1.bf16.msra.mxu0 0
  %1338 = vmatprep.subr.bf16.mxu0 0
  %1339 = vmatpush1.bf16.msra.mxu0 0
  %1340 = vmatprep.subr.bf16.mxu0 0
  %1341 = vmatpush1.bf16.msra.mxu0 0
  %1342 = vmatprep.subr.bf16.mxu0 0
  %1343 = vmatpush1.bf16.msra.mxu0 0
  %1344 = vmatprep.subr.bf16.mxu0 0
  %1345 = vmatpush1.bf16.msra.mxu0 0
  %1346 = vmatprep.subr.bf16.mxu0 0
  %1347 = vmatpush1.bf16.msra.mxu0 0
  %1348 = vmatprep.subr.bf16.mxu0 0
  %1349 = vmatpush1.bf16.msra.mxu0 0
  %1350 = vmatprep.mubr.bf16.mxu0 0
  %1351 = vmatmul.mubr.bf16.gmra.mrb[0].mxu0 %v1316
  %v1352 = vpop.f32.mrb[0].mxu0
  %v1353 = vadd.f32 0.0, %v1352
  %v1354 = vpop.f32.mrb[0].mxu0
  %v1355 = vadd.f32 0.0, %v1354
  %v1356 = vpop.f32.mrb[0].mxu0
  %v1357 = vadd.f32 0.0, %v1356
  %v1358 = vpop.f32.mrb[0].mxu0
  %v1359 = vadd.f32 0.0, %v1358
  %1360 = vdwg.mxu0
  %v1361 = vsel %vm425, %v1353, %v1355
  %v1362 = vsel %vm426, %v1357, %v1359
  %v1363 = vld [vmem:[%s412] sm:$0xff]
  %v1364 = vld [vmem:[%s412 + $0x8] sm:$0xff]
  %v1365 = vadd.f32 %v1363, %v1361
  %v1366 = vadd.f32 %v1364, %v1362
  %v1367 = vxor.u32 %v1365, 2147483648
  %v1368 = vxor.u32 %v1366, 2147483648
  %v1369 = vmul.f32 %v1367, 1.442695
  %v1370 = vpow.pop %v1369
  %v1371 = vmul.f32 %v1368, 1.442695
  %v1372 = vpow.pop %v1371
  %v1373 = vadd.f32 %v1370, 1.0
  %v1374 = vadd.f32 %v1372, 1.0
  %v1375 = vrcp.pop %v1373
  %v1376 = vmul.f32 1.0, %v1375
  %v1377 = vrcp.pop %v1374
  %v1378 = vmul.f32 1.0, %v1377
  %v1379 = vtanh.pop %v1365
  %v1380 = vtanh.pop %v1366
  %v1381 = vmul.f32 %v1376, %v1277
  %v1382 = vmul.f32 %v1378, %v1278
  %1385 = vrot.lane.b32.xlu0 %v1379, 32
  %v1386 = vpop.permute.xlu0 %1385
  %1387 = vrot.lane.b32.xlu0 %v1380, 32
  %v1388 = vpop.permute.xlu0 %1387
  %v1391 = vmul.f32 %v1376, %v1386
  %v1392 = vmul.f32 %v1378, %v1388
  %1395 = vrot.lane.b32.xlu0 %v1391, 32
  %v1396 = vpop.permute.xlu0 %1395
  %1397 = vrot.lane.b32.xlu0 %v1392, 32
  %v1398 = vpop.permute.xlu0 %1397
  %v1401 = vadd.f32 %v1381, %v1396
  %v1402 = vadd.f32 %v1382, %v1398
  %v1403 = vtanh.pop %v1401
  %v1404 = vtanh.pop %v1402
  %1407 = vrot.lane.b32.xlu0 %v1403, 32
  %v1408 = vpop.permute.xlu0 %1407
  %1409 = vrot.lane.b32.xlu0 %v1404, 32
  %v1410 = vpop.permute.xlu0 %1409
  %v1413 = vmul.f32 %v1376, %v1408
  %v1414 = vmul.f32 %v1378, %v1410
  %v1415 = vpack.c.bf16 %v1413, %v1413
  %v1417 = vunpack.c.l.b16 %v1415
  %v1418 = vpack.c.b16 %v1417, %v1417
  %1419 = vrot.lane.b32.xlu0 %v1418, 64
  %v1420 = vpop.permute.xlu0 %1419
  %s1422 = scalar_lea.vmem %s4, 28
  %1423 = vst.msk [vmem:[%s1422] sm:$0xf] %vm554, %v1420
  %v1424 = vpack.c.bf16 %v1414, %v1414
  %v1426 = vunpack.c.l.b16 %v1424
  %v1427 = vpack.c.b16 %v1426, %v1426
  %1428 = vrot.lane.b32.xlu0 %v1427, 64
  %v1429 = vpop.permute.xlu0 %1428
  %s1431 = sadd.s32 0, 8
  %s1432 = smul.addr %s1431, 4
  %s1433 = scalar_lea.vmem %s4, %s1432
  %1434 = vst.msk [vmem:[%s1433] sm:$0xf] %vm554, %v1429
  // Predicated region
  $region18: #{forward.4} parent=0 // pred_check
    _
  $region19: #{forward.4} parent=0 // pred_check_branch
    %1436 = sbr.rel (0) target = $region21
  $region20: #{forward.4} parent=0 // pred_region
    _
  $region21: #{forward.4} parent=0 // pred_fallthru
    _
  // Predicated region
  $region22: #{forward.4} parent=0 // pred_check
    _
  $region23: #{forward.4} parent=0 // pred_check_branch
    %1438 = sbr.rel (0) target = $region25
  $region24: #{forward.4} parent=0 // pred_region
    _
  $region25: #{forward.4} parent=0 // pred_fallthru
    _

// kernel: forward.3
$region0: #{forward.3}
  #allocation0 [shape = 'u32[]', space=smem, size = 0x4, offset = 0x4, fixed_abs, tag = 'smem constant byte address 0x4 - core index']
  #allocation1 [shape = 'u32[144,128]{1,0:T(1,128)}', space=vmem, size = 0x12000, scoped, tag = 'internal scratch']
  #allocation2 [shape = 'f32[64,256]{1,0:T(8,128)}', space=vmem, size = 0x10000, scoped, tag = 'scratch operand']
  #allocation3 [shape = 'f32[128,128]{1,0:T(8,128)}', space=vmem, size = 0x10000, scoped, tag = 'scratch operand']
  %s0 = inlined_call_operand.vmem [shape: bf16[1,64,128], index: 0, kind: input, shape index: {}]
  %s1 = inlined_call_operand.vmem [shape: bf16[1,128,256], index: 1, kind: input, shape index: {}]
  %s2 = inlined_call_operand.vmem [shape: f32[1,256], index: 2, kind: input, shape index: {}]
  %s3 = inlined_call_operand.vmem [shape: bf16[32,256], index: 3, kind: input, shape index: {}]
  %s4 = inlined_call_operand.vmem [shape: bf16[2,64,32], index: 4, kind: output, shape index: {}]
  %s5 = sld [smem:[#allocation0]]
  $region26: #{forward.3} parent=0
    _
  %s7 = ssub.s32 1, %s5
  %s8 = scalar_select 0, %s7, %s5
  // Predicated region
  $region2: #{forward.3} parent=0 // pred_check
    _
  $region3: #{forward.3} parent=0 // pred_check_branch
    %10 = sbr.rel (0) target = $region5
  $region4: #{forward.3} parent=0 // pred_region
    _
  $region5: #{forward.3} parent=0 // pred_fallthru
    _
  // Predicated region
  $region6: #{forward.3} parent=0 // pred_check
    _
  $region7: #{forward.3} parent=0 // pred_check_branch
    %12 = sbr.rel (0) target = $region9
  $region8: #{forward.3} parent=0 // pred_region
    _
  $region9: #{forward.3} parent=0 // pred_fallthru
    _
  // Predicated region
  $region10: #{forward.3} parent=0 // pred_check
    _
  $region11: #{forward.3} parent=0 // pred_check_branch
    %14 = sbr.rel (0) target = $region13
  $region12: #{forward.3} parent=0 // pred_region
    _
  $region13: #{forward.3} parent=0 // pred_fallthru
    _
  // Predicated region
  $region14: #{forward.3} parent=0 // pred_check
    _
  $region15: #{forward.3} parent=0 // pred_check_branch
    %16 = sbr.rel (0) target = $region17
  $region16: #{forward.3} parent=0 // pred_region
    _
  $region17: #{forward.3} parent=0 // pred_fallthru
    _
  %v18 = vld [vmem:[%s0] sm:$0xf]
  %v19 = vld [vmem:[%s0 + $0x4] sm:$0xf]
  %v20 = vld [vmem:[%s0 + $0x8] sm:$0xf]
  %v21 = vld [vmem:[%s0 + $0xc] sm:$0xf]
  %v22 = vld [vmem:[%s0 + $0x10] sm:$0xf]
  %v23 = vld [vmem:[%s0 + $0x14] sm:$0xf]
  %v24 = vld [vmem:[%s0 + $0x18] sm:$0xf]
  %v25 = vld [vmem:[%s0 + $0x1c] sm:$0xf]
  %v26 = vld [vmem:[%s1] sm:$0xff]
  %v27 = vld [vmem:[%s1 + $0x8] sm:$0xff]
  %v28 = vld [vmem:[%s1 + $0x10] sm:$0xff]
  %v29 = vld [vmem:[%s1 + $0x18] sm:$0xff]
  %v30 = vld [vmem:[%s1 + $0x20] sm:$0xff]
  %v31 = vld [vmem:[%s1 + $0x28] sm:$0xff]
  %v32 = vld [vmem:[%s1 + $0x30] sm:$0xff]
  %v33 = vld [vmem:[%s1 + $0x38] sm:$0xff]
  %v34 = vld [vmem:[%s1 + $0x40] sm:$0xff]
  %v35 = vld [vmem:[%s1 + $0x48] sm:$0xff]
  %v36 = vld [vmem:[%s1 + $0x50] sm:$0xff]
  %v37 = vld [vmem:[%s1 + $0x58] sm:$0xff]
  %v38 = vld [vmem:[%s1 + $0x60] sm:$0xff]
  %v39 = vld [vmem:[%s1 + $0x68] sm:$0xff]
  %v40 = vld [vmem:[%s1 + $0x70] sm:$0xff]
  %v41 = vld [vmem:[%s1 + $0x78] sm:$0xff]
  %v42 = vld [vmem:[%s2] sm:$0x3]
  %v44 = vlaneseq
  %v45 = vshrl.u32 %v44, 7
  %v46 = vsub.s32 0, %v45
  %v47 = vrot.slane %v42, %v46
  %v48 = vlaneseq
  %v49 = vshrl.u32 %v48, 7
  %v50 = vsub.s32 1, %v49
  %v51 = vrot.slane %v42, %v50
  %v62 = vunpack.c.l.b16 %v18
  %v63 = vunpack.c.l.b16 %v19
  %v64 = vunpack.c.l.b16 %v20
  %v65 = vunpack.c.l.b16 %v21
  %v66 = vunpack.c.l.b16 %v22
  %v67 = vunpack.c.l.b16 %v23
  %v68 = vunpack.c.l.b16 %v24
  %v69 = vunpack.c.l.b16 %v25
  %v70 = vpack.c.b16 %v63, %v62
  %v71 = vpack.c.b16 %v65, %v64
  %v72 = vpack.c.b16 %v67, %v66
  %v73 = vpack.c.b16 %v69, %v68
  %v94 = vunpack.c.l.b16 %v26
  %v95 = vunpack.c.h.b16 %v26
  %v96 = vunpack.c.l.b16 %v27
  %v97 = vunpack.c.h.b16 %v27
  %v98 = vunpack.c.l.b16 %v28
  %v99 = vunpack.c.h.b16 %v28
  %v100 = vunpack.c.l.b16 %v29
  %v101 = vunpack.c.h.b16 %v29
  %v102 = vunpack.c.l.b16 %v30
  %v103 = vunpack.c.h.b16 %v30
  %v104 = vunpack.c.l.b16 %v31
  %v105 = vunpack.c.h.b16 %v31
  %v106 = vunpack.c.l.b16 %v32
  %v107 = vunpack.c.h.b16 %v32
  %v108 = vunpack.c.l.b16 %v33
  %v109 = vunpack.c.h.b16 %v33
  %v110 = vunpack.c.l.b16 %v34
  %v111 = vunpack.c.h.b16 %v34
  %v112 = vunpack.c.l.b16 %v35
  %v113 = vunpack.c.h.b16 %v35
  %v114 = vunpack.c.l.b16 %v36
  %v115 = vunpack.c.h.b16 %v36
  %v116 = vunpack.c.l.b16 %v37
  %v117 = vunpack.c.h.b16 %v37
  %v118 = vunpack.c.l.b16 %v38
  %v119 = vunpack.c.h.b16 %v38
  %v120 = vunpack.c.l.b16 %v39
  %v121 = vunpack.c.h.b16 %v39
  %v122 = vunpack.c.l.b16 %v40
  %v123 = vunpack.c.h.b16 %v40
  %v124 = vunpack.c.l.b16 %v41
  %v125 = vunpack.c.h.b16 %v41
  %v126 = vpack.c.b16 %v96, %v94
  %v127 = vpack.c.b16 %v97, %v95
  %v128 = vpack.c.b16 %v100, %v98
  %v129 = vpack.c.b16 %v101, %v99
  %v130 = vpack.c.b16 %v104, %v102
  %v131 = vpack.c.b16 %v105, %v103
  %v132 = vpack.c.b16 %v108, %v106
  %v133 = vpack.c.b16 %v109, %v107
  %v134 = vpack.c.b16 %v112, %v110
  %v135 = vpack.c.b16 %v113, %v111
  %v136 = vpack.c.b16 %v116, %v114
  %v137 = vpack.c.b16 %v117, %v115
  %v138 = vpack.c.b16 %v120, %v118
  %v139 = vpack.c.b16 %v121, %v119
  %v140 = vpack.c.b16 %v124, %v122
  %v141 = vpack.c.b16 %v125, %v123
  %158 = vmatprep.subr.bf16.mxu0 %v127
  %159 = vmatpush1.bf16.msra.mxu0 %v126
  %160 = vmatprep.subr.bf16.mxu0 %v129
  %161 = vmatpush1.bf16.msra.mxu0 %v128
  %162 = vmatprep.subr.bf16.mxu0 %v131
  %163 = vmatpush1.bf16.msra.mxu0 %v130
  %164 = vmatprep.subr.bf16.mxu0 %v133
  %165 = vmatpush1.bf16.msra.mxu0 %v132
  %166 = vmatprep.subr.bf16.mxu0 %v135
  %167 = vmatpush1.bf16.msra.mxu0 %v134
  %168 = vmatprep.subr.bf16.mxu0 %v137
  %169 = vmatpush1.bf16.msra.mxu0 %v136
  %170 = vmatprep.subr.bf16.mxu0 %v139
  %171 = vmatpush1.bf16.msra.mxu0 %v138
  %172 = vmatprep.subr.bf16.mxu0 %v141
  %173 = vmatpush1.bf16.msra.mxu0 %v140
  %174 = vmatprep.subr.bf16.mxu0 0
  %175 = vmatpush1.bf16.msra.mxu0 0
  %176 = vmatprep.subr.bf16.mxu0 0
  %177 = vmatpush1.bf16.msra.mxu0 0
  %178 = vmatprep.subr.bf16.mxu0 0
  %179 = vmatpush1.bf16.msra.mxu0 0
  %180 = vmatprep.subr.bf16.mxu0 0
  %181 = vmatpush1.bf16.msra.mxu0 0
  %182 = vmatprep.subr.bf16.mxu0 0
  %183 = vmatpush1.bf16.msra.mxu0 0
  %184 = vmatprep.subr.bf16.mxu0 0
  %185 = vmatpush1.bf16.msra.mxu0 0
  %186 = vmatprep.subr.bf16.mxu0 0
  %187 = vmatpush1.bf16.msra.mxu0 0
  %188 = vmatprep.subr.bf16.mxu0 0
  %189 = vmatpush1.bf16.msra.mxu0 0
  %190 = vmatprep.mubr.bf16.mxu0 0
  %191 = vmatmul.mubr.bf16.gmra.mrb[0].mxu0 %v70
  %v192 = vpop.f32.mrb[0].mxu0
  %v193 = vadd.f32 %v47, %v192
  %v194 = vpop.f32.mrb[0].mxu0
  %v195 = vadd.f32 %v51, %v194
  %v196 = vpop.f32.mrb[0].mxu0
  %v197 = vadd.f32 %v47, %v196
  %v198 = vpop.f32.mrb[0].mxu0
  %v199 = vadd.f32 %v51, %v198
  %200 = vmatprep.mubr.bf16.mxu0 0
  %201 = vmatmul.mubr.bf16.gmra.mrb[0].mxu0 %v71
  %v202 = vpop.f32.mrb[0].mxu0
  %v203 = vadd.f32 %v47, %v202
  %v204 = vpop.f32.mrb[0].mxu0
  %v205 = vadd.f32 %v51, %v204
  %v206 = vpop.f32.mrb[0].mxu0
  %v207 = vadd.f32 %v47, %v206
  %v208 = vpop.f32.mrb[0].mxu0
  %v209 = vadd.f32 %v51, %v208
  %210 = vmatprep.mubr.bf16.mxu0 0
  %211 = vmatmul.mubr.bf16.gmra.mrb[0].mxu0 %v72
  %v212 = vpop.f32.mrb[0].mxu0
  %v213 = vadd.f32 %v47, %v212
  %v214 = vpop.f32.mrb[0].mxu0
  %v215 = vadd.f32 %v51, %v214
  %v216 = vpop.f32.mrb[0].mxu0
  %v217 = vadd.f32 %v47, %v216
  %v218 = vpop.f32.mrb[0].mxu0
  %v219 = vadd.f32 %v51, %v218
  %220 = vmatprep.mubr.bf16.mxu0 0
  %221 = vmatmul.mubr.bf16.gmra.mrb[0].mxu0 %v73
  %v222 = vpop.f32.mrb[0].mxu0
  %v223 = vadd.f32 %v47, %v222
  %v224 = vpop.f32.mrb[0].mxu0
  %v225 = vadd.f32 %v51, %v224
  %v226 = vpop.f32.mrb[0].mxu0
  %v227 = vadd.f32 %v47, %v226
  %v228 = vpop.f32.mrb[0].mxu0
  %v229 = vadd.f32 %v51, %v228
  %230 = vdwg.mxu0
  %231 = vst [vmem:[#allocation2] sm:$0xff] %v193
  %232 = vst [vmem:[#allocation2 + $0x8] sm:$0xff] %v195
  %233 = vst [vmem:[#allocation2 + $0x10] sm:$0xff] %v197
  %234 = vst [vmem:[#allocation2 + $0x18] sm:$0xff] %v199
  %235 = vst [vmem:[#allocation2 + $0x20] sm:$0xff] %v203
  %236 = vst [vmem:[#allocation2 + $0x28] sm:$0xff] %v205
  %237 = vst [vmem:[#allocation2 + $0x30] sm:$0xff] %v207
  %238 = vst [vmem:[#allocation2 + $0x38] sm:$0xff] %v209
  %239 = vst [vmem:[#allocation2 + $0x40] sm:$0xff] %v213
  %240 = vst [vmem:[#allocation2 + $0x48] sm:$0xff] %v215
  %241 = vst [vmem:[#allocation2 + $0x50] sm:$0xff] %v217
  %242 = vst [vmem:[#allocation2 + $0x58] sm:$0xff] %v219
  %243 = vst [vmem:[#allocation2 + $0x60] sm:$0xff] %v223
  %244 = vst [vmem:[#allocation2 + $0x68] sm:$0xff] %v225
  %245 = vst [vmem:[#allocation2 + $0x70] sm:$0xff] %v227
  %246 = vst [vmem:[#allocation2 + $0x78] sm:$0xff] %v229
  %s247 = smul.u32 0, 2
  %s248 = smul.addr %s247, 8
  %s249 = scalar_lea.vmem [#allocation2], %s248
  %v250 = vld [vmem:[%s249] sm:$0xff]
  %251 = vst [vmem:[#allocation3] sm:$0xff] %v250
  %s252 = smul.u32 7, 2
  %s253 = smul.addr %s252, 8
  %s254 = scalar_lea.vmem [#allocation2], %s253
  %v255 = vld [vmem:[%s254 + $0x8] sm:$0xff]
  %s256 = sadd.s32 0, 8
  %s257 = scalar_lea.vmem [#allocation3], %s256
  %258 = vst [vmem:[%s257] sm:$0xff] %v255
  %s259 = smul.u32 1, 2
  %s260 = smul.addr %s259, 8
  %s261 = scalar_lea.vmem [#allocation2], %s260
  %v262 = vld [vmem:[%s261] sm:$0xff]
  %s263 = scalar_lea.vmem [#allocation3], 16
  %264 = vst [vmem:[%s263] sm:$0xff] %v262
  %s265 = smul.u32 6, 2
  %s266 = smul.addr %s265, 8
  %s267 = scalar_lea.vmem [#allocation2], %s266
  %v268 = vld [vmem:[%s267 + $0x8] sm:$0xff]
  %s269 = sadd.s32 16, 8
  %s270 = scalar_lea.vmem [#allocation3], %s269
  %271 = vst [vmem:[%s270] sm:$0xff] %v268
  %s272 = smul.u32 2, 2
  %s273 = smul.addr %s272, 8
  %s274 = scalar_lea.vmem [#allocation2], %s273
  %v275 = vld [vmem:[%s274] sm:$0xff]
  %s276 = scalar_lea.vmem [#allocation3], 32
  %277 = vst [vmem:[%s276] sm:$0xff] %v275
  %s278 = smul.u32 5, 2
  %s279 = smul.addr %s278, 8
  %s280 = scalar_lea.vmem [#allocation2], %s279
  %v281 = vld [vmem:[%s280 + $0x8] sm:$0xff]
  %s282 = sadd.s32 32, 8
  %s283 = scalar_lea.vmem [#allocation3], %s282
  %284 = vst [vmem:[%s283] sm:$0xff] %v281
  %s285 = smul.u32 3, 2
  %s286 = smul.addr %s285, 8
  %s287 = scalar_lea.vmem [#allocation2], %s286
  %v288 = vld [vmem:[%s287] sm:$0xff]
  %s289 = scalar_lea.vmem [#allocation3], 48
  %290 = vst [vmem:[%s289] sm:$0xff] %v288
  %s291 = smul.u32 4, 2
  %s292 = smul.addr %s291, 8
  %s293 = scalar_lea.vmem [#allocation2], %s292
  %v294 = vld [vmem:[%s293 + $0x8] sm:$0xff]
  %s295 = sadd.s32 48, 8
  %s296 = scalar_lea.vmem [#allocation3], %s295
  %297 = vst [vmem:[%s296] sm:$0xff] %v294
  %v298 = vld [vmem:[%s293] sm:$0xff]
  %s299 = scalar_lea.vmem [#allocation3], 64
  %300 = vst [vmem:[%s299] sm:$0xff] %v298
  %v301 = vld [vmem:[%s287 + $0x8] sm:$0xff]
  %s302 = sadd.s32 64, 8
  %s303 = scalar_lea.vmem [#allocation3], %s302
  %304 = vst [vmem:[%s303] sm:$0xff] %v301
  %v305 = vld [vmem:[%s280] sm:$0xff]
  %s306 = scalar_lea.vmem [#allocation3], 80
  %307 = vst [vmem:[%s306] sm:$0xff] %v305
  %v308 = vld [vmem:[%s274 + $0x8] sm:$0xff]
  %s309 = sadd.s32 80, 8
  %s310 = scalar_lea.vmem [#allocation3], %s309
  %311 = vst [vmem:[%s310] sm:$0xff] %v308
  %v312 = vld [vmem:[%s267] sm:$0xff]
  %s313 = scalar_lea.vmem [#allocation3], 96
  %314 = vst [vmem:[%s313] sm:$0xff] %v312
  %v315 = vld [vmem:[%s261 + $0x8] sm:$0xff]
  %s316 = sadd.s32 96, 8
  %s317 = scalar_lea.vmem [#allocation3], %s316
  %318 = vst [vmem:[%s317] sm:$0xff] %v315
  %v319 = vld [vmem:[%s254] sm:$0xff]
  %s320 = scalar_lea.vmem [#allocation3], 112
  %321 = vst [vmem:[%s320] sm:$0xff] %v319
  %v322 = vld [vmem:[%s249 + $0x8] sm:$0xff]
  %s323 = sadd.s32 112, 8
  %s324 = scalar_lea.vmem [#allocation3], %s323
  %325 = vst [vmem:[%s324] sm:$0xff] %v322
  %v326 = vld [vmem:[%s3] sm:$0xff]
  %v327 = vld [vmem:[%s3 + $0x8] sm:$0xff]
  %v328 = vld [vmem:[%s3 + $0x10] sm:$0xff]
  %v329 = vld [vmem:[%s3 + $0x18] sm:$0xff]
  %v330 = vlaneseq
  %v331 = vshrl.u32 %v330, 7
  %v332 = vadd.s32 %v331, 8
  %vm333 = vcmp.lt.s32.totalorder %v331, 8
  %vm334 = vcmp.lt.s32.totalorder %v332, 8
  %v339 = vunpack.c.l.b16 %v326
  %v340 = vunpack.c.h.b16 %v326
  %v341 = vunpack.c.l.b16 %v327
  %v342 = vunpack.c.h.b16 %v327
  %v343 = vunpack.c.l.b16 %v328
  %v344 = vunpack.c.h.b16 %v328
  %v345 = vunpack.c.l.b16 %v329
  %v346 = vunpack.c.h.b16 %v329
  %v347 = vpack.c.b16 %v341, %v339
  %v348 = vpack.c.b16 %v342, %v340
  %v349 = vpack.c.b16 %v345, %v343
  %v350 = vpack.c.b16 %v346, %v344
  %vm355 = vcmask 261120
  %v357 = vsel %vm355, 0, 0
  %359 = vmatprep.subr.bf16.mxu0 %v348
  %360 = vmatpush1.bf16.msra.mxu0 %v347
  %361 = vmatprep.subr.bf16.mxu0 %v350
  %362 = vmatpush1.bf16.msra.mxu0 %v349
  %363 = vmatprep.subr.bf16.mxu0 0
  %364 = vmatpush1.bf16.msra.mxu0 0
  %365 = vmatprep.subr.bf16.mxu0 0
  %366 = vmatpush1.bf16.msra.mxu0 0
  %367 = vmatprep.subr.bf16.mxu0 0
  %368 = vmatpush1.bf16.msra.mxu0 0
  %369 = vmatprep.subr.bf16.mxu0 0
  %370 = vmatpush1.bf16.msra.mxu0 0
  %371 = vmatprep.subr.bf16.mxu0 0
  %372 = vmatpush1.bf16.msra.mxu0 0
  %373 = vmatprep.subr.bf16.mxu0 0
  %374 = vmatpush1.bf16.msra.mxu0 0
  %375 = vmatprep.subr.bf16.mxu0 0
  %376 = vmatpush1.bf16.msra.mxu0 0
  %377 = vmatprep.subr.bf16.mxu0 0
  %378 = vmatpush1.bf16.msra.mxu0 0
  %379 = vmatprep.subr.bf16.mxu0 0
  %380 = vmatpush1.bf16.msra.mxu0 0
  %381 = vmatprep.subr.bf16.mxu0 0
  %382 = vmatpush1.bf16.msra.mxu0 0
  %383 = vmatprep.subr.bf16.mxu0 0
  %384 = vmatpush1.bf16.msra.mxu0 0
  %385 = vmatprep.subr.bf16.mxu0 0
  %386 = vmatpush1.bf16.msra.mxu0 0
  %387 = vmatprep.subr.bf16.mxu0 0
  %388 = vmatpush1.bf16.msra.mxu0 0
  %389 = vmatprep.subr.bf16.mxu0 0
  %390 = vmatpush1.bf16.msra.mxu0 0
  %391 = vmatprep.mubr.bf16.mxu0 0
  %392 = vmatmul.mubr.bf16.gmra.mrb[0].mxu0 %v357
  %v393 = vpop.f32.mrb[0].mxu0
  %v394 = vadd.f32 0.0, %v393
  %v395 = vpop.f32.mrb[0].mxu0
  %v396 = vadd.f32 0.0, %v395
  %v397 = vpop.f32.mrb[0].mxu0
  %v398 = vadd.f32 0.0, %v397
  %v399 = vpop.f32.mrb[0].mxu0
  %v400 = vadd.f32 0.0, %v399
  %401 = vdwg.mxu0
  %v402 = vsel %vm333, %v394, %v396
  %v403 = vsel %vm334, %v398, %v400
  %v404 = vld [vmem:[#allocation3] sm:$0xff]
  %v405 = vld [vmem:[#allocation3 + $0x8] sm:$0xff]
  %v406 = vadd.f32 %v404, %v402
  %v407 = vadd.f32 %v405, %v403
  %v408 = vxor.u32 %v406, 2147483648
  %v409 = vxor.u32 %v407, 2147483648
  %v410 = vmul.f32 %v408, 1.442695
  %v411 = vpow.pop %v410
  %v412 = vmul.f32 %v409, 1.442695
  %v413 = vpow.pop %v412
  %v414 = vadd.f32 %v411, 1.0
  %v415 = vadd.f32 %v413, 1.0
  %v416 = vrcp.pop %v414
  %v417 = vmul.f32 1.0, %v416
  %v418 = vrcp.pop %v415
  %v419 = vmul.f32 1.0, %v418
  %v420 = vtanh.pop %v406
  %v421 = vtanh.pop %v407
  %v422 = vmul.f32 %v417, 0.0
  %v423 = vmul.f32 %v419, 0.0
  %426 = vrot.lane.b32.xlu0 %v420, 32
  %v427 = vpop.permute.xlu0 %426
  %428 = vrot.lane.b32.xlu0 %v421, 32
  %v429 = vpop.permute.xlu0 %428
  %v432 = vmul.f32 %v417, %v427
  %v433 = vmul.f32 %v419, %v429
  %436 = vrot.lane.b32.xlu0 %v432, 32
  %v437 = vpop.permute.xlu0 %436
  %438 = vrot.lane.b32.xlu0 %v433, 32
  %v439 = vpop.permute.xlu0 %438
  %v442 = vadd.f32 %v422, %v437
  %v443 = vadd.f32 %v423, %v439
  %v444 = vtanh.pop %v442
  %v445 = vtanh.pop %v443
  %448 = vrot.lane.b32.xlu0 %v444, 32
  %v449 = vpop.permute.xlu0 %448
  %450 = vrot.lane.b32.xlu0 %v445, 32
  %v451 = vpop.permute.xlu0 %450
  %v454 = vmul.f32 %v417, %v449
  %v455 = vmul.f32 %v419, %v451
  %v456 = vpack.c.bf16 %v454, %v454
  %v458 = vunpack.c.l.b16 %v456
  %v459 = vpack.c.b16 %v458, %v458
  %460 = vrot.lane.b32.xlu0 %v459, 64
  %v461 = vpop.permute.xlu0 %460
  %vm463 = vcmask 257024
  %464 = vst.msk [vmem:[%s4] sm:$0xf] %vm463, %v461
  %v465 = vpack.c.bf16 %v455, %v455
  %v467 = vunpack.c.l.b16 %v465
  %v468 = vpack.c.b16 %v467, %v467
  %469 = vrot.lane.b32.xlu0 %v468, 64
  %v470 = vpop.permute.xlu0 %469
  %s472 = sadd.s32 7, 8
  %s473 = smul.addr %s472, 4
  %s474 = scalar_lea.vmem %s4, %s473
  %475 = vst.msk [vmem:[%s474] sm:$0xf] %vm463, %v470
  %v476 = vpack.c.bf16 %v455, %v454
  %478 = vrot.lane.b32.xlu0 %v476, 64
  %v479 = vpop.permute.xlu0 %478
  %v481 = vsel %vm355, %v479, 0
  %483 = vmatprep.subr.bf16.mxu0 %v348
  %484 = vmatpush1.bf16.msra.mxu0 %v347
  %485 = vmatprep.subr.bf16.mxu0 %v350
  %486 = vmatpush1.bf16.msra.mxu0 %v349
  %487 = vmatprep.subr.bf16.mxu0 0
  %488 = vmatpush1.bf16.msra.mxu0 0
  %489 = vmatprep.subr.bf16.mxu0 0
  %490 = vmatpush1.bf16.msra.mxu0 0
  %491 = vmatprep.subr.bf16.mxu0 0
  %492 = vmatpush1.bf16.msra.mxu0 0
  %493 = vmatprep.subr.bf16.mxu0 0
  %494 = vmatpush1.bf16.msra.mxu0 0
  %495 = vmatprep.subr.bf16.mxu0 0
  %496 = vmatpush1.bf16.msra.mxu0 0
  %497 = vmatprep.subr.bf16.mxu0 0
  %498 = vmatpush1.bf16.msra.mxu0 0
  %499 = vmatprep.subr.bf16.mxu0 0
  %500 = vmatpush1.bf16.msra.mxu0 0
  %501 = vmatprep.subr.bf16.mxu0 0
  %502 = vmatpush1.bf16.msra.mxu0 0
  %503 = vmatprep.subr.bf16.mxu0 0
  %504 = vmatpush1.bf16.msra.mxu0 0
  %505 = vmatprep.subr.bf16.mxu0 0
  %506 = vmatpush1.bf16.msra.mxu0 0
  %507 = vmatprep.subr.bf16.mxu0 0
  %508 = vmatpush1.bf16.msra.mxu0 0
  %509 = vmatprep.subr.bf16.mxu0 0
  %510 = vmatpush1.bf16.msra.mxu0 0
  %511 = vmatprep.subr.bf16.mxu0 0
  %512 = vmatpush1.bf16.msra.mxu0 0
  %513 = vmatprep.subr.bf16.mxu0 0
  %514 = vmatpush1.bf16.msra.mxu0 0
  %515 = vmatprep.mubr.bf16.mxu0 0
  %516 = vmatmul.mubr.bf16.gmra.mrb[0].mxu0 %v481
  %v517 = vpop.f32.mrb[0].mxu0
  %v518 = vadd.f32 0.0, %v517
  %v519 = vpop.f32.mrb[0].mxu0
  %v520 = vadd.f32 0.0, %v519
  %v521 = vpop.f32.mrb[0].mxu0
  %v522 = vadd.f32 0.0, %v521
  %v523 = vpop.f32.mrb[0].mxu0
  %v524 = vadd.f32 0.0, %v523
  %525 = vdwg.mxu0
  %v526 = vsel %vm333, %v518, %v520
  %v527 = vsel %vm334, %v522, %v524
  %v528 = vld [vmem:[%s263] sm:$0xff]
  %v529 = vld [vmem:[%s263 + $0x8] sm:$0xff]
  %v530 = vadd.f32 %v528, %v526
  %v531 = vadd.f32 %v529, %v527
  %v532 = vxor.u32 %v530, 2147483648
  %v533 = vxor.u32 %v531, 2147483648
  %v534 = vmul.f32 %v532, 1.442695
  %v535 = vpow.pop %v534
  %v536 = vmul.f32 %v533, 1.442695
  %v537 = vpow.pop %v536
  %v538 = vadd.f32 %v535, 1.0
  %v539 = vadd.f32 %v537, 1.0
  %v540 = vrcp.pop %v538
  %v541 = vmul.f32 1.0, %v540
  %v542 = vrcp.pop %v539
  %v543 = vmul.f32 1.0, %v542
  %v544 = vtanh.pop %v530
  %v545 = vtanh.pop %v531
  %v546 = vmul.f32 %v541, %v442
  %v547 = vmul.f32 %v543, %v443
  %550 = vrot.lane.b32.xlu0 %v544, 32
  %v551 = vpop.permute.xlu0 %550
  %552 = vrot.lane.b32.xlu0 %v545, 32
  %v553 = vpop.permute.xlu0 %552
  %v556 = vmul.f32 %v541, %v551
  %v557 = vmul.f32 %v543, %v553
  %560 = vrot.lane.b32.xlu0 %v556, 32
  %v561 = vpop.permute.xlu0 %560
  %562 = vrot.lane.b32.xlu0 %v557, 32
  %v563 = vpop.permute.xlu0 %562
  %v566 = vadd.f32 %v546, %v561
  %v567 = vadd.f32 %v547, %v563
  %v568 = vtanh.pop %v566
  %v569 = vtanh.pop %v567
  %572 = vrot.lane.b32.xlu0 %v568, 32
  %v573 = vpop.permute.xlu0 %572
  %574 = vrot.lane.b32.xlu0 %v569, 32
  %v575 = vpop.permute.xlu0 %574
  %v578 = vmul.f32 %v541, %v573
  %v579 = vmul.f32 %v543, %v575
  %v580 = vpack.c.bf16 %v578, %v578
  %v582 = vunpack.c.l.b16 %v580
  %v583 = vpack.c.b16 %v582, %v582
  %584 = vrot.lane.b32.xlu0 %v583, 64
  %v585 = vpop.permute.xlu0 %584
  %s587 = scalar_lea.vmem %s4, 4
  %588 = vst.msk [vmem:[%s587] sm:$0xf] %vm463, %v585
  %v589 = vpack.c.bf16 %v579, %v579
  %v591 = vunpack.c.l.b16 %v589
  %v592 = vpack.c.b16 %v591, %v591
  %593 = vrot.lane.b32.xlu0 %v592, 64
  %v594 = vpop.permute.xlu0 %593
  %s596 = sadd.s32 6, 8
  %s597 = smul.addr %s596, 4
  %s598 = scalar_lea.vmem %s4, %s597
  %599 = vst.msk [vmem:[%s598] sm:$0xf] %vm463, %v594
  %v600 = vpack.c.bf16 %v579, %v578
  %602 = vrot.lane.b32.xlu0 %v600, 64
  %v603 = vpop.permute.xlu0 %602
  %v605 = vsel %vm355, %v603, 0
  %607 = vmatprep.subr.bf16.mxu0 %v348
  %608 = vmatpush1.bf16.msra.mxu0 %v347
  %609 = vmatprep.subr.bf16.mxu0 %v350
  %610 = vmatpush1.bf16.msra.mxu0 %v349
  %611 = vmatprep.subr.bf16.mxu0 0
  %612 = vmatpush1.bf16.msra.mxu0 0
  %613 = vmatprep.subr.bf16.mxu0 0
  %614 = vmatpush1.bf16.msra.mxu0 0
  %615 = vmatprep.subr.bf16.mxu0 0
  %616 = vmatpush1.bf16.msra.mxu0 0
  %617 = vmatprep.subr.bf16.mxu0 0
  %618 = vmatpush1.bf16.msra.mxu0 0
  %619 = vmatprep.subr.bf16.mxu0 0
  %620 = vmatpush1.bf16.msra.mxu0 0
  %621 = vmatprep.subr.bf16.mxu0 0
  %622 = vmatpush1.bf16.msra.mxu0 0
  %623 = vmatprep.subr.bf16.mxu0 0
  %624 = vmatpush1.bf16.msra.mxu0 0
  %625 = vmatprep.subr.bf16.mxu0 0
  %626 = vmatpush1.bf16.msra.mxu0 0
  %627 = vmatprep.subr.bf16.mxu0 0
  %628 = vmatpush1.bf16.msra.mxu0 0
  %629 = vmatprep.subr.bf16.mxu0 0
  %630 = vmatpush1.bf16.msra.mxu0 0
  %631 = vmatprep.subr.bf16.mxu0 0
  %632 = vmatpush1.bf16.msra.mxu0 0
  %633 = vmatprep.subr.bf16.mxu0 0
  %634 = vmatpush1.bf16.msra.mxu0 0
  %635 = vmatprep.subr.bf16.mxu0 0
  %636 = vmatpush1.bf16.msra.mxu0 0
  %637 = vmatprep.subr.bf16.mxu0 0
  %638 = vmatpush1.bf16.msra.mxu0 0
  %639 = vmatprep.mubr.bf16.mxu0 0
  %640 = vmatmul.mubr.bf16.gmra.mrb[0].mxu0 %v605
  %v641 = vpop.f32.mrb[0].mxu0
  %v642 = vadd.f32 0.0, %v641
  %v643 = vpop.f32.mrb[0].mxu0
  %v644 = vadd.f32 0.0, %v643
  %v645 = vpop.f32.mrb[0].mxu0
  %v646 = vadd.f32 0.0, %v645
  %v647 = vpop.f32.mrb[0].mxu0
  %v648 = vadd.f32 0.0, %v647
  %649 = vdwg.mxu0
  %v650 = vsel %vm333, %v642, %v644
  %v651 = vsel %vm334, %v646, %v648
  %v652 = vld [vmem:[%s276] sm:$0xff]
  %v653 = vld [vmem:[%s276 + $0x8] sm:$0xff]
  %v654 = vadd.f32 %v652, %v650
  %v655 = vadd.f32 %v653, %v651
  %v656 = vxor.u32 %v654, 2147483648
  %v657 = vxor.u32 %v655, 2147483648
  %v658 = vmul.f32 %v656, 1.442695
  %v659 = vpow.pop %v658
  %v660 = vmul.f32 %v657, 1.442695
  %v661 = vpow.pop %v660
  %v662 = vadd.f32 %v659, 1.0
  %v663 = vadd.f32 %v661, 1.0
  %v664 = vrcp.pop %v662
  %v665 = vmul.f32 1.0, %v664
  %v666 = vrcp.pop %v663
  %v667 = vmul.f32 1.0, %v666
  %v668 = vtanh.pop %v654
  %v669 = vtanh.pop %v655
  %v670 = vmul.f32 %v665, %v566
  %v671 = vmul.f32 %v667, %v567
  %674 = vrot.lane.b32.xlu0 %v668, 32
  %v675 = vpop.permute.xlu0 %674
  %676 = vrot.lane.b32.xlu0 %v669, 32
  %v677 = vpop.permute.xlu0 %676
  %v680 = vmul.f32 %v665, %v675
  %v681 = vmul.f32 %v667, %v677
  %684 = vrot.lane.b32.xlu0 %v680, 32
  %v685 = vpop.permute.xlu0 %684
  %686 = vrot.lane.b32.xlu0 %v681, 32
  %v687 = vpop.permute.xlu0 %686
  %v690 = vadd.f32 %v670, %v685
  %v691 = vadd.f32 %v671, %v687
  %v692 = vtanh.pop %v690
  %v693 = vtanh.pop %v691
  %696 = vrot.lane.b32.xlu0 %v692, 32
  %v697 = vpop.permute.xlu0 %696
  %698 = vrot.lane.b32.xlu0 %v693, 32
  %v699 = vpop.permute.xlu0 %698
  %v702 = vmul.f32 %v665, %v697
  %v703 = vmul.f32 %v667, %v699
  %v704 = vpack.c.bf16 %v702, %v702
  %v706 = vunpack.c.l.b16 %v704
  %v707 = vpack.c.b16 %v706, %v706
  %708 = vrot.lane.b32.xlu0 %v707, 64
  %v709 = vpop.permute.xlu0 %708
  %s711 = scalar_lea.vmem %s4, 8
  %712 = vst.msk [vmem:[%s711] sm:$0xf] %vm463, %v709
  %v713 = vpack.c.bf16 %v703, %v703
  %v715 = vunpack.c.l.b16 %v713
  %v716 = vpack.c.b16 %v715, %v715
  %717 = vrot.lane.b32.xlu0 %v716, 64
  %v718 = vpop.permute.xlu0 %717
  %s720 = sadd.s32 5, 8
  %s721 = smul.addr %s720, 4
  %s722 = scalar_lea.vmem %s4, %s721
  %723 = vst.msk [vmem:[%s722] sm:$0xf] %vm463, %v718
  %v724 = vpack.c.bf16 %v703, %v702
  %726 = vrot.lane.b32.xlu0 %v724, 64
  %v727 = vpop.permute.xlu0 %726
  %v729 = vsel %vm355, %v727, 0
  %731 = vmatprep.subr.bf16.mxu0 %v348
  %732 = vmatpush1.bf16.msra.mxu0 %v347
  %733 = vmatprep.subr.bf16.mxu0 %v350
  %734 = vmatpush1.bf16.msra.mxu0 %v349
  %735 = vmatprep.subr.bf16.mxu0 0
  %736 = vmatpush1.bf16.msra.mxu0 0
  %737 = vmatprep.subr.bf16.mxu0 0
  %738 = vmatpush1.bf16.msra.mxu0 0
  %739 = vmatprep.subr.bf16.mxu0 0
  %740 = vmatpush1.bf16.msra.mxu0 0
  %741 = vmatprep.subr.bf16.mxu0 0
  %742 = vmatpush1.bf16.msra.mxu0 0
  %743 = vmatprep.subr.bf16.mxu0 0
  %744 = vmatpush1.bf16.msra.mxu0 0
  %745 = vmatprep.subr.bf16.mxu0 0
  %746 = vmatpush1.bf16.msra.mxu0 0
  %747 = vmatprep.subr.bf16.mxu0 0
  %748 = vmatpush1.bf16.msra.mxu0 0
  %749 = vmatprep.subr.bf16.mxu0 0
  %750 = vmatpush1.bf16.msra.mxu0 0
  %751 = vmatprep.subr.bf16.mxu0 0
  %752 = vmatpush1.bf16.msra.mxu0 0
  %753 = vmatprep.subr.bf16.mxu0 0
  %754 = vmatpush1.bf16.msra.mxu0 0
  %755 = vmatprep.subr.bf16.mxu0 0
  %756 = vmatpush1.bf16.msra.mxu0 0
  %757 = vmatprep.subr.bf16.mxu0 0
  %758 = vmatpush1.bf16.msra.mxu0 0
  %759 = vmatprep.subr.bf16.mxu0 0
  %760 = vmatpush1.bf16.msra.mxu0 0
  %761 = vmatprep.subr.bf16.mxu0 0
  %762 = vmatpush1.bf16.msra.mxu0 0
  %763 = vmatprep.mubr.bf16.mxu0 0
  %764 = vmatmul.mubr.bf16.gmra.mrb[0].mxu0 %v729
  %v765 = vpop.f32.mrb[0].mxu0
  %v766 = vadd.f32 0.0, %v765
  %v767 = vpop.f32.mrb[0].mxu0
  %v768 = vadd.f32 0.0, %v767
  %v769 = vpop.f32.mrb[0].mxu0
  %v770 = vadd.f32 0.0, %v769
  %v771 = vpop.f32.mrb[0].mxu0
  %v772 = vadd.f32 0.0, %v771
  %773 = vdwg.mxu0
  %v774 = vsel %vm333, %v766, %v768
  %v775 = vsel %vm334, %v770, %v772
  %v776 = vld [vmem:[%s289] sm:$0xff]
  %v777 = vld [vmem:[%s289 + $0x8] sm:$0xff]
  %v778 = vadd.f32 %v776, %v774
  %v779 = vadd.f32 %v777, %v775
  %v780 = vxor.u32 %v778, 2147483648
  %v781 = vxor.u32 %v779, 2147483648
  %v782 = vmul.f32 %v780, 1.442695
  %v783 = vpow.pop %v782
  %v784 = vmul.f32 %v781, 1.442695
  %v785 = vpow.pop %v784
  %v786 = vadd.f32 %v783, 1.0
  %v787 = vadd.f32 %v785, 1.0
  %v788 = vrcp.pop %v786
  %v789 = vmul.f32 1.0, %v788
  %v790 = vrcp.pop %v787
  %v791 = vmul.f32 1.0, %v790
  %v792 = vtanh.pop %v778
  %v793 = vtanh.pop %v779
  %v794 = vmul.f32 %v789, %v690
  %v795 = vmul.f32 %v791, %v691
  %798 = vrot.lane.b32.xlu0 %v792, 32
  %v799 = vpop.permute.xlu0 %798
  %800 = vrot.lane.b32.xlu0 %v793, 32
  %v801 = vpop.permute.xlu0 %800
  %v804 = vmul.f32 %v789, %v799
  %v805 = vmul.f32 %v791, %v801
  %808 = vrot.lane.b32.xlu0 %v804, 32
  %v809 = vpop.permute.xlu0 %808
  %810 = vrot.lane.b32.xlu0 %v805, 32
  %v811 = vpop.permute.xlu0 %810
  %v814 = vadd.f32 %v794, %v809
  %v815 = vadd.f32 %v795, %v811
  %v816 = vtanh.pop %v814
  %v817 = vtanh.pop %v815
  %820 = vrot.lane.b32.xlu0 %v816, 32
  %v821 = vpop.permute.xlu0 %820
  %822 = vrot.lane.b32.xlu0 %v817, 32
  %v823 = vpop.permute.xlu0 %822
  %v826 = vmul.f32 %v789, %v821
  %v827 = vmul.f32 %v791, %v823
  %v828 = vpack.c.bf16 %v826, %v826
  %v830 = vunpack.c.l.b16 %v828
  %v831 = vpack.c.b16 %v830, %v830
  %832 = vrot.lane.b32.xlu0 %v831, 64
  %v833 = vpop.permute.xlu0 %832
  %s835 = scalar_lea.vmem %s4, 12
  %836 = vst.msk [vmem:[%s835] sm:$0xf] %vm463, %v833
  %v837 = vpack.c.bf16 %v827, %v827
  %v839 = vunpack.c.l.b16 %v837
  %v840 = vpack.c.b16 %v839, %v839
  %841 = vrot.lane.b32.xlu0 %v840, 64
  %v842 = vpop.permute.xlu0 %841
  %s844 = sadd.s32 4, 8
  %s845 = smul.addr %s844, 4
  %s846 = scalar_lea.vmem %s4, %s845
  %847 = vst.msk [vmem:[%s846] sm:$0xf] %vm463, %v842
  %v848 = vpack.c.bf16 %v827, %v826
  %850 = vrot.lane.b32.xlu0 %v848, 64
  %v851 = vpop.permute.xlu0 %850
  %v853 = vsel %vm355, %v851, 0
  %855 = vmatprep.subr.bf16.mxu0 %v348
  %856 = vmatpush1.bf16.msra.mxu0 %v347
  %857 = vmatprep.subr.bf16.mxu0 %v350
  %858 = vmatpush1.bf16.msra.mxu0 %v349
  %859 = vmatprep.subr.bf16.mxu0 0
  %860 = vmatpush1.bf16.msra.mxu0 0
  %861 = vmatprep.subr.bf16.mxu0 0
  %862 = vmatpush1.bf16.msra.mxu0 0
  %863 = vmatprep.subr.bf16.mxu0 0
  %864 = vmatpush1.bf16.msra.mxu0 0
  %865 = vmatprep.subr.bf16.mxu0 0
  %866 = vmatpush1.bf16.msra.mxu0 0
  %867 = vmatprep.subr.bf16.mxu0 0
  %868 = vmatpush1.bf16.msra.mxu0 0
  %869 = vmatprep.subr.bf16.mxu0 0
  %870 = vmatpush1.bf16.msra.mxu0 0
  %871 = vmatprep.subr.bf16.mxu0 0
  %872 = vmatpush1.bf16.msra.mxu0 0
  %873 = vmatprep.subr.bf16.mxu0 0
  %874 = vmatpush1.bf16.msra.mxu0 0
  %875 = vmatprep.subr.bf16.mxu0 0
  %876 = vmatpush1.bf16.msra.mxu0 0
  %877 = vmatprep.subr.bf16.mxu0 0
  %878 = vmatpush1.bf16.msra.mxu0 0
  %879 = vmatprep.subr.bf16.mxu0 0
  %880 = vmatpush1.bf16.msra.mxu0 0
  %881 = vmatprep.subr.bf16.mxu0 0
  %882 = vmatpush1.bf16.msra.mxu0 0
  %883 = vmatprep.subr.bf16.mxu0 0
  %884 = vmatpush1.bf16.msra.mxu0 0
  %885 = vmatprep.subr.bf16.mxu0 0
  %886 = vmatpush1.bf16.msra.mxu0 0
  %887 = vmatprep.mubr.bf16.mxu0 0
  %888 = vmatmul.mubr.bf16.gmra.mrb[0].mxu0 %v853
  %v889 = vpop.f32.mrb[0].mxu0
  %v890 = vadd.f32 0.0, %v889
  %v891 = vpop.f32.mrb[0].mxu0
  %v892 = vadd.f32 0.0, %v891
  %v893 = vpop.f32.mrb[0].mxu0
  %v894 = vadd.f32 0.0, %v893
  %v895 = vpop.f32.mrb[0].mxu0
  %v896 = vadd.f32 0.0, %v895
  %897 = vdwg.mxu0
  %v898 = vsel %vm333, %v890, %v892
  %v899 = vsel %vm334, %v894, %v896
  %v900 = vld [vmem:[%s299] sm:$0xff]
  %v901 = vld [vmem:[%s299 + $0x8] sm:$0xff]
  %v902 = vadd.f32 %v900, %v898
  %v903 = vadd.f32 %v901, %v899
  %v904 = vxor.u32 %v902, 2147483648
  %v905 = vxor.u32 %v903, 2147483648
  %v906 = vmul.f32 %v904, 1.442695
  %v907 = vpow.pop %v906
  %v908 = vmul.f32 %v905, 1.442695
  %v909 = vpow.pop %v908
  %v910 = vadd.f32 %v907, 1.0
  %v911 = vadd.f32 %v909, 1.0
  %v912 = vrcp.pop %v910
  %v913 = vmul.f32 1.0, %v912
  %v914 = vrcp.pop %v911
  %v915 = vmul.f32 1.0, %v914
  %v916 = vtanh.pop %v902
  %v917 = vtanh.pop %v903
  %v918 = vmul.f32 %v913, %v814
  %v919 = vmul.f32 %v915, %v815
  %922 = vrot.lane.b32.xlu0 %v916, 32
  %v923 = vpop.permute.xlu0 %922
  %924 = vrot.lane.b32.xlu0 %v917, 32
  %v925 = vpop.permute.xlu0 %924
  %v928 = vmul.f32 %v913, %v923
  %v929 = vmul.f32 %v915, %v925
  %932 = vrot.lane.b32.xlu0 %v928, 32
  %v933 = vpop.permute.xlu0 %932
  %934 = vrot.lane.b32.xlu0 %v929, 32
  %v935 = vpop.permute.xlu0 %934
  %v938 = vadd.f32 %v918, %v933
  %v939 = vadd.f32 %v919, %v935
  %v940 = vtanh.pop %v938
  %v941 = vtanh.pop %v939
  %944 = vrot.lane.b32.xlu0 %v940, 32
  %v945 = vpop.permute.xlu0 %944
  %946 = vrot.lane.b32.xlu0 %v941, 32
  %v947 = vpop.permute.xlu0 %946
  %v950 = vmul.f32 %v913, %v945
  %v951 = vmul.f32 %v915, %v947
  %v952 = vpack.c.bf16 %v950, %v950
  %v954 = vunpack.c.l.b16 %v952
  %v955 = vpack.c.b16 %v954, %v954
  %956 = vrot.lane.b32.xlu0 %v955, 64
  %v957 = vpop.permute.xlu0 %956
  %s959 = scalar_lea.vmem %s4, 16
  %960 = vst.msk [vmem:[%s959] sm:$0xf] %vm463, %v957
  %v961 = vpack.c.bf16 %v951, %v951
  %v963 = vunpack.c.l.b16 %v961
  %v964 = vpack.c.b16 %v963, %v963
  %965 = vrot.lane.b32.xlu0 %v964, 64
  %v966 = vpop.permute.xlu0 %965
  %s968 = sadd.s32 3, 8
  %s969 = smul.addr %s968, 4
  %s970 = scalar_lea.vmem %s4, %s969
  %971 = vst.msk [vmem:[%s970] sm:$0xf] %vm463, %v966
  %v972 = vpack.c.bf16 %v951, %v950
  %974 = vrot.lane.b32.xlu0 %v972, 64
  %v975 = vpop.permute.xlu0 %974
  %v977 = vsel %vm355, %v975, 0
  %979 = vmatprep.subr.bf16.mxu0 %v348
  %980 = vmatpush1.bf16.msra.mxu0 %v347
  %981 = vmatprep.subr.bf16.mxu0 %v350
  %982 = vmatpush1.bf16.msra.mxu0 %v349
  %983 = vmatprep.subr.bf16.mxu0 0
  %984 = vmatpush1.bf16.msra.mxu0 0
  %985 = vmatprep.subr.bf16.mxu0 0
  %986 = vmatpush1.bf16.msra.mxu0 0
  %987 = vmatprep.subr.bf16.mxu0 0
  %988 = vmatpush1.bf16.msra.mxu0 0
  %989 = vmatprep.subr.bf16.mxu0 0
  %990 = vmatpush1.bf16.msra.mxu0 0
  %991 = vmatprep.subr.bf16.mxu0 0
  %992 = vmatpush1.bf16.msra.mxu0 0
  %993 = vmatprep.subr.bf16.mxu0 0
  %994 = vmatpush1.bf16.msra.mxu0 0
  %995 = vmatprep.subr.bf16.mxu0 0
  %996 = vmatpush1.bf16.msra.mxu0 0
  %997 = vmatprep.subr.bf16.mxu0 0
  %998 = vmatpush1.bf16.msra.mxu0 0
  %999 = vmatprep.subr.bf16.mxu0 0
  %1000 = vmatpush1.bf16.msra.mxu0 0
  %1001 = vmatprep.subr.bf16.mxu0 0
  %1002 = vmatpush1.bf16.msra.mxu0 0
  %1003 = vmatprep.subr.bf16.mxu0 0
  %1004 = vmatpush1.bf16.msra.mxu0 0
  %1005 = vmatprep.subr.bf16.mxu0 0
  %1006 = vmatpush1.bf16.msra.mxu0 0
  %1007 = vmatprep.subr.bf16.mxu0 0
  %1008 = vmatpush1.bf16.msra.mxu0 0
  %1009 = vmatprep.subr.bf16.mxu0 0
  %1010 = vmatpush1.bf16.msra.mxu0 0
  %1011 = vmatprep.mubr.bf16.mxu0 0
  %1012 = vmatmul.mubr.bf16.gmra.mrb[0].mxu0 %v977
  %v1013 = vpop.f32.mrb[0].mxu0
  %v1014 = vadd.f32 0.0, %v1013
  %v1015 = vpop.f32.mrb[0].mxu0
  %v1016 = vadd.f32 0.0, %v1015
  %v1017 = vpop.f32.mrb[0].mxu0
  %v1018 = vadd.f32 0.0, %v1017
  %v1019 = vpop.f32.mrb[0].mxu0
  %v1020 = vadd.f32 0.0, %v1019
  %1021 = vdwg.mxu0
  %v1022 = vsel %vm333, %v1014, %v1016
  %v1023 = vsel %vm334, %v1018, %v1020
  %v1024 = vld [vmem:[%s306] sm:$0xff]
  %v1025 = vld [vmem:[%s306 + $0x8] sm:$0xff]
  %v1026 = vadd.f32 %v1024, %v1022
  %v1027 = vadd.f32 %v1025, %v1023
  %v1028 = vxor.u32 %v1026, 2147483648
  %v1029 = vxor.u32 %v1027, 2147483648
  %v1030 = vmul.f32 %v1028, 1.442695
  %v1031 = vpow.pop %v1030
  %v1032 = vmul.f32 %v1029, 1.442695
  %v1033 = vpow.pop %v1032
  %v1034 = vadd.f32 %v1031, 1.0
  %v1035 = vadd.f32 %v1033, 1.0
  %v1036 = vrcp.pop %v1034
  %v1037 = vmul.f32 1.0, %v1036
  %v1038 = vrcp.pop %v1035
  %v1039 = vmul.f32 1.0, %v1038
  %v1040 = vtanh.pop %v1026
  %v1041 = vtanh.pop %v1027
  %v1042 = vmul.f32 %v1037, %v938
  %v1043 = vmul.f32 %v1039, %v939
  %1046 = vrot.lane.b32.xlu0 %v1040, 32
  %v1047 = vpop.permute.xlu0 %1046
  %1048 = vrot.lane.b32.xlu0 %v1041, 32
  %v1049 = vpop.permute.xlu0 %1048
  %v1052 = vmul.f32 %v1037, %v1047
  %v1053 = vmul.f32 %v1039, %v1049
  %1056 = vrot.lane.b32.xlu0 %v1052, 32
  %v1057 = vpop.permute.xlu0 %1056
  %1058 = vrot.lane.b32.xlu0 %v1053, 32
  %v1059 = vpop.permute.xlu0 %1058
  %v1062 = vadd.f32 %v1042, %v1057
  %v1063 = vadd.f32 %v1043, %v1059
  %v1064 = vtanh.pop %v1062
  %v1065 = vtanh.pop %v1063
  %1068 = vrot.lane.b32.xlu0 %v1064, 32
  %v1069 = vpop.permute.xlu0 %1068
  %1070 = vrot.lane.b32.xlu0 %v1065, 32
  %v1071 = vpop.permute.xlu0 %1070
  %v1074 = vmul.f32 %v1037, %v1069
  %v1075 = vmul.f32 %v1039, %v1071
  %v1076 = vpack.c.bf16 %v1074, %v1074
  %v1078 = vunpack.c.l.b16 %v1076
  %v1079 = vpack.c.b16 %v1078, %v1078
  %1080 = vrot.lane.b32.xlu0 %v1079, 64
  %v1081 = vpop.permute.xlu0 %1080
  %s1083 = scalar_lea.vmem %s4, 20
  %1084 = vst.msk [vmem:[%s1083] sm:$0xf] %vm463, %v1081
  %v1085 = vpack.c.bf16 %v1075, %v1075
  %v1087 = vunpack.c.l.b16 %v1085
  %v1088 = vpack.c.b16 %v1087, %v1087
  %1089 = vrot.lane.b32.xlu0 %v1088, 64
  %v1090 = vpop.permute.xlu0 %1089
  %s1092 = sadd.s32 2, 8
  %s1093 = smul.addr %s1092, 4
  %s1094 = scalar_lea.vmem %s4, %s1093
  %1095 = vst.msk [vmem:[%s1094] sm:$0xf] %vm463, %v1090
  %v1096 = vpack.c.bf16 %v1075, %v1074
  %1098 = vrot.lane.b32.xlu0 %v1096, 64
  %v1099 = vpop.permute.xlu0 %1098
  %v1101 = vsel %vm355, %v1099, 0
  %1103 = vmatprep.subr.bf16.mxu0 %v348
  %1104 = vmatpush1.bf16.msra.mxu0 %v347
  %1105 = vmatprep.subr.bf16.mxu0 %v350
  %1106 = vmatpush1.bf16.msra.mxu0 %v349
  %1107 = vmatprep.subr.bf16.mxu0 0
  %1108 = vmatpush1.bf16.msra.mxu0 0
  %1109 = vmatprep.subr.bf16.mxu0 0
  %1110 = vmatpush1.bf16.msra.mxu0 0
  %1111 = vmatprep.subr.bf16.mxu0 0
  %1112 = vmatpush1.bf16.msra.mxu0 0
  %1113 = vmatprep.subr.bf16.mxu0 0
  %1114 = vmatpush1.bf16.msra.mxu0 0
  %1115 = vmatprep.subr.bf16.mxu0 0
  %1116 = vmatpush1.bf16.msra.mxu0 0
  %1117 = vmatprep.subr.bf16.mxu0 0
  %1118 = vmatpush1.bf16.msra.mxu0 0
  %1119 = vmatprep.subr.bf16.mxu0 0
  %1120 = vmatpush1.bf16.msra.mxu0 0
  %1121 = vmatprep.subr.bf16.mxu0 0
  %1122 = vmatpush1.bf16.msra.mxu0 0
  %1123 = vmatprep.subr.bf16.mxu0 0
  %1124 = vmatpush1.bf16.msra.mxu0 0
  %1125 = vmatprep.subr.bf16.mxu0 0
  %1126 = vmatpush1.bf16.msra.mxu0 0
  %1127 = vmatprep.subr.bf16.mxu0 0
  %1128 = vmatpush1.bf16.msra.mxu0 0
  %1129 = vmatprep.subr.bf16.mxu0 0
  %1130 = vmatpush1.bf16.msra.mxu0 0
  %1131 = vmatprep.subr.bf16.mxu0 0
  %1132 = vmatpush1.bf16.msra.mxu0 0
  %1133 = vmatprep.subr.bf16.mxu0 0
  %1134 = vmatpush1.bf16.msra.mxu0 0
  %1135 = vmatprep.mubr.bf16.mxu0 0
  %1136 = vmatmul.mubr.bf16.gmra.mrb[0].mxu0 %v1101
  %v1137 = vpop.f32.mrb[0].mxu0
  %v1138 = vadd.f32 0.0, %v1137
  %v1139 = vpop.f32.mrb[0].mxu0
  %v1140 = vadd.f32 0.0, %v1139
  %v1141 = vpop.f32.mrb[0].mxu0
  %v1142 = vadd.f32 0.0, %v1141
  %v1143 = vpop.f32.mrb[0].mxu0
  %v1144 = vadd.f32 0.0, %v1143
  %1145 = vdwg.mxu0
  %v1146 = vsel %vm333, %v1138, %v1140
  %v1147 = vsel %vm334, %v1142, %v1144
  %v1148 = vld [vmem:[%s313] sm:$0xff]
  %v1149 = vld [vmem:[%s313 + $0x8] sm:$0xff]
  %v1150 = vadd.f32 %v1148, %v1146
  %v1151 = vadd.f32 %v1149, %v1147
  %v1152 = vxor.u32 %v1150, 2147483648
  %v1153 = vxor.u32 %v1151, 2147483648
  %v1154 = vmul.f32 %v1152, 1.442695
  %v1155 = vpow.pop %v1154
  %v1156 = vmul.f32 %v1153, 1.442695
  %v1157 = vpow.pop %v1156
  %v1158 = vadd.f32 %v1155, 1.0
  %v1159 = vadd.f32 %v1157, 1.0
  %v1160 = vrcp.pop %v1158
  %v1161 = vmul.f32 1.0, %v1160
  %v1162 = vrcp.pop %v1159
  %v1163 = vmul.f32 1.0, %v1162
  %v1164 = vtanh.pop %v1150
  %v1165 = vtanh.pop %v1151
  %v1166 = vmul.f32 %v1161, %v1062
  %v1167 = vmul.f32 %v1163, %v1063
  %1170 = vrot.lane.b32.xlu0 %v1164, 32
  %v1171 = vpop.permute.xlu0 %1170
  %1172 = vrot.lane.b32.xlu0 %v1165, 32
  %v1173 = vpop.permute.xlu0 %1172
  %v1176 = vmul.f32 %v1161, %v1171
  %v1177 = vmul.f32 %v1163, %v1173
  %1180 = vrot.lane.b32.xlu0 %v1176, 32
  %v1181 = vpop.permute.xlu0 %1180
  %1182 = vrot.lane.b32.xlu0 %v1177, 32
  %v1183 = vpop.permute.xlu0 %1182
  %v1186 = vadd.f32 %v1166, %v1181
  %v1187 = vadd.f32 %v1167, %v1183
  %v1188 = vtanh.pop %v1186
  %v1189 = vtanh.pop %v1187
  %1192 = vrot.lane.b32.xlu0 %v1188, 32
  %v1193 = vpop.permute.xlu0 %1192
  %1194 = vrot.lane.b32.xlu0 %v1189, 32
  %v1195 = vpop.permute.xlu0 %1194
  %v1198 = vmul.f32 %v1161, %v1193
  %v1199 = vmul.f32 %v1163, %v1195
  %v1200 = vpack.c.bf16 %v1198, %v1198
  %v1202 = vunpack.c.l.b16 %v1200
  %v1203 = vpack.c.b16 %v1202, %v1202
  %1204 = vrot.lane.b32.xlu0 %v1203, 64
  %v1205 = vpop.permute.xlu0 %1204
  %s1207 = scalar_lea.vmem %s4, 24
  %1208 = vst.msk [vmem:[%s1207] sm:$0xf] %vm463, %v1205
  %v1209 = vpack.c.bf16 %v1199, %v1199
  %v1211 = vunpack.c.l.b16 %v1209
  %v1212 = vpack.c.b16 %v1211, %v1211
  %1213 = vrot.lane.b32.xlu0 %v1212, 64
  %v1214 = vpop.permute.xlu0 %1213
  %s1216 = sadd.s32 1, 8
  %s1217 = smul.addr %s1216, 4
  %s1218 = scalar_lea.vmem %s4, %s1217
  %1219 = vst.msk [vmem:[%s1218] sm:$0xf] %vm463, %v1214
  %v1220 = vpack.c.bf16 %v1199, %v1198
  %1222 = vrot.lane.b32.xlu0 %v1220, 64
  %v1223 = vpop.permute.xlu0 %1222
  %v1225 = vsel %vm355, %v1223, 0
  %1227 = vmatprep.subr.bf16.mxu0 %v348
  %1228 = vmatpush1.bf16.msra.mxu0 %v347
  %1229 = vmatprep.subr.bf16.mxu0 %v350
  %1230 = vmatpush1.bf16.msra.mxu0 %v349
  %1231 = vmatprep.subr.bf16.mxu0 0
  %1232 = vmatpush1.bf16.msra.mxu0 0
  %1233 = vmatprep.subr.bf16.mxu0 0
  %1234 = vmatpush1.bf16.msra.mxu0 0
  %1235 = vmatprep.subr.bf16.mxu0 0
  %1236 = vmatpush1.bf16.msra.mxu0 0
  %1237 = vmatprep.subr.bf16.mxu0 0
  %1238 = vmatpush1.bf16.msra.mxu0 0
  %1239 = vmatprep.subr.bf16.mxu0 0
  %1240 = vmatpush1.bf16.msra.mxu0 0
  %1241 = vmatprep.subr.bf16.mxu0 0
  %1242 = vmatpush1.bf16.msra.mxu0 0
  %1243 = vmatprep.subr.bf16.mxu0 0
  %1244 = vmatpush1.bf16.msra.mxu0 0
  %1245 = vmatprep.subr.bf16.mxu0 0
  %1246 = vmatpush1.bf16.msra.mxu0 0
  %1247 = vmatprep.subr.bf16.mxu0 0
  %1248 = vmatpush1.bf16.msra.mxu0 0
  %1249 = vmatprep.subr.bf16.mxu0 0
  %1250 = vmatpush1.bf16.msra.mxu0 0
  %1251 = vmatprep.subr.bf16.mxu0 0
  %1252 = vmatpush1.bf16.msra.mxu0 0
  %1253 = vmatprep.subr.bf16.mxu0 0
  %1254 = vmatpush1.bf16.msra.mxu0 0
  %1255 = vmatprep.subr.bf16.mxu0 0
  %1256 = vmatpush1.bf16.msra.mxu0 0
  %1257 = vmatprep.subr.bf16.mxu0 0
  %1258 = vmatpush1.bf16.msra.mxu0 0
  %1259 = vmatprep.mubr.bf16.mxu0 0
  %1260 = vmatmul.mubr.bf16.gmra.mrb[0].mxu0 %v1225
  %v1261 = vpop.f32.mrb[0].mxu0
  %v1262 = vadd.f32 0.0, %v1261
  %v1263 = vpop.f32.mrb[0].mxu0
  %v1264 = vadd.f32 0.0, %v1263
  %v1265 = vpop.f32.mrb[0].mxu0
  %v1266 = vadd.f32 0.0, %v1265
  %v1267 = vpop.f32.mrb[0].mxu0
  %v1268 = vadd.f32 0.0, %v1267
  %1269 = vdwg.mxu0
  %v1270 = vsel %vm333, %v1262, %v1264
  %v1271 = vsel %vm334, %v1266, %v1268
  %v1272 = vld [vmem:[%s320] sm:$0xff]
  %v1273 = vld [vmem:[%s320 + $0x8] sm:$0xff]
  %v1274 = vadd.f32 %v1272, %v1270
  %v1275 = vadd.f32 %v1273, %v1271
  %v1276 = vxor.u32 %v1274, 2147483648
  %v1277 = vxor.u32 %v1275, 2147483648
  %v1278 = vmul.f32 %v1276, 1.442695
  %v1279 = vpow.pop %v1278
  %v1280 = vmul.f32 %v1277, 1.442695
  %v1281 = vpow.pop %v1280
  %v1282 = vadd.f32 %v1279, 1.0
  %v1283 = vadd.f32 %v1281, 1.0
  %v1284 = vrcp.pop %v1282
  %v1285 = vmul.f32 1.0, %v1284
  %v1286 = vrcp.pop %v1283
  %v1287 = vmul.f32 1.0, %v1286
  %v1288 = vtanh.pop %v1274
  %v1289 = vtanh.pop %v1275
  %v1290 = vmul.f32 %v1285, %v1186
  %v1291 = vmul.f32 %v1287, %v1187
  %1294 = vrot.lane.b32.xlu0 %v1288, 32
  %v1295 = vpop.permute.xlu0 %1294
  %1296 = vrot.lane.b32.xlu0 %v1289, 32
  %v1297 = vpop.permute.xlu0 %1296
  %v1300 = vmul.f32 %v1285, %v1295
  %v1301 = vmul.f32 %v1287, %v1297
  %1304 = vrot.lane.b32.xlu0 %v1300, 32
  %v1305 = vpop.permute.xlu0 %1304
  %1306 = vrot.lane.b32.xlu0 %v1301, 32
  %v1307 = vpop.permute.xlu0 %1306
  %v1310 = vadd.f32 %v1290, %v1305
  %v1311 = vadd.f32 %v1291, %v1307
  %v1312 = vtanh.pop %v1310
  %v1313 = vtanh.pop %v1311
  %1316 = vrot.lane.b32.xlu0 %v1312, 32
  %v1317 = vpop.permute.xlu0 %1316
  %1318 = vrot.lane.b32.xlu0 %v1313, 32
  %v1319 = vpop.permute.xlu0 %1318
  %v1322 = vmul.f32 %v1285, %v1317
  %v1323 = vmul.f32 %v1287, %v1319
  %v1324 = vpack.c.bf16 %v1322, %v1322
  %v1326 = vunpack.c.l.b16 %v1324
  %v1327 = vpack.c.b16 %v1326, %v1326
  %1328 = vrot.lane.b32.xlu0 %v1327, 64
  %v1329 = vpop.permute.xlu0 %1328
  %s1331 = scalar_lea.vmem %s4, 28
  %1332 = vst.msk [vmem:[%s1331] sm:$0xf] %vm463, %v1329
  %v1333 = vpack.c.bf16 %v1323, %v1323
  %v1335 = vunpack.c.l.b16 %v1333
  %v1336 = vpack.c.b16 %v1335, %v1335
  %1337 = vrot.lane.b32.xlu0 %v1336, 64
  %v1338 = vpop.permute.xlu0 %1337
  %s1340 = sadd.s32 0, 8
  %s1341 = smul.addr %s1340, 4
  %s1342 = scalar_lea.vmem %s4, %s1341
  %1343 = vst.msk [vmem:[%s1342] sm:$0xf] %vm463, %v1338
  // Predicated region
  $region18: #{forward.3} parent=0 // pred_check
    _
  $region19: #{forward.3} parent=0 // pred_check_branch
    %1345 = sbr.rel (0) target = $region21
  $region20: #{forward.3} parent=0 // pred_region
    _
  $region21: #{forward.3} parent=0 // pred_fallthru
    _
  // Predicated region
  $region22: #{forward.3} parent=0 // pred_check
    _
  $region23: #{forward.3} parent=0 // pred_check_branch
    %1347 = sbr.rel (0) target = $region25
  $region24: #{forward.3} parent=0 // pred_region
    _
  $region25: #{forward.3} parent=0 // pred_fallthru
    _

</llo_original>
